<compile_context>
chip_gen: v7x
topology: tpu7x:2x2x1
jax: 0.10.0
libtpu: 0.0.40
codegen_flags: <defaults>
</compile_context>

<pallas_src>
import jax
import jax.numpy as jnp
from jax import lax
from jax.experimental import pallas as pl
from jax.experimental.pallas import tpu as pltpu


# ----------------------------------------------------------------------------
# Fused kernel: 2x bilinear upsample (fixed 0.25/0.75 taps on the VPU)
#               + 3x3 conv (zero pad) + BN-affine + PReLU.
#
#   x_ref : (1, 1, tH+2, W+2, Cin)  bf16  edge-clamped original-res halo window
#   w_ref : (4, 3, Cin, 2*Cout)     bf16  per-(column-group, dy) packed weights
#   p_ref : (3, 2*Cout)             f32   rows = [scale, shift, prelu alpha]
#   o_ref : (1, 2*tH, W, 2*Cout)    f32   factorized output: last axis is
#                                         [even-col phase | odd-col phase]
# ----------------------------------------------------------------------------
def psp_fused_kernel(x_ref, w_ref, p_ref, o_ref):
    tH = x_ref.shape[2] - 2
    W = x_ref.shape[3] - 2
    Cin = x_ref.shape[4]
    Ho = o_ref.shape[1]            # = 2 * tH
    Cout2 = o_ref.shape[3]         # = 2 * Cout

    t = pl.program_id(1)
    n_t = pl.num_programs(1)

    xw = x_ref[0, 0].astype(jnp.float32)               # (tH+2, W+2, Cin)

    # ---- bilinear 2x along H (VPU).  Local up-row q in [0, Ho+1] covers the
    # conv halo of this tile:
    #   q even -> 0.75*xw[q/2]     + 0.25*xw[q/2 + 1]
    #   q odd  -> 0.25*xw[(q-1)/2] + 0.75*xw[(q+1)/2]
    a = xw[0:tH + 1]
    b = xw[1:tH + 2]
    even_r = 0.75 * a + 0.25 * b                        # (tH+1, W+2, Cin)
    odd_r = 0.25 * a + 0.75 * b
    # row interleave = leading-dim stack + leading-dim merge (layout-free)
    up_h = jnp.stack([even_r, odd_r], axis=1).reshape(Ho + 2, W + 2, Cin)

    # conv zero-padding in H: the first/last halo row is outside the upsampled
    # image only for the global top/bottom tile -> force it to zero there.
    row = lax.broadcasted_iota(jnp.int32, (Ho + 2, 1, 1), 0)
    kill = ((row == 0) & (t == 0)) | ((row == Ho + 1) & (t == n_t - 1))
    up_h = jnp.where(kill, 0.0, up_h)

    # ---- bilinear 2x along W, kept factorized as even/odd output-column
    # phases; the 2W-wide image is never materialized.
    u0 = up_h[:, 0:W, :]
    u1 = up_h[:, 1:W + 1, :]
    u2 = up_h[:, 2:W + 2, :]
    col = lax.broadcasted_iota(jnp.int32, (1, W, 1), 1)
    ec = 0.25 * u0 + 0.75 * u1                               # up col 2j
    oc = 0.75 * u1 + 0.25 * u2                               # up col 2j+1
    ocl = jnp.where(col == 0, 0.0, 0.75 * u0 + 0.25 * u1)    # up col 2j-1 (conv zero-pad at j=0)
    ecr = jnp.where(col == W - 1, 0.0, 0.25 * u1 + 0.75 * u2)  # up col 2j+2 (zero at j=W-1)

    groups = (ocl.astype(jnp.bfloat16), ec.astype(jnp.bfloat16),
              oc.astype(jnp.bfloat16), ecr.astype(jnp.bfloat16))

    # ---- 3x3 conv as accumulating bf16 MXU matmuls, f32 accumulator.
    # LHS per tap is a *leading-dim* slice of a phase array (no sublane-shifted
    # patch copies).  RHS packs both output phases side by side -> the result
    # lands directly in the lane-dense (Ho*W, 2*Cout) output layout.
    # (For production channel counts the 4 groups / 3 dy taps could further be
    # folded into a single K = 12*Cin im2col matmul via a lane concat.)
    acc = jnp.zeros((Ho * W, Cout2), dtype=jnp.float32)
    for g in range(4):
        src = groups[g]
        for dy in range(3):
            lhs = src[dy:dy + Ho].reshape(Ho * W, Cin)
            acc = acc + jnp.dot(lhs, w_ref[g, dy],
                                preferred_element_type=jnp.float32)

    # ---- fused BatchNorm(eval) affine (conv bias folded in) + PReLU.
    p = p_ref[...]
    y = acc * p[0:1, :] + p[1:2, :]
    y = jnp.where(y > 0, y, p[2:3, :] * y)

    o_ref[0] = y.reshape(Ho, W, Cout2).astype(o_ref.dtype)


# ----------------------------------------------------------------------------
# Wrapper: original-resolution prep only (transpose/pad/window on the SMALL
# tensor), weight packing, pallas_call, free reshape back to (N, Cout, 2H, 2W).
# ----------------------------------------------------------------------------
def psp_upsample_forward(x_nchw, params, *, tile_h=8):
    w_hwio = params["w_hwio"].astype(jnp.float32)       # (3, 3, Cin, Cout)
    scale, shift, alpha = params["scale"], params["shift"], params["alpha"]
    N, Cin, H, W = x_nchw.shape
    Cout = w_hwio.shape[-1]

    # pick an H tile that divides H (size so ~2x-buffered tiles stay well under
    # the v7x 64 MiB / v6e-v5e 128 MiB VMEM budgets at real resolutions).
    th = max(1, min(tile_h, H))
    while H % th:
        th -= 1
    T = H // th

    # original-resolution prep: NCHW->NHWC, bf16, edge-clamp pad, halo windows.
    x_nhwc = jnp.transpose(x_nchw, (0, 2, 3, 1)).astype(jnp.bfloat16)
    x_pad = jnp.pad(x_nhwc, ((0, 0), (1, 1), (1, 1), (0, 0)), mode="edge")
    x_win = jnp.stack([x_pad[:, i * th:i * th + th + 2] for i in range(T)],
                      axis=1)                            # (N, T, th+2, W+2, Cin)

    # pack weights per (column group, dy) with both output phases side by side:
    #   groups: 0=up col 2j-1, 1=up col 2j, 2=up col 2j+1, 3=up col 2j+2
    wq = w_hwio.astype(jnp.bfloat16).astype(jnp.float32)
    z = jnp.zeros_like(wq[:, 0])                         # (3, Cin, Cout)
    w_packed = jnp.stack([
        jnp.concatenate([wq[:, 0], z], axis=-1),         # group feeds phase0 dx=0
        jnp.concatenate([wq[:, 1], wq[:, 0]], axis=-1),  # phase0 dx=1 / phase1 dx=0
        jnp.concatenate([wq[:, 2], wq[:, 1]], axis=-1),  # phase0 dx=2 / phase1 dx=1
        jnp.concatenate([z, wq[:, 2]], axis=-1),         # phase1 dx=2
    ], axis=0).astype(jnp.bfloat16)                      # (4, 3, Cin, 2*Cout)

    p2 = jnp.stack([jnp.concatenate([scale, scale]),
                    jnp.concatenate([shift, shift]),
                    jnp.concatenate([alpha, alpha])], axis=0).astype(jnp.float32)

    out = pl.pallas_call(
        psp_fused_kernel,
        out_shape=jax.ShapeDtypeStruct((N, 2 * H, W, 2 * Cout), jnp.float32),
        grid=(N, T),
        in_specs=[
            pl.BlockSpec((1, 1, th + 2, W + 2, Cin), lambda n, t: (n, t, 0, 0, 0)),
            pl.BlockSpec((4, 3, Cin, 2 * Cout), lambda n, t: (0, 0, 0, 0)),
            pl.BlockSpec((3, 2 * Cout), lambda n, t: (0, 0)),
        ],
        out_specs=pl.BlockSpec((1, 2 * th, W, 2 * Cout), lambda n, t: (n, t, 0, 0)),
        compiler_params=pltpu.CompilerParams(
            dimension_semantics=("parallel", "parallel"),
            vmem_limit_bytes=32 * 1024 * 1024),
    )(x_win, w_packed, p2)

    # (N, 2H, W, 2*Cout) -> (N, 2H, 2W, Cout): free row-major reinterpretation.
    out = out.reshape(N, 2 * H, 2 * W, Cout)
    return jnp.transpose(out, (0, 3, 1, 2))              # back to NCHW (PyTorch)


# ----------------------------------------------------------------------------
# Pure-JAX reference (same bf16 quantization points) for a sanity check.
# ----------------------------------------------------------------------------
def bilinear_upsample_2x(x_nchw):
    N, C, H, W = x_nchw.shape

    def coords(out_size, in_size):
        i = jnp.arange(out_size, dtype=jnp.float32)
        src = (i + 0.5) * (in_size / out_size) - 0.5
        src = jnp.clip(src, 0.0, float(in_size - 1))
        i0 = jnp.floor(src).astype(jnp.int32)
        i1 = jnp.minimum(i0 + 1, in_size - 1)
        frac = src - i0.astype(jnp.float32)
        return i0, i1, frac

    h0, h1, fh = coords(2 * H, H)
    w0, w1, fw = coords(2 * W, W)
    top = jnp.take(x_nchw, h0, axis=2)
    bot = jnp.take(x_nchw, h1, axis=2)
    rows = top * (1.0 - fh)[None, None, :, None] + bot * fh[None, None, :, None]
    left = jnp.take(rows, w0, axis=3)
    right = jnp.take(rows, w1, axis=3)
    return left * (1.0 - fw)[None, None, None, :] + right * fw[None, None, None, :]


def reference_forward(x_nchw, params):
    xq = x_nchw.astype(jnp.bfloat16).astype(jnp.float32)
    up = bilinear_upsample_2x(xq)
    upq = up.astype(jnp.bfloat16).astype(jnp.float32)
    wq = params["w_hwio"].astype(jnp.bfloat16).astype(jnp.float32)
    up_nhwc = jnp.transpose(upq, (0, 2, 3, 1))
    y = lax.conv_general_dilated(
        up_nhwc, wq, window_strides=(1, 1), padding=((1, 1), (1, 1)),
        dimension_numbers=("NHWC", "HWIO", "NHWC"),
        preferred_element_type=jnp.float32,
        precision=lax.Precision.HIGHEST)
    y = y * params["scale"][None, None, None, :] + params["shift"][None, None, None, :]
    y = jnp.where(y > 0, y, params["alpha"][None, None, None, :] * y)
    return jnp.transpose(y, (0, 3, 1, 2))


def make_params(key, in_channels, out_channels):
    k1, k2, k3, k4 = jax.random.split(key, 4)
    # Conv2d(in, out, 3): weight (Cout, Cin, 3, 3), bias (Cout,)
    w_oihw = 0.1 * jax.random.normal(k1, (out_channels, in_channels, 3, 3), jnp.float32)
    b = 0.1 * jax.random.normal(k2, (out_channels,), jnp.float32)
    # BatchNorm2d(out): gamma, beta; inference with fresh stats mean=0, var=1.
    gamma = 1.0 + 0.1 * jax.random.normal(k3, (out_channels,), jnp.float32)
    beta = 0.1 * jax.random.normal(k4, (out_channels,), jnp.float32)
    running_mean = jnp.zeros((out_channels,), jnp.float32)
    running_var = jnp.ones((out_channels,), jnp.float32)
    eps = 1e-5
    # PReLU(): single shared slope 0.25, broadcast per channel.
    alpha = jnp.full((out_channels,), 0.25, jnp.float32)

    bn_scale = gamma / jnp.sqrt(running_var + eps)
    scale = bn_scale
    shift = bn_scale * (b - running_mean) + beta
    w_hwio = jnp.transpose(w_oihw, (2, 3, 1, 0))          # (3, 3, Cin, Cout)
    return {"w_hwio": w_hwio, "scale": scale, "shift": shift, "alpha": alpha}


if __name__ == "__main__":
    key = jax.random.PRNGKey(0)
    kx, kp = jax.random.split(key)

    in_channels, out_channels = 4, 8
    x = jax.random.normal(kx, (2, in_channels, 16, 16), jnp.float32)   # NCHW
    params = make_params(kp, in_channels, out_channels)

    out = jax.block_until_ready(psp_upsample_forward(x, params, tile_h=8))
    ref = jax.block_until_ready(reference_forward(x, params))

    assert out.shape == (2, out_channels, 32, 32), out.shape
    max_err = float(jnp.max(jnp.abs(out - ref)))
    assert jnp.allclose(out, ref, atol=2e-2, rtol=2e-2), max_err

    print("KERNEL_OK")
</pallas_src>

<mosaic_0001>
module attributes {stable_mosaic.version = 11 : i64} {
  func.func @psp_fused_kernel(%arg0: i32, %arg1: i32, %arg2: memref<1x1x10x18x4xbf16, #tpu.memory_space<vmem>>, %arg3: memref<4x3x4x16xbf16, #tpu.memory_space<vmem>>, %arg4: memref<3x16xf32, #tpu.memory_space<vmem>>, %arg5: memref<1x16x16x16xf32, #tpu.memory_space<vmem>>) attributes {dimension_semantics = [#tpu.dimension_semantics<parallel>, #tpu.dimension_semantics<parallel>], iteration_bounds = array<i64: 2, 2>, scalar_prefetch = 0 : i64, scratch_operands = 0 : i64, tpu.core_type = #tpu.core_type<tc>, window_params = [{transform_indices = @transform_0, window_bounds = array<i64: 1, 1, 10, 18, 4>}, {pipeline_mode = #tpu.pipeline_mode<synchronous>, transform_indices = @transform_1, window_bounds = array<i64: 4, 3, 4, 16>}, {pipeline_mode = #tpu.pipeline_mode<synchronous>, transform_indices = @transform_2, window_bounds = array<i64: 3, 16>}, {transform_indices = @transform_3, window_bounds = array<i64: 1, 16, 16, 16>}]} {
    %c0 = arith.constant 0 : index
    %c0_0 = arith.constant 0 : index
    %c0_1 = arith.constant 0 : index
    %c0_2 = arith.constant 0 : index
    %c0_3 = arith.constant 0 : index
    %0 = vector.load %arg2[%c0, %c0_0, %c0_1, %c0_2, %c0_3] : memref<1x1x10x18x4xbf16, #tpu.memory_space<vmem>>, vector<1x1x10x18x4xbf16>
    %1 = vector.shape_cast %0 : vector<1x1x10x18x4xbf16> to vector<10x18x4xbf16>
    %2 = arith.extf %1 : vector<10x18x4xbf16> to vector<10x18x4xf32>
    %3 = vector.extract_strided_slice %2 {offsets = [0, 0, 0], sizes = [9, 18, 4], strides = [1, 1, 1]} : vector<10x18x4xf32> to vector<9x18x4xf32>
    %4 = vector.extract_strided_slice %2 {offsets = [1, 0, 0], sizes = [9, 18, 4], strides = [1, 1, 1]} : vector<10x18x4xf32> to vector<9x18x4xf32>
    %cst = arith.constant 7.500000e-01 : f32
    %5 = vector.broadcast %cst : f32 to vector<9x18x4xf32>
    %6 = arith.mulf %5, %3 : vector<9x18x4xf32>
    %cst_4 = arith.constant 2.500000e-01 : f32
    %7 = vector.broadcast %cst_4 : f32 to vector<9x18x4xf32>
    %8 = arith.mulf %7, %4 : vector<9x18x4xf32>
    %9 = arith.addf %6, %8 : vector<9x18x4xf32>
    %cst_5 = arith.constant 2.500000e-01 : f32
    %10 = vector.broadcast %cst_5 : f32 to vector<9x18x4xf32>
    %11 = arith.mulf %10, %3 : vector<9x18x4xf32>
    %cst_6 = arith.constant 7.500000e-01 : f32
    %12 = vector.broadcast %cst_6 : f32 to vector<9x18x4xf32>
    %13 = arith.mulf %12, %4 : vector<9x18x4xf32>
    %14 = arith.addf %11, %13 : vector<9x18x4xf32>
    %15 = vector.shape_cast %9 : vector<9x18x4xf32> to vector<9x1x18x4xf32>
    %16 = vector.shape_cast %14 : vector<9x18x4xf32> to vector<9x1x18x4xf32>
    %17 = tpu.concatenate %15, %16 in 1 : vector<9x1x18x4xf32>, vector<9x1x18x4xf32> -> vector<9x2x18x4xf32>
    %18 = vector.shape_cast %17 : vector<9x2x18x4xf32> to vector<18x18x4xf32>
    %19 = tpu.iota {dimensions = array<i32: 0>} : vector<18x1x1xi32>
    %c0_i32 = arith.constant 0 : i32
    %20 = vector.broadcast %c0_i32 : i32 to vector<18x1x1xi32>
    %21 = arith.cmpi eq, %19, %20 : vector<18x1x1xi32>
    %c0_i32_7 = arith.constant 0 : i32
    %22 = arith.cmpi eq, %arg1, %c0_i32_7 : i32
    %23 = vector.broadcast %22 : i1 to vector<18x1x1xi1>
    %24 = arith.andi %21, %23 : vector<18x1x1xi1>
    %c17_i32 = arith.constant 17 : i32
    %25 = vector.broadcast %c17_i32 : i32 to vector<18x1x1xi32>
    %26 = arith.cmpi eq, %19, %25 : vector<18x1x1xi32>
    %c1_i32 = arith.constant 1 : i32
    %27 = arith.cmpi eq, %arg1, %c1_i32 : i32
    %28 = vector.broadcast %27 : i1 to vector<18x1x1xi1>
    %29 = arith.andi %26, %28 : vector<18x1x1xi1>
    %30 = arith.ori %24, %29 : vector<18x1x1xi1>
    %cst_8 = arith.constant 0.000000e+00 : f32
    %31 = vector.shape_cast %30 : vector<18x1x1xi1> to vector<18x1x1xi1>
    %32 = vector.broadcast %31 : vector<18x1x1xi1> to vector<18x18x4xi1>
    %33 = vector.broadcast %cst_8 : f32 to vector<18x18x4xf32>
    %34 = arith.select %32, %33, %18 : vector<18x18x4xi1>, vector<18x18x4xf32>
    %35 = vector.extract_strided_slice %34 {offsets = [0, 0, 0], sizes = [18, 16, 4], strides = [1, 1, 1]} : vector<18x18x4xf32> to vector<18x16x4xf32>
    %36 = vector.extract_strided_slice %34 {offsets = [0, 1, 0], sizes = [18, 16, 4], strides = [1, 1, 1]} : vector<18x18x4xf32> to vector<18x16x4xf32>
    %37 = vector.extract_strided_slice %34 {offsets = [0, 2, 0], sizes = [18, 16, 4], strides = [1, 1, 1]} : vector<18x18x4xf32> to vector<18x16x4xf32>
    %38 = tpu.iota {dimensions = array<i32: 1>} : vector<1x16x1xi32>
    %cst_9 = arith.constant 2.500000e-01 : f32
    %39 = vector.broadcast %cst_9 : f32 to vector<18x16x4xf32>
    %40 = arith.mulf %39, %35 : vector<18x16x4xf32>
    %cst_10 = arith.constant 7.500000e-01 : f32
    %41 = vector.broadcast %cst_10 : f32 to vector<18x16x4xf32>
    %42 = arith.mulf %41, %36 : vector<18x16x4xf32>
    %43 = arith.addf %40, %42 : vector<18x16x4xf32>
    %cst_11 = arith.constant 7.500000e-01 : f32
    %44 = vector.broadcast %cst_11 : f32 to vector<18x16x4xf32>
    %45 = arith.mulf %44, %36 : vector<18x16x4xf32>
    %cst_12 = arith.constant 2.500000e-01 : f32
    %46 = vector.broadcast %cst_12 : f32 to vector<18x16x4xf32>
    %47 = arith.mulf %46, %37 : vector<18x16x4xf32>
    %48 = arith.addf %45, %47 : vector<18x16x4xf32>
    %c0_i32_13 = arith.constant 0 : i32
    %49 = vector.broadcast %c0_i32_13 : i32 to vector<1x16x1xi32>
    %50 = arith.cmpi eq, %38, %49 : vector<1x16x1xi32>
    %cst_14 = arith.constant 7.500000e-01 : f32
    %51 = vector.broadcast %cst_14 : f32 to vector<18x16x4xf32>
    %52 = arith.mulf %51, %35 : vector<18x16x4xf32>
    %cst_15 = arith.constant 2.500000e-01 : f32
    %53 = vector.broadcast %cst_15 : f32 to vector<18x16x4xf32>
    %54 = arith.mulf %53, %36 : vector<18x16x4xf32>
    %55 = arith.addf %52, %54 : vector<18x16x4xf32>
    %cst_16 = arith.constant 0.000000e+00 : f32
    %56 = vector.shape_cast %50 : vector<1x16x1xi1> to vector<1x16x1xi1>
    %57 = vector.broadcast %56 : vector<1x16x1xi1> to vector<18x16x4xi1>
    %58 = vector.broadcast %cst_16 : f32 to vector<18x16x4xf32>
    %59 = arith.select %57, %58, %55 : vector<18x16x4xi1>, vector<18x16x4xf32>
    %c15_i32 = arith.constant 15 : i32
    %60 = vector.broadcast %c15_i32 : i32 to vector<1x16x1xi32>
    %61 = arith.cmpi eq, %38, %60 : vector<1x16x1xi32>
    %cst_17 = arith.constant 2.500000e-01 : f32
    %62 = vector.broadcast %cst_17 : f32 to vector<18x16x4xf32>
    %63 = arith.mulf %62, %36 : vector<18x16x4xf32>
    %cst_18 = arith.constant 7.500000e-01 : f32
    %64 = vector.broadcast %cst_18 : f32 to vector<18x16x4xf32>
    %65 = arith.mulf %64, %37 : vector<18x16x4xf32>
    %66 = arith.addf %63, %65 : vector<18x16x4xf32>
    %cst_19 = arith.constant 0.000000e+00 : f32
    %67 = vector.shape_cast %61 : vector<1x16x1xi1> to vector<1x16x1xi1>
    %68 = vector.broadcast %67 : vector<1x16x1xi1> to vector<18x16x4xi1>
    %69 = vector.broadcast %cst_19 : f32 to vector<18x16x4xf32>
    %70 = arith.select %68, %69, %66 : vector<18x16x4xi1>, vector<18x16x4xf32>
    %71 = arith.truncf %59 : vector<18x16x4xf32> to vector<18x16x4xbf16>
    %72 = arith.truncf %43 : vector<18x16x4xf32> to vector<18x16x4xbf16>
    %73 = arith.truncf %48 : vector<18x16x4xf32> to vector<18x16x4xbf16>
    %74 = arith.truncf %70 : vector<18x16x4xf32> to vector<18x16x4xbf16>
    %cst_20 = arith.constant 0.000000e+00 : f32
    %75 = vector.broadcast %cst_20 : f32 to vector<256x16xf32>
    %76 = vector.extract_strided_slice %71 {offsets = [0, 0, 0], sizes = [16, 16, 4], strides = [1, 1, 1]} : vector<18x16x4xbf16> to vector<16x16x4xbf16>
    %77 = vector.shape_cast %76 : vector<16x16x4xbf16> to vector<256x4xbf16>
    %c0_21 = arith.constant 0 : index
    %c0_22 = arith.constant 0 : index
    %c0_23 = arith.constant 0 : index
    %c0_24 = arith.constant 0 : index
    %78 = vector.load %arg3[%c0_21, %c0_22, %c0_23, %c0_24] : memref<4x3x4x16xbf16, #tpu.memory_space<vmem>>, vector<1x1x4x16xbf16>
    %79 = vector.shape_cast %78 : vector<1x1x4x16xbf16> to vector<4x16xbf16>
    %cst_25 = arith.constant dense<0.000000e+00> : vector<256x16xf32>
    %80 = tpu.matmul %77, %79, %cst_25 {dimension_numbers = #tpu.dot_dimension_numbers<[1], [0], [0], [1], [0, 0, 1, 1], [], []>} : vector<256x4xbf16>, vector<4x16xbf16>, vector<256x16xf32> -> vector<256x16xf32>
    %81 = arith.addf %75, %80 : vector<256x16xf32>
    %82 = vector.extract_strided_slice %71 {offsets = [1, 0, 0], sizes = [16, 16, 4], strides = [1, 1, 1]} : vector<18x16x4xbf16> to vector<16x16x4xbf16>
    %83 = vector.shape_cast %82 : vector<16x16x4xbf16> to vector<256x4xbf16>
    %c0_26 = arith.constant 0 : index
    %c1 = arith.constant 1 : index
    %c0_27 = arith.constant 0 : index
    %c0_28 = arith.constant 0 : index
    %84 = vector.load %arg3[%c0_26, %c1, %c0_27, %c0_28] : memref<4x3x4x16xbf16, #tpu.memory_space<vmem>>, vector<1x1x4x16xbf16>
    %85 = vector.shape_cast %84 : vector<1x1x4x16xbf16> to vector<4x16xbf16>
    %cst_29 = arith.constant dense<0.000000e+00> : vector<256x16xf32>
    %86 = tpu.matmul %83, %85, %cst_29 {dimension_numbers = #tpu.dot_dimension_numbers<[1], [0], [0], [1], [0, 0, 1, 1], [], []>} : vector<256x4xbf16>, vector<4x16xbf16>, vector<256x16xf32> -> vector<256x16xf32>
    %87 = arith.addf %81, %86 : vector<256x16xf32>
    %88 = vector.extract_strided_slice %71 {offsets = [2, 0, 0], sizes = [16, 16, 4], strides = [1, 1, 1]} : vector<18x16x4xbf16> to vector<16x16x4xbf16>
    %89 = vector.shape_cast %88 : vector<16x16x4xbf16> to vector<256x4xbf16>
    %c0_30 = arith.constant 0 : index
    %c2 = arith.constant 2 : index
    %c0_31 = arith.constant 0 : index
    %c0_32 = arith.constant 0 : index
    %90 = vector.load %arg3[%c0_30, %c2, %c0_31, %c0_32] : memref<4x3x4x16xbf16, #tpu.memory_space<vmem>>, vector<1x1x4x16xbf16>
    %91 = vector.shape_cast %90 : vector<1x1x4x16xbf16> to vector<4x16xbf16>
    %cst_33 = arith.constant dense<0.000000e+00> : vector<256x16xf32>
    %92 = tpu.matmul %89, %91, %cst_33 {dimension_numbers = #tpu.dot_dimension_numbers<[1], [0], [0], [1], [0, 0, 1, 1], [], []>} : vector<256x4xbf16>, vector<4x16xbf16>, vector<256x16xf32> -> vector<256x16xf32>
    %93 = arith.addf %87, %92 : vector<256x16xf32>
    %94 = vector.extract_strided_slice %72 {offsets = [0, 0, 0], sizes = [16, 16, 4], strides = [1, 1, 1]} : vector<18x16x4xbf16> to vector<16x16x4xbf16>
    %95 = vector.shape_cast %94 : vector<16x16x4xbf16> to vector<256x4xbf16>
    %c1_34 = arith.constant 1 : index
    %c0_35 = arith.constant 0 : index
    %c0_36 = arith.constant 0 : index
    %c0_37 = arith.constant 0 : index
    %96 = vector.load %arg3[%c1_34, %c0_35, %c0_36, %c0_37] : memref<4x3x4x16xbf16, #tpu.memory_space<vmem>>, vector<1x1x4x16xbf16>
    %97 = vector.shape_cast %96 : vector<1x1x4x16xbf16> to vector<4x16xbf16>
    %cst_38 = arith.constant dense<0.000000e+00> : vector<256x16xf32>
    %98 = tpu.matmul %95, %97, %cst_38 {dimension_numbers = #tpu.dot_dimension_numbers<[1], [0], [0], [1], [0, 0, 1, 1], [], []>} : vector<256x4xbf16>, vector<4x16xbf16>, vector<256x16xf32> -> vector<256x16xf32>
    %99 = arith.addf %93, %98 : vector<256x16xf32>
    %100 = vector.extract_strided_slice %72 {offsets = [1, 0, 0], sizes = [16, 16, 4], strides = [1, 1, 1]} : vector<18x16x4xbf16> to vector<16x16x4xbf16>
    %101 = vector.shape_cast %100 : vector<16x16x4xbf16> to vector<256x4xbf16>
    %c1_39 = arith.constant 1 : index
    %c1_40 = arith.constant 1 : index
    %c0_41 = arith.constant 0 : index
    %c0_42 = arith.constant 0 : index
    %102 = vector.load %arg3[%c1_39, %c1_40, %c0_41, %c0_42] : memref<4x3x4x16xbf16, #tpu.memory_space<vmem>>, vector<1x1x4x16xbf16>
    %103 = vector.shape_cast %102 : vector<1x1x4x16xbf16> to vector<4x16xbf16>
    %cst_43 = arith.constant dense<0.000000e+00> : vector<256x16xf32>
    %104 = tpu.matmul %101, %103, %cst_43 {dimension_numbers = #tpu.dot_dimension_numbers<[1], [0], [0], [1], [0, 0, 1, 1], [], []>} : vector<256x4xbf16>, vector<4x16xbf16>, vector<256x16xf32> -> vector<256x16xf32>
    %105 = arith.addf %99, %104 : vector<256x16xf32>
    %106 = vector.extract_strided_slice %72 {offsets = [2, 0, 0], sizes = [16, 16, 4], strides = [1, 1, 1]} : vector<18x16x4xbf16> to vector<16x16x4xbf16>
    %107 = vector.shape_cast %106 : vector<16x16x4xbf16> to vector<256x4xbf16>
    %c1_44 = arith.constant 1 : index
    %c2_45 = arith.constant 2 : index
    %c0_46 = arith.constant 0 : index
    %c0_47 = arith.constant 0 : index
    %108 = vector.load %arg3[%c1_44, %c2_45, %c0_46, %c0_47] : memref<4x3x4x16xbf16, #tpu.memory_space<vmem>>, vector<1x1x4x16xbf16>
    %109 = vector.shape_cast %108 : vector<1x1x4x16xbf16> to vector<4x16xbf16>
    %cst_48 = arith.constant dense<0.000000e+00> : vector<256x16xf32>
    %110 = tpu.matmul %107, %109, %cst_48 {dimension_numbers = #tpu.dot_dimension_numbers<[1], [0], [0], [1], [0, 0, 1, 1], [], []>} : vector<256x4xbf16>, vector<4x16xbf16>, vector<256x16xf32> -> vector<256x16xf32>
    %111 = arith.addf %105, %110 : vector<256x16xf32>
    %112 = vector.extract_strided_slice %73 {offsets = [0, 0, 0], sizes = [16, 16, 4], strides = [1, 1, 1]} : vector<18x16x4xbf16> to vector<16x16x4xbf16>
    %113 = vector.shape_cast %112 : vector<16x16x4xbf16> to vector<256x4xbf16>
    %c2_49 = arith.constant 2 : index
    %c0_50 = arith.constant 0 : index
    %c0_51 = arith.constant 0 : index
    %c0_52 = arith.constant 0 : index
    %114 = vector.load %arg3[%c2_49, %c0_50, %c0_51, %c0_52] : memref<4x3x4x16xbf16, #tpu.memory_space<vmem>>, vector<1x1x4x16xbf16>
    %115 = vector.shape_cast %114 : vector<1x1x4x16xbf16> to vector<4x16xbf16>
    %cst_53 = arith.constant dense<0.000000e+00> : vector<256x16xf32>
    %116 = tpu.matmul %113, %115, %cst_53 {dimension_numbers = #tpu.dot_dimension_numbers<[1], [0], [0], [1], [0, 0, 1, 1], [], []>} : vector<256x4xbf16>, vector<4x16xbf16>, vector<256x16xf32> -> vector<256x16xf32>
    %117 = arith.addf %111, %116 : vector<256x16xf32>
    %118 = vector.extract_strided_slice %73 {offsets = [1, 0, 0], sizes = [16, 16, 4], strides = [1, 1, 1]} : vector<18x16x4xbf16> to vector<16x16x4xbf16>
    %119 = vector.shape_cast %118 : vector<16x16x4xbf16> to vector<256x4xbf16>
    %c2_54 = arith.constant 2 : index
    %c1_55 = arith.constant 1 : index
    %c0_56 = arith.constant 0 : index
    %c0_57 = arith.constant 0 : index
    %120 = vector.load %arg3[%c2_54, %c1_55, %c0_56, %c0_57] : memref<4x3x4x16xbf16, #tpu.memory_space<vmem>>, vector<1x1x4x16xbf16>
    %121 = vector.shape_cast %120 : vector<1x1x4x16xbf16> to vector<4x16xbf16>
    %cst_58 = arith.constant dense<0.000000e+00> : vector<256x16xf32>
    %122 = tpu.matmul %119, %121, %cst_58 {dimension_numbers = #tpu.dot_dimension_numbers<[1], [0], [0], [1], [0, 0, 1, 1], [], []>} : vector<256x4xbf16>, vector<4x16xbf16>, vector<256x16xf32> -> vector<256x16xf32>
    %123 = arith.addf %117, %122 : vector<256x16xf32>
    %124 = vector.extract_strided_slice %73 {offsets = [2, 0, 0], sizes = [16, 16, 4], strides = [1, 1, 1]} : vector<18x16x4xbf16> to vector<16x16x4xbf16>
    %125 = vector.shape_cast %124 : vector<16x16x4xbf16> to vector<256x4xbf16>
    %c2_59 = arith.constant 2 : index
    %c2_60 = arith.constant 2 : index
    %c0_61 = arith.constant 0 : index
    %c0_62 = arith.constant 0 : index
    %126 = vector.load %arg3[%c2_59, %c2_60, %c0_61, %c0_62] : memref<4x3x4x16xbf16, #tpu.memory_space<vmem>>, vector<1x1x4x16xbf16>
    %127 = vector.shape_cast %126 : vector<1x1x4x16xbf16> to vector<4x16xbf16>
    %cst_63 = arith.constant dense<0.000000e+00> : vector<256x16xf32>
    %128 = tpu.matmul %125, %127, %cst_63 {dimension_numbers = #tpu.dot_dimension_numbers<[1], [0], [0], [1], [0, 0, 1, 1], [], []>} : vector<256x4xbf16>, vector<4x16xbf16>, vector<256x16xf32> -> vector<256x16xf32>
    %129 = arith.addf %123, %128 : vector<256x16xf32>
    %130 = vector.extract_strided_slice %74 {offsets = [0, 0, 0], sizes = [16, 16, 4], strides = [1, 1, 1]} : vector<18x16x4xbf16> to vector<16x16x4xbf16>
    %131 = vector.shape_cast %130 : vector<16x16x4xbf16> to vector<256x4xbf16>
    %c3 = arith.constant 3 : index
    %c0_64 = arith.constant 0 : index
    %c0_65 = arith.constant 0 : index
    %c0_66 = arith.constant 0 : index
    %132 = vector.load %arg3[%c3, %c0_64, %c0_65, %c0_66] : memref<4x3x4x16xbf16, #tpu.memory_space<vmem>>, vector<1x1x4x16xbf16>
    %133 = vector.shape_cast %132 : vector<1x1x4x16xbf16> to vector<4x16xbf16>
    %cst_67 = arith.constant dense<0.000000e+00> : vector<256x16xf32>
    %134 = tpu.matmul %131, %133, %cst_67 {dimension_numbers = #tpu.dot_dimension_numbers<[1], [0], [0], [1], [0, 0, 1, 1], [], []>} : vector<256x4xbf16>, vector<4x16xbf16>, vector<256x16xf32> -> vector<256x16xf32>
    %135 = arith.addf %129, %134 : vector<256x16xf32>
    %136 = vector.extract_strided_slice %74 {offsets = [1, 0, 0], sizes = [16, 16, 4], strides = [1, 1, 1]} : vector<18x16x4xbf16> to vector<16x16x4xbf16>
    %137 = vector.shape_cast %136 : vector<16x16x4xbf16> to vector<256x4xbf16>
    %c3_68 = arith.constant 3 : index
    %c1_69 = arith.constant 1 : index
    %c0_70 = arith.constant 0 : index
    %c0_71 = arith.constant 0 : index
    %138 = vector.load %arg3[%c3_68, %c1_69, %c0_70, %c0_71] : memref<4x3x4x16xbf16, #tpu.memory_space<vmem>>, vector<1x1x4x16xbf16>
    %139 = vector.shape_cast %138 : vector<1x1x4x16xbf16> to vector<4x16xbf16>
    %cst_72 = arith.constant dense<0.000000e+00> : vector<256x16xf32>
    %140 = tpu.matmul %137, %139, %cst_72 {dimension_numbers = #tpu.dot_dimension_numbers<[1], [0], [0], [1], [0, 0, 1, 1], [], []>} : vector<256x4xbf16>, vector<4x16xbf16>, vector<256x16xf32> -> vector<256x16xf32>
    %141 = arith.addf %135, %140 : vector<256x16xf32>
    %142 = vector.extract_strided_slice %74 {offsets = [2, 0, 0], sizes = [16, 16, 4], strides = [1, 1, 1]} : vector<18x16x4xbf16> to vector<16x16x4xbf16>
    %143 = vector.shape_cast %142 : vector<16x16x4xbf16> to vector<256x4xbf16>
    %c3_73 = arith.constant 3 : index
    %c2_74 = arith.constant 2 : index
    %c0_75 = arith.constant 0 : index
    %c0_76 = arith.constant 0 : index
    %144 = vector.load %arg3[%c3_73, %c2_74, %c0_75, %c0_76] : memref<4x3x4x16xbf16, #tpu.memory_space<vmem>>, vector<1x1x4x16xbf16>
    %145 = vector.shape_cast %144 : vector<1x1x4x16xbf16> to vector<4x16xbf16>
    %cst_77 = arith.constant dense<0.000000e+00> : vector<256x16xf32>
    %146 = tpu.matmul %143, %145, %cst_77 {dimension_numbers = #tpu.dot_dimension_numbers<[1], [0], [0], [1], [0, 0, 1, 1], [], []>} : vector<256x4xbf16>, vector<4x16xbf16>, vector<256x16xf32> -> vector<256x16xf32>
    %147 = arith.addf %141, %146 : vector<256x16xf32>
    %c0_78 = arith.constant 0 : index
    %c0_79 = arith.constant 0 : index
    %148 = vector.load %arg4[%c0_78, %c0_79] : memref<3x16xf32, #tpu.memory_space<vmem>>, vector<3x16xf32>
    %149 = vector.extract_strided_slice %148 {offsets = [0, 0], sizes = [1, 16], strides = [1, 1]} : vector<3x16xf32> to vector<1x16xf32>
    %150 = vector.broadcast %149 : vector<1x16xf32> to vector<256x16xf32>
    %151 = arith.mulf %147, %150 : vector<256x16xf32>
    %152 = vector.extract_strided_slice %148 {offsets = [1, 0], sizes = [1, 16], strides = [1, 1]} : vector<3x16xf32> to vector<1x16xf32>
    %153 = vector.broadcast %152 : vector<1x16xf32> to vector<256x16xf32>
    %154 = arith.addf %151, %153 : vector<256x16xf32>
    %cst_80 = arith.constant 0.000000e+00 : f32
    %155 = vector.broadcast %cst_80 : f32 to vector<256x16xf32>
    %156 = arith.cmpf ogt, %154, %155 : vector<256x16xf32>
    %157 = vector.extract_strided_slice %148 {offsets = [2, 0], sizes = [1, 16], strides = [1, 1]} : vector<3x16xf32> to vector<1x16xf32>
    %158 = vector.broadcast %157 : vector<1x16xf32> to vector<256x16xf32>
    %159 = arith.mulf %158, %154 : vector<256x16xf32>
    %160 = arith.select %156, %154, %159 : vector<256x16xi1>, vector<256x16xf32>
    %161 = vector.shape_cast %160 : vector<256x16xf32> to vector<16x16x16xf32>
    %c0_81 = arith.constant 0 : index
    %c0_82 = arith.constant 0 : index
    %c0_83 = arith.constant 0 : index
    %c0_84 = arith.constant 0 : index
    %162 = vector.load %arg5[%c0_81, %c0_82, %c0_83, %c0_84] : memref<1x16x16x16xf32, #tpu.memory_space<vmem>>, vector<1x16x16x16xf32>
    %163 = vector.shape_cast %162 : vector<1x16x16x16xf32> to vector<16x16x16xf32>
    %164 = vector.shape_cast %161 : vector<16x16x16xf32> to vector<1x16x16x16xf32>
    tpu.vector_store %arg5[%c0_81, %c0_82, %c0_83, %c0_84], %164 {strides = array<i32>} : memref<1x16x16x16xf32, #tpu.memory_space<vmem>>, vector<1x16x16x16xf32>,
    return
  }
  func.func @transform_0(%arg0: i32, %arg1: i32) -> (i32, i32, i32, i32, i32) {
    %c0_i32 = arith.constant 0 : i32
    %c0_i32_0 = arith.constant 0 : i32
    %c0_i32_1 = arith.constant 0 : i32
    %c0_i32_2 = arith.constant 0 : i32
    return %arg0, %arg1, %c0_i32, %c0_i32_0, %c0_i32_1 : i32, i32, i32, i32, i32
  }
  func.func @transform_1(%arg0: i32, %arg1: i32) -> (i32, i32, i32, i32) {
    %c0_i32 = arith.constant 0 : i32
    %c0_i32_0 = arith.constant 0 : i32
    %c0_i32_1 = arith.constant 0 : i32
    %c0_i32_2 = arith.constant 0 : i32
    %c0_i32_3 = arith.constant 0 : i32
    return %c0_i32, %c0_i32_0, %c0_i32_1, %c0_i32_2 : i32, i32, i32, i32
  }
  func.func @transform_2(%arg0: i32, %arg1: i32) -> (i32, i32) {
    %c0_i32 = arith.constant 0 : i32
    %c0_i32_0 = arith.constant 0 : i32
    %c0_i32_1 = arith.constant 0 : i32
    return %c0_i32, %c0_i32_0 : i32, i32
  }
  func.func @transform_3(%arg0: i32, %arg1: i32) -> (i32, i32, i32, i32) {
    %c0_i32 = arith.constant 0 : i32
    %c0_i32_0 = arith.constant 0 : i32
    %c0_i32_1 = arith.constant 0 : i32
    return %arg0, %arg1, %c0_i32, %c0_i32_0 : i32, i32, i32, i32
  }
}

</mosaic_0001>

<llo_original>
// kernel: tpu_custom_call.1
$region0: #{tpu_custom_call.1}
  #allocation0 [shape = 'u32[]', space=smem, size = 0x4, offset = 0x4, fixed_abs, tag = 'smem constant byte address 0x4 - core index']
  #allocation1 [shape = 'u32[144,128]{1,0:T(1,128)}', space=vmem, size = 0x12000, scoped, tag = 'internal scratch']
  %s0 = inlined_call_operand.vmem [shape: bf16[2,2,10,18,4], index: 0, kind: input, shape index: {}]
  %s1 = inlined_call_operand.vmem [shape: bf16[4,3,4,16], index: 1, kind: input, shape index: {}]
  %s2 = inlined_call_operand.vmem [shape: f32[3,16], index: 2, kind: input, shape index: {}]
  %s3 = inlined_call_operand.vmem [shape: f32[2,32,16,16], index: 3, kind: output, shape index: {}]
  %s4 = sld [smem:[#allocation0]]
  $region45: #{tpu_custom_call.1} parent=0
    _
  %s6 = ssub.s32 1, %s4
  %s7 = scalar_select 0, %s6, %s4
  loop: start=0, step=1, limit=6
  $region2: #{tpu_custom_call.1} parent=0 // loop_pre_header
    _
  $region3: #{tpu_custom_call.1} parent=0 // loop_header
    %s9 = sphi 0, %s13
    %p10 = scmp.ge.s32.totalorder %s9, 6
    %s16 = sphi 0, %s28
    %s17 = sphi 0, %s24
    %s18 = sphi 0, %s16
    %s19 = sphi 0, %s17
    %s20 = sphi 0, %s18
    %s21 = sphi 0, %s19
    %s33 = sphi 0, %s35
    %s36 = sphi 0, %s33
    %s37 = sphi 0, %s36
    %s53 = sphi 0, %s37
    %s57 = sphi 0, %s57
    %s59 = sphi 0, %s57
    %s60 = sphi 0, %s59
    %s74 = sphi 0, %s60
    %s78 = sphi 0, %s78
    %s80 = sphi 0, %s78
    %s81 = sphi 0, %s80
    %s95 = sphi 0, %s81
    %s103 = sphi 0, %s105
    %s106 = sphi 0, %s103
    %s107 = sphi 0, %s106
    %s123 = sphi 0, %s107
  $region4: #{tpu_custom_call.1} parent=0 // loop_header_branch
    %12 = sbr.rel (%p10) target = $region8
  $region5: #{tpu_custom_call.1} parent=0 // loop_body
    %s14 = ssub.s32 %s9, 1
    %s15 = ssub.s32 %s9, 2
    %s22 = sadd.s32 1, %s17
    %p23 = scmp.ge.s32.totalorder %s22, 2
    %s24 = scalar_select %p23, 0, %s22
    %s25 = sadd.s32 1, %s16
    %s26 = scalar_select %p23, %s25, %s16
    %p27 = scmp.ge.s32.totalorder %s26, 2
    %s28 = scalar_select %p27, 0, %s26
    %s29 = ssub.s32 %s16, %s28
    %s30 = ssub.s32 %s17, %s24
    %s31 = sor.u32 %s29, %s30
    %p32 = scmp.eq.s32.totalorder %s31, 0
    %s34 = sadd.s32 %s33, 1
    %s35 = scalar_select %p32, %s33, %s34
    %p38 = pneg %p32
    %p39 = scmp.eq.s32.totalorder %s9, 3
    %p40 = por %p38, %p39
    %p41 = scmp.ne.s32.totalorder %s33, %s36
    %p42 = scmp.eq.s32.totalorder %s9, 0
    %p43 = por %p41, %p42
    %p44 = scmp.ne.s32.totalorder %s33, %s36
    %p45 = scmp.eq.s32.totalorder %s14, 3
    %p46 = por %p44, %p45
    %p47 = scmp.ne.s32.totalorder %s36, %s37
    %p48 = scmp.eq.s32.totalorder %s14, 0
    %p49 = por %p47, %p48
    %p50 = scmp.ne.s32.totalorder %s36, %s37
    %p51 = scmp.eq.s32.totalorder %s15, 3
    %p52 = por %p50, %p51
    %p54 = scmp.ne.s32.totalorder %s37, %s53
    %p55 = scmp.eq.s32.totalorder %s15, 0
    %p56 = por %p54, %p55
    %s58 = sadd.s32 %s57, 1
    %p61 = scmp.eq.s32.totalorder %s9, 3
    %p62 = scmp.ne.s32.totalorder %s57, %s59
    %p63 = scmp.eq.s32.totalorder %s9, 0
    %p64 = por %p62, %p63
    %p65 = scmp.ne.s32.totalorder %s57, %s59
    %p66 = scmp.eq.s32.totalorder %s14, 3
    %p67 = por %p65, %p66
    %p68 = scmp.ne.s32.totalorder %s59, %s60
    %p69 = scmp.eq.s32.totalorder %s14, 0
    %p70 = por %p68, %p69
    %p71 = scmp.ne.s32.totalorder %s59, %s60
    %p72 = scmp.eq.s32.totalorder %s15, 3
    %p73 = por %p71, %p72
    %p75 = scmp.ne.s32.totalorder %s60, %s74
    %p76 = scmp.eq.s32.totalorder %s15, 0
    %p77 = por %p75, %p76
    %s79 = sadd.s32 %s78, 1
    %p82 = scmp.eq.s32.totalorder %s9, 3
    %p83 = scmp.ne.s32.totalorder %s78, %s80
    %p84 = scmp.eq.s32.totalorder %s9, 0
    %p85 = por %p83, %p84
    %p86 = scmp.ne.s32.totalorder %s78, %s80
    %p87 = scmp.eq.s32.totalorder %s14, 3
    %p88 = por %p86, %p87
    %p89 = scmp.ne.s32.totalorder %s80, %s81
    %p90 = scmp.eq.s32.totalorder %s14, 0
    %p91 = por %p89, %p90
    %p92 = scmp.ne.s32.totalorder %s80, %s81
    %p93 = scmp.eq.s32.totalorder %s15, 3
    %p94 = por %p92, %p93
    %p96 = scmp.ne.s32.totalorder %s81, %s95
    %p97 = scmp.eq.s32.totalorder %s15, 0
    %p98 = por %p96, %p97
    %s99 = ssub.s32 %s16, %s28
    %s100 = ssub.s32 %s17, %s24
    %s101 = sor.u32 %s99, %s100
    %p102 = scmp.eq.s32.totalorder %s101, 0
    %s104 = sadd.s32 %s103, 1
    %s105 = scalar_select %p102, %s103, %s104
    %p108 = pneg %p102
    %p109 = scmp.eq.s32.totalorder %s9, 3
    %p110 = por %p108, %p109
    %p111 = scmp.ne.s32.totalorder %s103, %s106
    %p112 = scmp.eq.s32.totalorder %s9, 0
    %p113 = por %p111, %p112
    %p114 = scmp.ne.s32.totalorder %s103, %s106
    %p115 = scmp.eq.s32.totalorder %s14, 3
    %p116 = por %p114, %p115
    %p117 = scmp.ne.s32.totalorder %s106, %s107
    %p118 = scmp.eq.s32.totalorder %s14, 0
    %p119 = por %p117, %p118
    %p120 = scmp.ne.s32.totalorder %s106, %s107
    %p121 = scmp.eq.s32.totalorder %s15, 3
    %p122 = por %p120, %p121
    %p124 = scmp.ne.s32.totalorder %s107, %s123
    %p125 = scmp.eq.s32.totalorder %s15, 0
    %p126 = por %p124, %p125
    %p127 = scmp.le.s32.totalorder 1, %s9
    %p128 = scmp.lt.s32.totalorder %s9, 5
    %p129 = pnand %p127, %p128
    %p130 = pneg %p129
    // Predicated region
    $region9: #{tpu_custom_call.1} parent=5 // pred_check
      _
    $region10: #{tpu_custom_call.1} parent=5 // pred_check_branch
      %132 = sbr.rel (%p129) target = $region12
    $region11: #{tpu_custom_call.1} parent=5 // pred_region
      %s133 = ssub.s32 %s9, 1
      // Predicated region
      $region13: #{tpu_custom_call.1} parent=11 // pred_check
        %p134 = pneg %p70
      $region14: #{tpu_custom_call.1} parent=11 // pred_check_branch
        %136 = sbr.rel (%p134) target = $region16
      $region15: #{tpu_custom_call.1} parent=11 // pred_region
        _
      $region16: #{tpu_custom_call.1} parent=11 // pred_fallthru
        _
      // Predicated region
      $region17: #{tpu_custom_call.1} parent=11 // pred_check
        %p137 = pneg %p91
      $region18: #{tpu_custom_call.1} parent=11 // pred_check_branch
        %139 = sbr.rel (%p137) target = $region20
      $region19: #{tpu_custom_call.1} parent=11 // pred_region
        _
      $region20: #{tpu_custom_call.1} parent=11 // pred_fallthru
        _
    $region12: #{tpu_custom_call.1} parent=5 // pred_fallthru
      _
    %p140 = scmp.lt.s32.totalorder %s9, 4
    // Predicated region
    $region21: #{tpu_custom_call.1} parent=5 // pred_check
      %p141 = pneg %p140
    $region22: #{tpu_custom_call.1} parent=5 // pred_check_branch
      %143 = sbr.rel (%p141) target = $region24
    $region23: #{tpu_custom_call.1} parent=5 // pred_region
      // Predicated region
      $region25: #{tpu_custom_call.1} parent=23 // pred_check
        %p144 = pneg %p43
      $region26: #{tpu_custom_call.1} parent=23 // pred_check_branch
        %146 = sbr.rel (%p144) target = $region28
      $region27: #{tpu_custom_call.1} parent=23 // pred_region
        %p147 = scmp.lt.s32.totalorder %s16, 1
        %s148 = scalar_select %p147, %s16, 1
        %p149 = scmp.lt.s32.totalorder %s17, 1
        %s150 = scalar_select %p149, %s17, 1
        %s151 = smul.addr %s150, 30
        %s152 = smul.addr %s148, 60
        %s153 = sadd.s32 %s151, %s152
        %s154 = smul.addr %s153, 4
        %s155 = scalar_lea.vmem %s0, %s154
      $region28: #{tpu_custom_call.1} parent=23 // pred_fallthru
        _
    $region24: #{tpu_custom_call.1} parent=5 // pred_fallthru
      _
    %p156 = scmp.le.s32.totalorder 1, %s9
    %p157 = scmp.lt.s32.totalorder %s9, 5
    %p158 = pnand %p156, %p157
    %p159 = pneg %p158
    // Predicated region
    $region29: #{tpu_custom_call.1} parent=5 // pred_check
      _
    $region30: #{tpu_custom_call.1} parent=5 // pred_check_branch
      %161 = sbr.rel (%p158) target = $region32
    $region31: #{tpu_custom_call.1} parent=5 // pred_region
      %s162 = ssub.s32 %s9, 1
      %p163 = scmp.lt.s32.totalorder %s18, 1
      %s164 = scalar_select %p163, %s18, 1
      %p165 = scmp.lt.s32.totalorder %s19, 1
      %s166 = scalar_select %p165, %s19, 1
      %s167 = smul.addr %s166, 30
      %s168 = smul.addr %s164, 60
      %s169 = sadd.s32 %s167, %s168
      %s170 = smul.addr %s169, 4
      %s171 = scalar_lea.vmem %s0, %s170
      %p172 = pneg %p49
      %p173 = pneg %p46
      %p174 = pneg %p70
      %p175 = pneg %p67
      %p176 = pneg %p91
      %p177 = pneg %p88
      %p178 = pneg %p119
      %p179 = pneg %p116
      %s180 = smul.u32 16, %s19
      %p181 = scmp.lt.s32.totalorder %s18, 1
      %s182 = scalar_select %p181, %s18, 1
      %p183 = scmp.lt.s32.totalorder %s180, 31
      %s184 = scalar_select %p183, %s180, 31
      %s185 = smul.addr %s184, 2
      %s186 = smul.addr %s182, 64
      %s187 = sadd.s32 %s185, %s186
      %s188 = smul.addr %s187, 8
      %s189 = scalar_lea.vmem %s3, %s188
      %p190 = scmp.lt.s32.totalorder %s18, 1
      %s191 = scalar_select %p190, %s18, 1
      %p192 = scmp.lt.s32.totalorder %s19, 1
      %s193 = scalar_select %p192, %s19, 1
      %s194 = smul.addr %s193, 30
      %s195 = smul.addr %s191, 60
      %s196 = sadd.s32 %s194, %s195
      %s197 = smul.addr %s196, 4
      %s198 = scalar_lea.vmem %s0, %s197
      %s199 = smul.u32 16, %s19
      %p200 = scmp.lt.s32.totalorder %s18, 1
      %s201 = scalar_select %p200, %s18, 1
      %p202 = scmp.lt.s32.totalorder %s199, 31
      %s203 = scalar_select %p202, %s199, 31
      %s204 = smul.addr %s203, 2
      %s205 = smul.addr %s201, 64
      %s206 = sadd.s32 %s204, %s205
      %s207 = smul.addr %s206, 8
      %s208 = scalar_lea.vmem %s3, %s207
      %s209 = smul.u32 16, %s19
      %v211 = vld [vmem:[%s198] sm:$0xf]
      %v212 = vld [vmem:[%s198 + $0x4] sm:$0xf]
      %v213 = vld [vmem:[%s198 + $0x8] sm:$0x1]
      %v214 = vld [vmem:[%s198 + $0xc] sm:$0xf]
      %v215 = vld [vmem:[%s198 + $0x10] sm:$0xf]
      %v216 = vld [vmem:[%s198 + $0x14] sm:$0x1]
      %v217 = vld [vmem:[%s198 + $0x18] sm:$0xf]
      %v218 = vld [vmem:[%s198 + $0x1c] sm:$0xf]
      %v219 = vld [vmem:[%s198 + $0x20] sm:$0x1]
      %v220 = vld [vmem:[%s198 + $0x24] sm:$0xf]
      %v221 = vld [vmem:[%s198 + $0x28] sm:$0xf]
      %v222 = vld [vmem:[%s198 + $0x2c] sm:$0x1]
      %v223 = vld [vmem:[%s198 + $0x30] sm:$0xf]
      %v224 = vld [vmem:[%s198 + $0x34] sm:$0xf]
      %v225 = vld [vmem:[%s198 + $0x38] sm:$0x1]
      %v226 = vld [vmem:[%s198 + $0x3c] sm:$0xf]
      %v227 = vld [vmem:[%s198 + $0x40] sm:$0xf]
      %v228 = vld [vmem:[%s198 + $0x44] sm:$0x1]
      %v229 = vld [vmem:[%s198 + $0x48] sm:$0xf]
      %v230 = vld [vmem:[%s198 + $0x4c] sm:$0xf]
      %v231 = vld [vmem:[%s198 + $0x50] sm:$0x1]
      %v232 = vld [vmem:[%s198 + $0x54] sm:$0xf]
      %v233 = vld [vmem:[%s198 + $0x58] sm:$0xf]
      %v234 = vld [vmem:[%s198 + $0x5c] sm:$0x1]
      %v235 = vld [vmem:[%s198 + $0x60] sm:$0xf]
      %v236 = vld [vmem:[%s198 + $0x64] sm:$0xf]
      %v237 = vld [vmem:[%s198 + $0x68] sm:$0x1]
      %v238 = vld [vmem:[%s198 + $0x6c] sm:$0xf]
      %v239 = vld [vmem:[%s198 + $0x70] sm:$0xf]
      %v240 = vld [vmem:[%s198 + $0x74] sm:$0x1]
      %v241 = vunpack.c.l.bf16 %v211
      %v242 = vunpack.c.l.bf16 %v212
      %v243 = vunpack.c.l.bf16 %v213
      %v244 = vunpack.c.l.bf16 %v214
      %v245 = vunpack.c.l.bf16 %v215
      %v246 = vunpack.c.l.bf16 %v216
      %v247 = vunpack.c.l.bf16 %v217
      %v248 = vunpack.c.l.bf16 %v218
      %v249 = vunpack.c.l.bf16 %v219
      %v250 = vunpack.c.l.bf16 %v220
      %v251 = vunpack.c.l.bf16 %v221
      %v252 = vunpack.c.l.bf16 %v222
      %v253 = vunpack.c.l.bf16 %v223
      %v254 = vunpack.c.l.bf16 %v224
      %v255 = vunpack.c.l.bf16 %v225
      %v256 = vunpack.c.l.bf16 %v226
      %v257 = vunpack.c.l.bf16 %v227
      %v258 = vunpack.c.l.bf16 %v228
      %v259 = vunpack.c.l.bf16 %v229
      %v260 = vunpack.c.l.bf16 %v230
      %v261 = vunpack.c.l.bf16 %v231
      %v262 = vunpack.c.l.bf16 %v232
      %v263 = vunpack.c.l.bf16 %v233
      %v264 = vunpack.c.l.bf16 %v234
      %v265 = vunpack.c.l.bf16 %v235
      %v266 = vunpack.c.l.bf16 %v236
      %v267 = vunpack.c.l.bf16 %v237
      %v268 = vunpack.c.l.bf16 %v238
      %v269 = vunpack.c.l.bf16 %v239
      %v270 = vunpack.c.l.bf16 %v240
      %v271 = vmul.f32 %v241, 0.75
      %v272 = vmul.f32 %v242, 0.75
      %v273 = vmul.f32 %v243, 0.75
      %v274 = vmul.f32 %v244, 0.75
      %v275 = vmul.f32 %v245, 0.75
      %v276 = vmul.f32 %v246, 0.75
      %v277 = vmul.f32 %v247, 0.75
      %v278 = vmul.f32 %v248, 0.75
      %v279 = vmul.f32 %v249, 0.75
      %v280 = vmul.f32 %v250, 0.75
      %v281 = vmul.f32 %v251, 0.75
      %v282 = vmul.f32 %v252, 0.75
      %v283 = vmul.f32 %v253, 0.75
      %v284 = vmul.f32 %v254, 0.75
      %v285 = vmul.f32 %v255, 0.75
      %v286 = vmul.f32 %v256, 0.75
      %v287 = vmul.f32 %v257, 0.75
      %v288 = vmul.f32 %v258, 0.75
      %v289 = vmul.f32 %v259, 0.75
      %v290 = vmul.f32 %v260, 0.75
      %v291 = vmul.f32 %v261, 0.75
      %v292 = vmul.f32 %v262, 0.75
      %v293 = vmul.f32 %v263, 0.75
      %v294 = vmul.f32 %v264, 0.75
      %v295 = vmul.f32 %v265, 0.75
      %v296 = vmul.f32 %v266, 0.75
      %v297 = vmul.f32 %v267, 0.75
      %v298 = vmul.f32 %v244, 0.25
      %v299 = vmul.f32 %v245, 0.25
      %v300 = vmul.f32 %v246, 0.25
      %v301 = vmul.f32 %v247, 0.25
      %v302 = vmul.f32 %v248, 0.25
      %v303 = vmul.f32 %v249, 0.25
      %v304 = vmul.f32 %v250, 0.25
      %v305 = vmul.f32 %v251, 0.25
      %v306 = vmul.f32 %v252, 0.25
      %v307 = vmul.f32 %v253, 0.25
      %v308 = vmul.f32 %v254, 0.25
      %v309 = vmul.f32 %v255, 0.25
      %v310 = vmul.f32 %v256, 0.25
      %v311 = vmul.f32 %v257, 0.25
      %v312 = vmul.f32 %v258, 0.25
      %v313 = vmul.f32 %v259, 0.25
      %v314 = vmul.f32 %v260, 0.25
      %v315 = vmul.f32 %v261, 0.25
      %v316 = vmul.f32 %v262, 0.25
      %v317 = vmul.f32 %v263, 0.25
      %v318 = vmul.f32 %v264, 0.25
      %v319 = vmul.f32 %v265, 0.25
      %v320 = vmul.f32 %v266, 0.25
      %v321 = vmul.f32 %v267, 0.25
      %v322 = vmul.f32 %v268, 0.25
      %v323 = vmul.f32 %v269, 0.25
      %v324 = vmul.f32 %v270, 0.25
      %v325 = vadd.f32 %v271, %v298
      %v326 = vadd.f32 %v272, %v299
      %v327 = vadd.f32 %v273, %v300
      %v328 = vadd.f32 %v274, %v301
      %v329 = vadd.f32 %v275, %v302
      %v330 = vadd.f32 %v276, %v303
      %v331 = vadd.f32 %v277, %v304
      %v332 = vadd.f32 %v278, %v305
      %v333 = vadd.f32 %v279, %v306
      %v334 = vadd.f32 %v280, %v307
      %v335 = vadd.f32 %v281, %v308
      %v336 = vadd.f32 %v282, %v309
      %v337 = vadd.f32 %v283, %v310
      %v338 = vadd.f32 %v284, %v311
      %v339 = vadd.f32 %v285, %v312
      %v340 = vadd.f32 %v286, %v313
      %v341 = vadd.f32 %v287, %v314
      %v342 = vadd.f32 %v288, %v315
      %v343 = vadd.f32 %v289, %v316
      %v344 = vadd.f32 %v290, %v317
      %v345 = vadd.f32 %v291, %v318
      %v346 = vadd.f32 %v292, %v319
      %v347 = vadd.f32 %v293, %v320
      %v348 = vadd.f32 %v294, %v321
      %v349 = vadd.f32 %v295, %v322
      %v350 = vadd.f32 %v296, %v323
      %v351 = vadd.f32 %v297, %v324
      %v352 = vmul.f32 %v241, 0.25
      %v353 = vmul.f32 %v242, 0.25
      %v354 = vmul.f32 %v243, 0.25
      %v355 = vmul.f32 %v268, 0.75
      %v356 = vmul.f32 %v269, 0.75
      %v357 = vmul.f32 %v270, 0.75
      %v358 = vadd.f32 %v352, %v274
      %v359 = vadd.f32 %v353, %v275
      %v360 = vadd.f32 %v354, %v276
      %v361 = vadd.f32 %v298, %v277
      %v362 = vadd.f32 %v299, %v278
      %v363 = vadd.f32 %v300, %v279
      %v364 = vadd.f32 %v301, %v280
      %v365 = vadd.f32 %v302, %v281
      %v366 = vadd.f32 %v303, %v282
      %v367 = vadd.f32 %v304, %v283
      %v368 = vadd.f32 %v305, %v284
      %v369 = vadd.f32 %v306, %v285
      %v370 = vadd.f32 %v307, %v286
      %v371 = vadd.f32 %v308, %v287
      %v372 = vadd.f32 %v309, %v288
      %v373 = vadd.f32 %v310, %v289
      %v374 = vadd.f32 %v311, %v290
      %v375 = vadd.f32 %v312, %v291
      %v376 = vadd.f32 %v313, %v292
      %v377 = vadd.f32 %v314, %v293
      %v378 = vadd.f32 %v315, %v294
      %v379 = vadd.f32 %v316, %v295
      %v380 = vadd.f32 %v317, %v296
      %v381 = vadd.f32 %v318, %v297
      %v382 = vadd.f32 %v319, %v355
      %v383 = vadd.f32 %v320, %v356
      %v384 = vadd.f32 %v321, %v357
      %p385 = scmp.eq.s32.totalorder %s19, 0
      %s386 = scalar_select %p385, 1, 0
      %v387 = vstv %s386
      %vm388 = vcmp.eq.s32.totalorder %v387, 1
      %p389 = scmp.eq.s32.totalorder %s19, 1
      %s390 = scalar_select %p389, 1, 0
      %v391 = vstv %s390
      %vm392 = vcmp.eq.s32.totalorder %v391, 1
      %v393 = vsel %vm388, 1, 0
      %v394 = vsel %vm392, 1, 0
      %vm395 = vcmp.eq.s32.totalorder %v393, 1
      %vm396 = vcmp.eq.s32.totalorder %v394, 1
      %v397 = vsel %vm395, 0.0, %v325
      %v398 = vsel %vm395, 0.0, %v326
      %v399 = vsel %vm395, 0.0, %v327
      %v400 = vsel 0, 0.0, %v358
      %v401 = vsel 0, 0.0, %v359
      %v402 = vsel 0, 0.0, %v360
      %v403 = vsel 0, 0.0, %v328
      %v404 = vsel 0, 0.0, %v329
      %v405 = vsel 0, 0.0, %v330
      %v406 = vsel 0, 0.0, %v361
      %v407 = vsel 0, 0.0, %v362
      %v408 = vsel 0, 0.0, %v363
      %v409 = vsel 0, 0.0, %v331
      %v410 = vsel 0, 0.0, %v332
      %v411 = vsel 0, 0.0, %v333
      %v412 = vsel 0, 0.0, %v364
      %v413 = vsel 0, 0.0, %v365
      %v414 = vsel 0, 0.0, %v366
      %v415 = vsel 0, 0.0, %v334
      %v416 = vsel 0, 0.0, %v335
      %v417 = vsel 0, 0.0, %v336
      %v418 = vsel 0, 0.0, %v367
      %v419 = vsel 0, 0.0, %v368
      %v420 = vsel 0, 0.0, %v369
      %v421 = vsel 0, 0.0, %v337
      %v422 = vsel 0, 0.0, %v338
      %v423 = vsel 0, 0.0, %v339
      %v424 = vsel 0, 0.0, %v370
      %v425 = vsel 0, 0.0, %v371
      %v426 = vsel 0, 0.0, %v372
      %v427 = vsel 0, 0.0, %v340
      %v428 = vsel 0, 0.0, %v341
      %v429 = vsel 0, 0.0, %v342
      %v430 = vsel 0, 0.0, %v373
      %v431 = vsel 0, 0.0, %v374
      %v432 = vsel 0, 0.0, %v375
      %v433 = vsel 0, 0.0, %v343
      %v434 = vsel 0, 0.0, %v344
      %v435 = vsel 0, 0.0, %v345
      %v436 = vsel 0, 0.0, %v376
      %v437 = vsel 0, 0.0, %v377
      %v438 = vsel 0, 0.0, %v378
      %v439 = vsel 0, 0.0, %v346
      %v440 = vsel 0, 0.0, %v347
      %v441 = vsel 0, 0.0, %v348
      %v442 = vsel 0, 0.0, %v379
      %v443 = vsel 0, 0.0, %v380
      %v444 = vsel 0, 0.0, %v381
      %v445 = vsel 0, 0.0, %v349
      %v446 = vsel 0, 0.0, %v350
      %v447 = vsel 0, 0.0, %v351
      %v448 = vsel %vm396, 0.0, %v382
      %v449 = vsel %vm396, 0.0, %v383
      %v450 = vsel %vm396, 0.0, %v384
      %v451 = vlaneseq
      %v452 = vshrl.u32 %v451, 7
      %v453 = vadd.s32 %v452, 8
      %v454 = vmul.f32 %v397, 0.25
      %v455 = vmul.f32 %v398, 0.25
      %v456 = vmul.f32 %v400, 0.25
      %v457 = vmul.f32 %v401, 0.25
      %v458 = vmul.f32 %v403, 0.25
      %v459 = vmul.f32 %v404, 0.25
      %v460 = vmul.f32 %v406, 0.25
      %v461 = vmul.f32 %v407, 0.25
      %v462 = vmul.f32 %v409, 0.25
      %v463 = vmul.f32 %v410, 0.25
      %v464 = vmul.f32 %v412, 0.25
      %v465 = vmul.f32 %v413, 0.25
      %v466 = vmul.f32 %v415, 0.25
      %v467 = vmul.f32 %v416, 0.25
      %v468 = vmul.f32 %v418, 0.25
      %v469 = vmul.f32 %v419, 0.25
      %v470 = vmul.f32 %v421, 0.25
      %v471 = vmul.f32 %v422, 0.25
      %v472 = vmul.f32 %v424, 0.25
      %v473 = vmul.f32 %v425, 0.25
      %v474 = vmul.f32 %v427, 0.25
      %v475 = vmul.f32 %v428, 0.25
      %v476 = vmul.f32 %v430, 0.25
      %v477 = vmul.f32 %v431, 0.25
      %v478 = vmul.f32 %v433, 0.25
      %v479 = vmul.f32 %v434, 0.25
      %v480 = vmul.f32 %v436, 0.25
      %v481 = vmul.f32 %v437, 0.25
      %v482 = vmul.f32 %v439, 0.25
      %v483 = vmul.f32 %v440, 0.25
      %v484 = vmul.f32 %v442, 0.25
      %v485 = vmul.f32 %v443, 0.25
      %v486 = vmul.f32 %v445, 0.25
      %v487 = vmul.f32 %v446, 0.25
      %v488 = vmul.f32 %v448, 0.25
      %v489 = vmul.f32 %v449, 0.25
      %v490 = vmul.f32 %v397, 0.75
      %v491 = vmul.f32 %v398, 0.75
      %v492 = vmul.f32 %v399, 0.75
      %v493 = vmul.f32 %v400, 0.75
      %v494 = vmul.f32 %v401, 0.75
      %v495 = vmul.f32 %v402, 0.75
      %v496 = vmul.f32 %v403, 0.75
      %v497 = vmul.f32 %v404, 0.75
      %v498 = vmul.f32 %v405, 0.75
      %v499 = vmul.f32 %v406, 0.75
      %v500 = vmul.f32 %v407, 0.75
      %v501 = vmul.f32 %v408, 0.75
      %v502 = vmul.f32 %v409, 0.75
      %v503 = vmul.f32 %v410, 0.75
      %v504 = vmul.f32 %v411, 0.75
      %v505 = vmul.f32 %v412, 0.75
      %v506 = vmul.f32 %v413, 0.75
      %v507 = vmul.f32 %v414, 0.75
      %v508 = vmul.f32 %v415, 0.75
      %v509 = vmul.f32 %v416, 0.75
      %v510 = vmul.f32 %v417, 0.75
      %v511 = vmul.f32 %v418, 0.75
      %v512 = vmul.f32 %v419, 0.75
      %v513 = vmul.f32 %v420, 0.75
      %v514 = vmul.f32 %v421, 0.75
      %v515 = vmul.f32 %v422, 0.75
      %v516 = vmul.f32 %v423, 0.75
      %v517 = vmul.f32 %v424, 0.75
      %v518 = vmul.f32 %v425, 0.75
      %v519 = vmul.f32 %v426, 0.75
      %v520 = vmul.f32 %v427, 0.75
      %v521 = vmul.f32 %v428, 0.75
      %v522 = vmul.f32 %v429, 0.75
      %v523 = vmul.f32 %v430, 0.75
      %v524 = vmul.f32 %v431, 0.75
      %v525 = vmul.f32 %v432, 0.75
      %v526 = vmul.f32 %v433, 0.75
      %v527 = vmul.f32 %v434, 0.75
      %v528 = vmul.f32 %v435, 0.75
      %v529 = vmul.f32 %v436, 0.75
      %v530 = vmul.f32 %v437, 0.75
      %v531 = vmul.f32 %v438, 0.75
      %v532 = vmul.f32 %v439, 0.75
      %v533 = vmul.f32 %v440, 0.75
      %v534 = vmul.f32 %v441, 0.75
      %v535 = vmul.f32 %v442, 0.75
      %v536 = vmul.f32 %v443, 0.75
      %v537 = vmul.f32 %v444, 0.75
      %v538 = vmul.f32 %v445, 0.75
      %v539 = vmul.f32 %v446, 0.75
      %v540 = vmul.f32 %v447, 0.75
      %v541 = vmul.f32 %v448, 0.75
      %v542 = vmul.f32 %v449, 0.75
      %v543 = vmul.f32 %v450, 0.75
      %vm598 = vcmask 1046528
      %v599 = vrot.slane %v490, 1
      %v600 = vrot.slane %v491, 1
      %v601 = vsel %vm598, %v599, %v600
      %v602 = vrot.slane %v492, 1
      %v603 = vsel %vm598, %v600, %v602
      %v604 = vrot.slane %v493, 1
      %v605 = vrot.slane %v494, 1
      %v606 = vsel %vm598, %v604, %v605
      %v607 = vrot.slane %v495, 1
      %v608 = vsel %vm598, %v605, %v607
      %v609 = vrot.slane %v496, 1
      %v610 = vrot.slane %v497, 1
      %v611 = vsel %vm598, %v609, %v610
      %v612 = vrot.slane %v498, 1
      %v613 = vsel %vm598, %v610, %v612
      %v614 = vrot.slane %v499, 1
      %v615 = vrot.slane %v500, 1
      %v616 = vsel %vm598, %v614, %v615
      %v617 = vrot.slane %v501, 1
      %v618 = vsel %vm598, %v615, %v617
      %v619 = vrot.slane %v502, 1
      %v620 = vrot.slane %v503, 1
      %v621 = vsel %vm598, %v619, %v620
      %v622 = vrot.slane %v504, 1
      %v623 = vsel %vm598, %v620, %v622
      %v624 = vrot.slane %v505, 1
      %v625 = vrot.slane %v506, 1
      %v626 = vsel %vm598, %v624, %v625
      %v627 = vrot.slane %v507, 1
      %v628 = vsel %vm598, %v625, %v627
      %v629 = vrot.slane %v508, 1
      %v630 = vrot.slane %v509, 1
      %v631 = vsel %vm598, %v629, %v630
      %v632 = vrot.slane %v510, 1
      %v633 = vsel %vm598, %v630, %v632
      %v634 = vrot.slane %v511, 1
      %v635 = vrot.slane %v512, 1
      %v636 = vsel %vm598, %v634, %v635
      %v637 = vrot.slane %v513, 1
      %v638 = vsel %vm598, %v635, %v637
      %v639 = vrot.slane %v514, 1
      %v640 = vrot.slane %v515, 1
      %v641 = vsel %vm598, %v639, %v640
      %v642 = vrot.slane %v516, 1
      %v643 = vsel %vm598, %v640, %v642
      %v644 = vrot.slane %v517, 1
      %v645 = vrot.slane %v518, 1
      %v646 = vsel %vm598, %v644, %v645
      %v647 = vrot.slane %v519, 1
      %v648 = vsel %vm598, %v645, %v647
      %v649 = vrot.slane %v520, 1
      %v650 = vrot.slane %v521, 1
      %v651 = vsel %vm598, %v649, %v650
      %v652 = vrot.slane %v522, 1
      %v653 = vsel %vm598, %v650, %v652
      %v654 = vrot.slane %v523, 1
      %v655 = vrot.slane %v524, 1
      %v656 = vsel %vm598, %v654, %v655
      %v657 = vrot.slane %v525, 1
      %v658 = vsel %vm598, %v655, %v657
      %v659 = vrot.slane %v526, 1
      %v660 = vrot.slane %v527, 1
      %v661 = vsel %vm598, %v659, %v660
      %v662 = vrot.slane %v528, 1
      %v663 = vsel %vm598, %v660, %v662
      %v664 = vrot.slane %v529, 1
      %v665 = vrot.slane %v530, 1
      %v666 = vsel %vm598, %v664, %v665
      %v667 = vrot.slane %v531, 1
      %v668 = vsel %vm598, %v665, %v667
      %v669 = vrot.slane %v532, 1
      %v670 = vrot.slane %v533, 1
      %v671 = vsel %vm598, %v669, %v670
      %v672 = vrot.slane %v534, 1
      %v673 = vsel %vm598, %v670, %v672
      %v674 = vrot.slane %v535, 1
      %v675 = vrot.slane %v536, 1
      %v676 = vsel %vm598, %v674, %v675
      %v677 = vrot.slane %v537, 1
      %v678 = vsel %vm598, %v675, %v677
      %v679 = vrot.slane %v538, 1
      %v680 = vrot.slane %v539, 1
      %v681 = vsel %vm598, %v679, %v680
      %v682 = vrot.slane %v540, 1
      %v683 = vsel %vm598, %v680, %v682
      %v684 = vrot.slane %v541, 1
      %v685 = vrot.slane %v542, 1
      %v686 = vsel %vm598, %v684, %v685
      %v687 = vrot.slane %v543, 1
      %v688 = vsel %vm598, %v685, %v687
      %v725 = vadd.f32 %v454, %v601
      %v726 = vadd.f32 %v455, %v603
      %v727 = vadd.f32 %v456, %v606
      %v728 = vadd.f32 %v457, %v608
      %v729 = vadd.f32 %v458, %v611
      %v730 = vadd.f32 %v459, %v613
      %v731 = vadd.f32 %v460, %v616
      %v732 = vadd.f32 %v461, %v618
      %v733 = vadd.f32 %v462, %v621
      %v734 = vadd.f32 %v463, %v623
      %v735 = vadd.f32 %v464, %v626
      %v736 = vadd.f32 %v465, %v628
      %v737 = vadd.f32 %v466, %v631
      %v738 = vadd.f32 %v467, %v633
      %v739 = vadd.f32 %v468, %v636
      %v740 = vadd.f32 %v469, %v638
      %v741 = vadd.f32 %v470, %v641
      %v742 = vadd.f32 %v471, %v643
      %v743 = vadd.f32 %v472, %v646
      %v744 = vadd.f32 %v473, %v648
      %v745 = vadd.f32 %v474, %v651
      %v746 = vadd.f32 %v475, %v653
      %v747 = vadd.f32 %v476, %v656
      %v748 = vadd.f32 %v477, %v658
      %v749 = vadd.f32 %v478, %v661
      %v750 = vadd.f32 %v479, %v663
      %v751 = vadd.f32 %v480, %v666
      %v752 = vadd.f32 %v481, %v668
      %v753 = vadd.f32 %v482, %v671
      %v754 = vadd.f32 %v483, %v673
      %v755 = vadd.f32 %v484, %v676
      %v756 = vadd.f32 %v485, %v678
      %v757 = vadd.f32 %v486, %v681
      %v758 = vadd.f32 %v487, %v683
      %v759 = vadd.f32 %v488, %v686
      %v760 = vadd.f32 %v489, %v688
      %v761 = vmul.f32 %v399, 0.25
      %v762 = vmul.f32 %v402, 0.25
      %v763 = vmul.f32 %v405, 0.25
      %v764 = vmul.f32 %v408, 0.25
      %v765 = vmul.f32 %v411, 0.25
      %v766 = vmul.f32 %v414, 0.25
      %v767 = vmul.f32 %v417, 0.25
      %v768 = vmul.f32 %v420, 0.25
      %v769 = vmul.f32 %v423, 0.25
      %v770 = vmul.f32 %v426, 0.25
      %v771 = vmul.f32 %v429, 0.25
      %v772 = vmul.f32 %v432, 0.25
      %v773 = vmul.f32 %v435, 0.25
      %v774 = vmul.f32 %v438, 0.25
      %v775 = vmul.f32 %v441, 0.25
      %v776 = vmul.f32 %v444, 0.25
      %v777 = vmul.f32 %v447, 0.25
      %v778 = vmul.f32 %v450, 0.25
      %v833 = vrot.slane %v454, 1
      %v834 = vrot.slane %v455, 1
      %v835 = vsel %vm598, %v833, %v834
      %v836 = vrot.slane %v761, 1
      %v837 = vsel %vm598, %v834, %v836
      %v838 = vrot.slane %v456, 1
      %v839 = vrot.slane %v457, 1
      %v840 = vsel %vm598, %v838, %v839
      %v841 = vrot.slane %v762, 1
      %v842 = vsel %vm598, %v839, %v841
      %v843 = vrot.slane %v458, 1
      %v844 = vrot.slane %v459, 1
      %v845 = vsel %vm598, %v843, %v844
      %v846 = vrot.slane %v763, 1
      %v847 = vsel %vm598, %v844, %v846
      %v848 = vrot.slane %v460, 1
      %v849 = vrot.slane %v461, 1
      %v850 = vsel %vm598, %v848, %v849
      %v851 = vrot.slane %v764, 1
      %v852 = vsel %vm598, %v849, %v851
      %v853 = vrot.slane %v462, 1
      %v854 = vrot.slane %v463, 1
      %v855 = vsel %vm598, %v853, %v854
      %v856 = vrot.slane %v765, 1
      %v857 = vsel %vm598, %v854, %v856
      %v858 = vrot.slane %v464, 1
      %v859 = vrot.slane %v465, 1
      %v860 = vsel %vm598, %v858, %v859
      %v861 = vrot.slane %v766, 1
      %v862 = vsel %vm598, %v859, %v861
      %v863 = vrot.slane %v466, 1
      %v864 = vrot.slane %v467, 1
      %v865 = vsel %vm598, %v863, %v864
      %v866 = vrot.slane %v767, 1
      %v867 = vsel %vm598, %v864, %v866
      %v868 = vrot.slane %v468, 1
      %v869 = vrot.slane %v469, 1
      %v870 = vsel %vm598, %v868, %v869
      %v871 = vrot.slane %v768, 1
      %v872 = vsel %vm598, %v869, %v871
      %v873 = vrot.slane %v470, 1
      %v874 = vrot.slane %v471, 1
      %v875 = vsel %vm598, %v873, %v874
      %v876 = vrot.slane %v769, 1
      %v877 = vsel %vm598, %v874, %v876
      %v878 = vrot.slane %v472, 1
      %v879 = vrot.slane %v473, 1
      %v880 = vsel %vm598, %v878, %v879
      %v881 = vrot.slane %v770, 1
      %v882 = vsel %vm598, %v879, %v881
      %v883 = vrot.slane %v474, 1
      %v884 = vrot.slane %v475, 1
      %v885 = vsel %vm598, %v883, %v884
      %v886 = vrot.slane %v771, 1
      %v887 = vsel %vm598, %v884, %v886
      %v888 = vrot.slane %v476, 1
      %v889 = vrot.slane %v477, 1
      %v890 = vsel %vm598, %v888, %v889
      %v891 = vrot.slane %v772, 1
      %v892 = vsel %vm598, %v889, %v891
      %v893 = vrot.slane %v478, 1
      %v894 = vrot.slane %v479, 1
      %v895 = vsel %vm598, %v893, %v894
      %v896 = vrot.slane %v773, 1
      %v897 = vsel %vm598, %v894, %v896
      %v898 = vrot.slane %v480, 1
      %v899 = vrot.slane %v481, 1
      %v900 = vsel %vm598, %v898, %v899
      %v901 = vrot.slane %v774, 1
      %v902 = vsel %vm598, %v899, %v901
      %v903 = vrot.slane %v482, 1
      %v904 = vrot.slane %v483, 1
      %v905 = vsel %vm598, %v903, %v904
      %v906 = vrot.slane %v775, 1
      %v907 = vsel %vm598, %v904, %v906
      %v908 = vrot.slane %v484, 1
      %v909 = vrot.slane %v485, 1
      %v910 = vsel %vm598, %v908, %v909
      %v911 = vrot.slane %v776, 1
      %v912 = vsel %vm598, %v909, %v911
      %v913 = vrot.slane %v486, 1
      %v914 = vrot.slane %v487, 1
      %v915 = vsel %vm598, %v913, %v914
      %v916 = vrot.slane %v777, 1
      %v917 = vsel %vm598, %v914, %v916
      %v918 = vrot.slane %v488, 1
      %v919 = vrot.slane %v489, 1
      %v920 = vsel %vm598, %v918, %v919
      %v921 = vrot.slane %v778, 1
      %v922 = vsel %vm598, %v919, %v921
      %v977 = vadd.f32 %v490, %v835
      %v978 = vadd.f32 %v491, %v837
      %v979 = vadd.f32 %v492, %v836
      %v980 = vadd.f32 %v493, %v840
      %v981 = vadd.f32 %v494, %v842
      %v982 = vadd.f32 %v495, %v841
      %v983 = vadd.f32 %v496, %v845
      %v984 = vadd.f32 %v497, %v847
      %v985 = vadd.f32 %v498, %v846
      %v986 = vadd.f32 %v499, %v850
      %v987 = vadd.f32 %v500, %v852
      %v988 = vadd.f32 %v501, %v851
      %v989 = vadd.f32 %v502, %v855
      %v990 = vadd.f32 %v503, %v857
      %v991 = vadd.f32 %v504, %v856
      %v992 = vadd.f32 %v505, %v860
      %v993 = vadd.f32 %v506, %v862
      %v994 = vadd.f32 %v507, %v861
      %v995 = vadd.f32 %v508, %v865
      %v996 = vadd.f32 %v509, %v867
      %v997 = vadd.f32 %v510, %v866
      %v998 = vadd.f32 %v511, %v870
      %v999 = vadd.f32 %v512, %v872
      %v1000 = vadd.f32 %v513, %v871
      %v1001 = vadd.f32 %v514, %v875
      %v1002 = vadd.f32 %v515, %v877
      %v1003 = vadd.f32 %v516, %v876
      %v1004 = vadd.f32 %v517, %v880
      %v1005 = vadd.f32 %v518, %v882
      %v1006 = vadd.f32 %v519, %v881
      %v1007 = vadd.f32 %v520, %v885
      %v1008 = vadd.f32 %v521, %v887
      %v1009 = vadd.f32 %v522, %v886
      %v1010 = vadd.f32 %v523, %v890
      %v1011 = vadd.f32 %v524, %v892
      %v1012 = vadd.f32 %v525, %v891
      %v1013 = vadd.f32 %v526, %v895
      %v1014 = vadd.f32 %v527, %v897
      %v1015 = vadd.f32 %v528, %v896
      %v1016 = vadd.f32 %v529, %v900
      %v1017 = vadd.f32 %v530, %v902
      %v1018 = vadd.f32 %v531, %v901
      %v1019 = vadd.f32 %v532, %v905
      %v1020 = vadd.f32 %v533, %v907
      %v1021 = vadd.f32 %v534, %v906
      %v1022 = vadd.f32 %v535, %v910
      %v1023 = vadd.f32 %v536, %v912
      %v1024 = vadd.f32 %v537, %v911
      %v1025 = vadd.f32 %v538, %v915
      %v1026 = vadd.f32 %v539, %v917
      %v1027 = vadd.f32 %v540, %v916
      %v1028 = vadd.f32 %v541, %v920
      %v1029 = vadd.f32 %v542, %v922
      %v1030 = vadd.f32 %v543, %v921
      %vm1031 = vcmp.eq.s32.totalorder %v452, 0
      %vm1032 = vcmp.eq.s32.totalorder %v453, 0
      %v1033 = vsel %vm1031, 1, 0
      %v1034 = vsel %vm1032, 1, 0
      %vm1035 = vcmp.eq.s32.totalorder %v1033, 1
      %vm1036 = vcmp.eq.s32.totalorder %v1034, 1
      %v1037 = vsel %vm1035, 0.0, %v977
      %v1038 = vsel %vm1036, 0.0, %v978
      %v1039 = vsel %vm1035, 0.0, %v980
      %v1040 = vsel %vm1036, 0.0, %v981
      %v1041 = vsel %vm1035, 0.0, %v983
      %v1042 = vsel %vm1036, 0.0, %v984
      %v1043 = vsel %vm1035, 0.0, %v986
      %v1044 = vsel %vm1036, 0.0, %v987
      %v1045 = vsel %vm1035, 0.0, %v989
      %v1046 = vsel %vm1036, 0.0, %v990
      %v1047 = vsel %vm1035, 0.0, %v992
      %v1048 = vsel %vm1036, 0.0, %v993
      %v1049 = vsel %vm1035, 0.0, %v995
      %v1050 = vsel %vm1036, 0.0, %v996
      %v1051 = vsel %vm1035, 0.0, %v998
      %v1052 = vsel %vm1036, 0.0, %v999
      %v1053 = vsel %vm1035, 0.0, %v1001
      %v1054 = vsel %vm1036, 0.0, %v1002
      %v1055 = vsel %vm1035, 0.0, %v1004
      %v1056 = vsel %vm1036, 0.0, %v1005
      %v1057 = vsel %vm1035, 0.0, %v1007
      %v1058 = vsel %vm1036, 0.0, %v1008
      %v1059 = vsel %vm1035, 0.0, %v1010
      %v1060 = vsel %vm1036, 0.0, %v1011
      %v1061 = vsel %vm1035, 0.0, %v1013
      %v1062 = vsel %vm1036, 0.0, %v1014
      %v1063 = vsel %vm1035, 0.0, %v1016
      %v1064 = vsel %vm1036, 0.0, %v1017
      %v1065 = vsel %vm1035, 0.0, %v1019
      %v1066 = vsel %vm1036, 0.0, %v1020
      %v1067 = vsel %vm1035, 0.0, %v1022
      %v1068 = vsel %vm1036, 0.0, %v1023
      %v1069 = vsel %vm1035, 0.0, %v1025
      %v1070 = vsel %vm1036, 0.0, %v1026
      %v1071 = vsel %vm1035, 0.0, %v1028
      %v1072 = vsel %vm1036, 0.0, %v1029
      %vm1073 = vcmp.eq.s32.totalorder %v452, 15
      %vm1074 = vcmp.eq.s32.totalorder %v453, 15
      %v1093 = vadd.f32 %v761, %v602
      %v1094 = vadd.f32 %v762, %v607
      %v1095 = vadd.f32 %v763, %v612
      %v1096 = vadd.f32 %v764, %v617
      %v1097 = vadd.f32 %v765, %v622
      %v1098 = vadd.f32 %v766, %v627
      %v1099 = vadd.f32 %v767, %v632
      %v1100 = vadd.f32 %v768, %v637
      %v1101 = vadd.f32 %v769, %v642
      %v1102 = vadd.f32 %v770, %v647
      %v1103 = vadd.f32 %v771, %v652
      %v1104 = vadd.f32 %v772, %v657
      %v1105 = vadd.f32 %v773, %v662
      %v1106 = vadd.f32 %v774, %v667
      %v1107 = vadd.f32 %v775, %v672
      %v1108 = vadd.f32 %v776, %v677
      %v1109 = vadd.f32 %v777, %v682
      %v1110 = vadd.f32 %v778, %v687
      %v1111 = vsel %vm1073, 1, 0
      %v1112 = vsel %vm1074, 1, 0
      %vm1113 = vcmp.eq.s32.totalorder %v1111, 1
      %vm1114 = vcmp.eq.s32.totalorder %v1112, 1
      %v1169 = vrot.slane %v725, 1
      %v1170 = vrot.slane %v726, 1
      %v1171 = vsel %vm598, %v1169, %v1170
      %v1172 = vrot.slane %v1093, 1
      %v1173 = vsel %vm598, %v1170, %v1172
      %v1174 = vrot.slane %v727, 1
      %v1175 = vrot.slane %v728, 1
      %v1176 = vsel %vm598, %v1174, %v1175
      %v1177 = vrot.slane %v1094, 1
      %v1178 = vsel %vm598, %v1175, %v1177
      %v1179 = vrot.slane %v729, 1
      %v1180 = vrot.slane %v730, 1
      %v1181 = vsel %vm598, %v1179, %v1180
      %v1182 = vrot.slane %v1095, 1
      %v1183 = vsel %vm598, %v1180, %v1182
      %v1184 = vrot.slane %v731, 1
      %v1185 = vrot.slane %v732, 1
      %v1186 = vsel %vm598, %v1184, %v1185
      %v1187 = vrot.slane %v1096, 1
      %v1188 = vsel %vm598, %v1185, %v1187
      %v1189 = vrot.slane %v733, 1
      %v1190 = vrot.slane %v734, 1
      %v1191 = vsel %vm598, %v1189, %v1190
      %v1192 = vrot.slane %v1097, 1
      %v1193 = vsel %vm598, %v1190, %v1192
      %v1194 = vrot.slane %v735, 1
      %v1195 = vrot.slane %v736, 1
      %v1196 = vsel %vm598, %v1194, %v1195
      %v1197 = vrot.slane %v1098, 1
      %v1198 = vsel %vm598, %v1195, %v1197
      %v1199 = vrot.slane %v737, 1
      %v1200 = vrot.slane %v738, 1
      %v1201 = vsel %vm598, %v1199, %v1200
      %v1202 = vrot.slane %v1099, 1
      %v1203 = vsel %vm598, %v1200, %v1202
      %v1204 = vrot.slane %v739, 1
      %v1205 = vrot.slane %v740, 1
      %v1206 = vsel %vm598, %v1204, %v1205
      %v1207 = vrot.slane %v1100, 1
      %v1208 = vsel %vm598, %v1205, %v1207
      %v1209 = vrot.slane %v741, 1
      %v1210 = vrot.slane %v742, 1
      %v1211 = vsel %vm598, %v1209, %v1210
      %v1212 = vrot.slane %v1101, 1
      %v1213 = vsel %vm598, %v1210, %v1212
      %v1214 = vrot.slane %v743, 1
      %v1215 = vrot.slane %v744, 1
      %v1216 = vsel %vm598, %v1214, %v1215
      %v1217 = vrot.slane %v1102, 1
      %v1218 = vsel %vm598, %v1215, %v1217
      %v1219 = vrot.slane %v745, 1
      %v1220 = vrot.slane %v746, 1
      %v1221 = vsel %vm598, %v1219, %v1220
      %v1222 = vrot.slane %v1103, 1
      %v1223 = vsel %vm598, %v1220, %v1222
      %v1224 = vrot.slane %v747, 1
      %v1225 = vrot.slane %v748, 1
      %v1226 = vsel %vm598, %v1224, %v1225
      %v1227 = vrot.slane %v1104, 1
      %v1228 = vsel %vm598, %v1225, %v1227
      %v1229 = vrot.slane %v749, 1
      %v1230 = vrot.slane %v750, 1
      %v1231 = vsel %vm598, %v1229, %v1230
      %v1232 = vrot.slane %v1105, 1
      %v1233 = vsel %vm598, %v1230, %v1232
      %v1234 = vrot.slane %v751, 1
      %v1235 = vrot.slane %v752, 1
      %v1236 = vsel %vm598, %v1234, %v1235
      %v1237 = vrot.slane %v1106, 1
      %v1238 = vsel %vm598, %v1235, %v1237
      %v1239 = vrot.slane %v753, 1
      %v1240 = vrot.slane %v754, 1
      %v1241 = vsel %vm598, %v1239, %v1240
      %v1242 = vrot.slane %v1107, 1
      %v1243 = vsel %vm598, %v1240, %v1242
      %v1244 = vrot.slane %v755, 1
      %v1245 = vrot.slane %v756, 1
      %v1246 = vsel %vm598, %v1244, %v1245
      %v1247 = vrot.slane %v1108, 1
      %v1248 = vsel %vm598, %v1245, %v1247
      %v1249 = vrot.slane %v757, 1
      %v1250 = vrot.slane %v758, 1
      %v1251 = vsel %vm598, %v1249, %v1250
      %v1252 = vrot.slane %v1109, 1
      %v1253 = vsel %vm598, %v1250, %v1252
      %v1254 = vrot.slane %v759, 1
      %v1255 = vrot.slane %v760, 1
      %v1256 = vsel %vm598, %v1254, %v1255
      %v1257 = vrot.slane %v1110, 1
      %v1258 = vsel %vm598, %v1255, %v1257
      %v1295 = vsel %vm1113, 0.0, %v1171
      %v1296 = vsel %vm1114, 0.0, %v1173
      %v1297 = vsel %vm1113, 0.0, %v1176
      %v1298 = vsel %vm1114, 0.0, %v1178
      %v1299 = vsel %vm1113, 0.0, %v1181
      %v1300 = vsel %vm1114, 0.0, %v1183
      %v1301 = vsel %vm1113, 0.0, %v1186
      %v1302 = vsel %vm1114, 0.0, %v1188
      %v1303 = vsel %vm1113, 0.0, %v1191
      %v1304 = vsel %vm1114, 0.0, %v1193
      %v1305 = vsel %vm1113, 0.0, %v1196
      %v1306 = vsel %vm1114, 0.0, %v1198
      %v1307 = vsel %vm1113, 0.0, %v1201
      %v1308 = vsel %vm1114, 0.0, %v1203
      %v1309 = vsel %vm1113, 0.0, %v1206
      %v1310 = vsel %vm1114, 0.0, %v1208
      %v1311 = vsel %vm1113, 0.0, %v1211
      %v1312 = vsel %vm1114, 0.0, %v1213
      %v1313 = vsel %vm1113, 0.0, %v1216
      %v1314 = vsel %vm1114, 0.0, %v1218
      %v1315 = vsel %vm1113, 0.0, %v1221
      %v1316 = vsel %vm1114, 0.0, %v1223
      %v1317 = vsel %vm1113, 0.0, %v1226
      %v1318 = vsel %vm1114, 0.0, %v1228
      %v1319 = vsel %vm1113, 0.0, %v1231
      %v1320 = vsel %vm1114, 0.0, %v1233
      %v1321 = vsel %vm1113, 0.0, %v1236
      %v1322 = vsel %vm1114, 0.0, %v1238
      %v1323 = vsel %vm1113, 0.0, %v1241
      %v1324 = vsel %vm1114, 0.0, %v1243
      %v1325 = vsel %vm1113, 0.0, %v1246
      %v1326 = vsel %vm1114, 0.0, %v1248
      %v1327 = vsel %vm1113, 0.0, %v1251
      %v1328 = vsel %vm1114, 0.0, %v1253
      %v1329 = vsel %vm1113, 0.0, %v1256
      %v1330 = vsel %vm1114, 0.0, %v1258
      %v1331 = vpack.c.bf16 %v1038, %v1037
      %v1332 = vpack.c.bf16 %v1040, %v1039
      %v1333 = vpack.c.bf16 %v1042, %v1041
      %v1334 = vpack.c.bf16 %v1044, %v1043
      %v1335 = vpack.c.bf16 %v1046, %v1045
      %v1336 = vpack.c.bf16 %v1048, %v1047
      %v1337 = vpack.c.bf16 %v1050, %v1049
      %v1338 = vpack.c.bf16 %v1052, %v1051
      %v1339 = vpack.c.bf16 %v1054, %v1053
      %v1340 = vpack.c.bf16 %v1056, %v1055
      %v1341 = vpack.c.bf16 %v1058, %v1057
      %v1342 = vpack.c.bf16 %v1060, %v1059
      %v1343 = vpack.c.bf16 %v1062, %v1061
      %v1344 = vpack.c.bf16 %v1064, %v1063
      %v1345 = vpack.c.bf16 %v1066, %v1065
      %v1346 = vpack.c.bf16 %v1068, %v1067
      %v1347 = vpack.c.bf16 %v1070, %v1069
      %v1348 = vpack.c.bf16 %v1072, %v1071
      %v1349 = vpack.c.bf16 %v726, %v725
      %v1350 = vpack.c.bf16 %v728, %v727
      %v1351 = vpack.c.bf16 %v730, %v729
      %v1352 = vpack.c.bf16 %v732, %v731
      %v1353 = vpack.c.bf16 %v734, %v733
      %v1354 = vpack.c.bf16 %v736, %v735
      %v1355 = vpack.c.bf16 %v738, %v737
      %v1356 = vpack.c.bf16 %v740, %v739
      %v1357 = vpack.c.bf16 %v742, %v741
      %v1358 = vpack.c.bf16 %v744, %v743
      %v1359 = vpack.c.bf16 %v746, %v745
      %v1360 = vpack.c.bf16 %v748, %v747
      %v1361 = vpack.c.bf16 %v750, %v749
      %v1362 = vpack.c.bf16 %v752, %v751
      %v1363 = vpack.c.bf16 %v754, %v753
      %v1364 = vpack.c.bf16 %v756, %v755
      %v1365 = vpack.c.bf16 %v758, %v757
      %v1366 = vpack.c.bf16 %v760, %v759
      %v1367 = vpack.c.bf16 %v978, %v977
      %v1368 = vpack.c.bf16 %v979, %v979
      %v1369 = vpack.c.bf16 %v981, %v980
      %v1370 = vpack.c.bf16 %v982, %v982
      %v1371 = vpack.c.bf16 %v984, %v983
      %v1372 = vpack.c.bf16 %v985, %v985
      %v1373 = vpack.c.bf16 %v987, %v986
      %v1374 = vpack.c.bf16 %v988, %v988
      %v1375 = vpack.c.bf16 %v990, %v989
      %v1376 = vpack.c.bf16 %v991, %v991
      %v1377 = vpack.c.bf16 %v993, %v992
      %v1378 = vpack.c.bf16 %v994, %v994
      %v1379 = vpack.c.bf16 %v996, %v995
      %v1380 = vpack.c.bf16 %v997, %v997
      %v1381 = vpack.c.bf16 %v999, %v998
      %v1382 = vpack.c.bf16 %v1000, %v1000
      %v1383 = vpack.c.bf16 %v1002, %v1001
      %v1384 = vpack.c.bf16 %v1003, %v1003
      %v1385 = vpack.c.bf16 %v1005, %v1004
      %v1386 = vpack.c.bf16 %v1006, %v1006
      %v1387 = vpack.c.bf16 %v1008, %v1007
      %v1388 = vpack.c.bf16 %v1009, %v1009
      %v1389 = vpack.c.bf16 %v1011, %v1010
      %v1390 = vpack.c.bf16 %v1012, %v1012
      %v1391 = vpack.c.bf16 %v1014, %v1013
      %v1392 = vpack.c.bf16 %v1015, %v1015
      %v1393 = vpack.c.bf16 %v1017, %v1016
      %v1394 = vpack.c.bf16 %v1018, %v1018
      %v1395 = vpack.c.bf16 %v1020, %v1019
      %v1396 = vpack.c.bf16 %v1021, %v1021
      %v1397 = vpack.c.bf16 %v1023, %v1022
      %v1398 = vpack.c.bf16 %v1024, %v1024
      %v1399 = vpack.c.bf16 %v1026, %v1025
      %v1400 = vpack.c.bf16 %v1027, %v1027
      %v1401 = vpack.c.bf16 %v1029, %v1028
      %v1402 = vpack.c.bf16 %v1030, %v1030
      %v1403 = vpack.c.bf16 %v1296, %v1295
      %v1404 = vpack.c.bf16 %v1298, %v1297
      %v1405 = vpack.c.bf16 %v1300, %v1299
      %v1406 = vpack.c.bf16 %v1302, %v1301
      %v1407 = vpack.c.bf16 %v1304, %v1303
      %v1408 = vpack.c.bf16 %v1306, %v1305
      %v1409 = vpack.c.bf16 %v1308, %v1307
      %v1410 = vpack.c.bf16 %v1310, %v1309
      %v1411 = vpack.c.bf16 %v1312, %v1311
      %v1412 = vpack.c.bf16 %v1314, %v1313
      %v1413 = vpack.c.bf16 %v1316, %v1315
      %v1414 = vpack.c.bf16 %v1318, %v1317
      %v1415 = vpack.c.bf16 %v1320, %v1319
      %v1416 = vpack.c.bf16 %v1322, %v1321
      %v1417 = vpack.c.bf16 %v1324, %v1323
      %v1418 = vpack.c.bf16 %v1326, %v1325
      %v1419 = vpack.c.bf16 %v1328, %v1327
      %v1420 = vpack.c.bf16 %v1330, %v1329
      %v1421 = vld [vmem:[%s1] sm:$0x3]
      %s1422 = scalar_lea.vmem %s1, 2
      %v1423 = vld [vmem:[%s1422] sm:$0x3]
      %vm1424 = vcmask 31744
      %v1426 = vsel %vm1424, %v1332, 0
      %v1429 = vsel %vm1424, %v1333, 0
      %v1432 = vsel %vm1424, %v1334, 0
      %v1435 = vsel %vm1424, %v1335, 0
      %v1438 = vsel %vm1424, %v1336, 0
      %v1441 = vsel %vm1424, %v1337, 0
      %v1444 = vsel %vm1424, %v1338, 0
      %v1447 = vsel %vm1424, %v1339, 0
      %v1450 = vsel %vm1424, %v1340, 0
      %v1453 = vsel %vm1424, %v1341, 0
      %v1456 = vsel %vm1424, %v1342, 0
      %v1459 = vsel %vm1424, %v1343, 0
      %v1462 = vsel %vm1424, %v1344, 0
      %v1465 = vsel %vm1424, %v1345, 0
      %v1468 = vsel %vm1424, %v1346, 0
      %v1471 = vsel %vm1424, %v1347, 0
      %vm1473 = vcmask 1041408
      %v1475 = vsel %vm1473, %v1423, 0
      %1477 = vmatprep.subr.bf16.mxu0 0
      %1478 = vmatpush1.bf16.msra.mxu0 %v1475
      %1479 = vmatprep.subr.bf16.mxu0 0
      %1480 = vmatpush1.bf16.msra.mxu0 0
      %1481 = vmatprep.subr.bf16.mxu0 0
      %1482 = vmatpush1.bf16.msra.mxu0 0
      %1483 = vmatprep.subr.bf16.mxu0 0
      %1484 = vmatpush1.bf16.msra.mxu0 0
      %1485 = vmatprep.subr.bf16.mxu0 0
      %1486 = vmatpush1.bf16.msra.mxu0 0
      %1487 = vmatprep.subr.bf16.mxu0 0
      %1488 = vmatpush1.bf16.msra.mxu0 0
      %1489 = vmatprep.subr.bf16.mxu0 0
      %1490 = vmatpush1.bf16.msra.mxu0 0
      %1491 = vmatprep.subr.bf16.mxu0 0
      %1492 = vmatpush1.bf16.msra.mxu0 0
      %1493 = vmatprep.subr.bf16.mxu0 0
      %1494 = vmatpush1.bf16.msra.mxu0 0
      %1495 = vmatprep.subr.bf16.mxu0 0
      %1496 = vmatpush1.bf16.msra.mxu0 0
      %1497 = vmatprep.subr.bf16.mxu0 0
      %1498 = vmatpush1.bf16.msra.mxu0 0
      %1499 = vmatprep.subr.bf16.mxu0 0
      %1500 = vmatpush1.bf16.msra.mxu0 0
      %1501 = vmatprep.subr.bf16.mxu0 0
      %1502 = vmatpush1.bf16.msra.mxu0 0
      %1503 = vmatprep.subr.bf16.mxu0 0
      %1504 = vmatpush1.bf16.msra.mxu0 0
      %1505 = vmatprep.subr.bf16.mxu0 0
      %1506 = vmatpush1.bf16.msra.mxu0 0
      %1507 = vmatprep.subr.bf16.mxu0 0
      %1508 = vmatpush1.bf16.msra.mxu0 0
      %1509 = vmatprep.mubr.bf16.mxu0 0
      %1510 = vmatmul.mubr.bf16.gmra.mrb[0].mxu0 %v1426
      %v1511 = vpop.f32.mrb[0].mxu0
      %v1512 = vadd.f32 0.0, %v1511
      %v1513 = vpop.f32.mrb[0].mxu0
      %v1514 = vpop.f32.mrb[0].mxu0
      %v1515 = vadd.f32 0.0, %v1514
      %v1516 = vpop.f32.mrb[0].mxu0
      %1517 = vmatprep.mubr.bf16.mxu0 0
      %1518 = vmatmul.mubr.bf16.gmra.mrb[0].mxu0 %v1429
      %v1519 = vpop.f32.mrb[0].mxu0
      %v1520 = vadd.f32 0.0, %v1519
      %v1521 = vpop.f32.mrb[0].mxu0
      %v1522 = vpop.f32.mrb[0].mxu0
      %v1523 = vadd.f32 0.0, %v1522
      %v1524 = vpop.f32.mrb[0].mxu0
      %1525 = vmatprep.mubr.bf16.mxu0 0
      %1526 = vmatmul.mubr.bf16.gmra.mrb[0].mxu0 %v1432
      %v1527 = vpop.f32.mrb[0].mxu0
      %v1528 = vadd.f32 0.0, %v1527
      %v1529 = vpop.f32.mrb[0].mxu0
      %v1530 = vpop.f32.mrb[0].mxu0
      %v1531 = vadd.f32 0.0, %v1530
      %v1532 = vpop.f32.mrb[0].mxu0
      %1533 = vmatprep.mubr.bf16.mxu0 0
      %1534 = vmatmul.mubr.bf16.gmra.mrb[0].mxu0 %v1435
      %v1535 = vpop.f32.mrb[0].mxu0
      %v1536 = vadd.f32 0.0, %v1535
      %v1537 = vpop.f32.mrb[0].mxu0
      %v1538 = vpop.f32.mrb[0].mxu0
      %v1539 = vadd.f32 0.0, %v1538
      %v1540 = vpop.f32.mrb[0].mxu0
      %1541 = vmatprep.mubr.bf16.mxu0 0
      %1542 = vmatmul.mubr.bf16.gmra.mrb[0].mxu0 %v1438
      %v1543 = vpop.f32.mrb[0].mxu0
      %v1544 = vadd.f32 0.0, %v1543
      %v1545 = vpop.f32.mrb[0].mxu0
      %v1546 = vpop.f32.mrb[0].mxu0
      %v1547 = vadd.f32 0.0, %v1546
      %v1548 = vpop.f32.mrb[0].mxu0
      %1549 = vmatprep.mubr.bf16.mxu0 0
      %1550 = vmatmul.mubr.bf16.gmra.mrb[0].mxu0 %v1441
      %v1551 = vpop.f32.mrb[0].mxu0
      %v1552 = vadd.f32 0.0, %v1551
      %v1553 = vpop.f32.mrb[0].mxu0
      %v1554 = vpop.f32.mrb[0].mxu0
      %v1555 = vadd.f32 0.0, %v1554
      %v1556 = vpop.f32.mrb[0].mxu0
      %1557 = vmatprep.mubr.bf16.mxu0 0
      %1558 = vmatmul.mubr.bf16.gmra.mrb[0].mxu0 %v1444
      %v1559 = vpop.f32.mrb[0].mxu0
      %v1560 = vadd.f32 0.0, %v1559
      %v1561 = vpop.f32.mrb[0].mxu0
      %v1562 = vpop.f32.mrb[0].mxu0
      %v1563 = vadd.f32 0.0, %v1562
      %v1564 = vpop.f32.mrb[0].mxu0
      %1565 = vmatprep.mubr.bf16.mxu0 0
      %1566 = vmatmul.mubr.bf16.gmra.mrb[0].mxu0 %v1447
      %v1567 = vpop.f32.mrb[0].mxu0
      %v1568 = vadd.f32 0.0, %v1567
      %v1569 = vpop.f32.mrb[0].mxu0
      %v1570 = vpop.f32.mrb[0].mxu0
      %v1571 = vadd.f32 0.0, %v1570
      %v1572 = vpop.f32.mrb[0].mxu0
      %1573 = vmatprep.mubr.bf16.mxu0 0
      %1574 = vmatmul.mubr.bf16.gmra.mrb[0].mxu0 %v1450
      %v1575 = vpop.f32.mrb[0].mxu0
      %v1576 = vadd.f32 0.0, %v1575
      %v1577 = vpop.f32.mrb[0].mxu0
      %v1578 = vpop.f32.mrb[0].mxu0
      %v1579 = vadd.f32 0.0, %v1578
      %v1580 = vpop.f32.mrb[0].mxu0
      %1581 = vmatprep.mubr.bf16.mxu0 0
      %1582 = vmatmul.mubr.bf16.gmra.mrb[0].mxu0 %v1453
      %v1583 = vpop.f32.mrb[0].mxu0
      %v1584 = vadd.f32 0.0, %v1583
      %v1585 = vpop.f32.mrb[0].mxu0
      %v1586 = vpop.f32.mrb[0].mxu0
      %v1587 = vadd.f32 0.0, %v1586
      %v1588 = vpop.f32.mrb[0].mxu0
      %1589 = vmatprep.mubr.bf16.mxu0 0
      %1590 = vmatmul.mubr.bf16.gmra.mrb[0].mxu0 %v1456
      %v1591 = vpop.f32.mrb[0].mxu0
      %v1592 = vadd.f32 0.0, %v1591
      %v1593 = vpop.f32.mrb[0].mxu0
      %v1594 = vpop.f32.mrb[0].mxu0
      %v1595 = vadd.f32 0.0, %v1594
      %v1596 = vpop.f32.mrb[0].mxu0
      %1597 = vmatprep.mubr.bf16.mxu0 0
      %1598 = vmatmul.mubr.bf16.gmra.mrb[0].mxu0 %v1459
      %v1599 = vpop.f32.mrb[0].mxu0
      %v1600 = vadd.f32 0.0, %v1599
      %v1601 = vpop.f32.mrb[0].mxu0
      %v1602 = vpop.f32.mrb[0].mxu0
      %v1603 = vadd.f32 0.0, %v1602
      %v1604 = vpop.f32.mrb[0].mxu0
      %1605 = vmatprep.mubr.bf16.mxu0 0
      %1606 = vmatmul.mubr.bf16.gmra.mrb[0].mxu0 %v1462
      %v1607 = vpop.f32.mrb[0].mxu0
      %v1608 = vadd.f32 0.0, %v1607
      %v1609 = vpop.f32.mrb[0].mxu0
      %v1610 = vpop.f32.mrb[0].mxu0
      %v1611 = vadd.f32 0.0, %v1610
      %v1612 = vpop.f32.mrb[0].mxu0
      %1613 = vmatprep.mubr.bf16.mxu0 0
      %1614 = vmatmul.mubr.bf16.gmra.mrb[0].mxu0 %v1465
      %v1615 = vpop.f32.mrb[0].mxu0
      %v1616 = vadd.f32 0.0, %v1615
      %v1617 = vpop.f32.mrb[0].mxu0
      %v1618 = vpop.f32.mrb[0].mxu0
      %v1619 = vadd.f32 0.0, %v1618
      %v1620 = vpop.f32.mrb[0].mxu0
      %1621 = vmatprep.mubr.bf16.mxu0 0
      %1622 = vmatmul.mubr.bf16.gmra.mrb[0].mxu0 %v1468
      %v1623 = vpop.f32.mrb[0].mxu0
      %v1624 = vadd.f32 0.0, %v1623
      %v1625 = vpop.f32.mrb[0].mxu0
      %v1626 = vpop.f32.mrb[0].mxu0
      %v1627 = vadd.f32 0.0, %v1626
      %v1628 = vpop.f32.mrb[0].mxu0
      %1629 = vmatprep.mubr.bf16.mxu0 0
      %1630 = vmatmul.mubr.bf16.gmra.mrb[0].mxu0 %v1471
      %v1631 = vpop.f32.mrb[0].mxu0
      %v1632 = vadd.f32 0.0, %v1631
      %v1633 = vpop.f32.mrb[0].mxu0
      %v1634 = vpop.f32.mrb[0].mxu0
      %v1635 = vadd.f32 0.0, %v1634
      %v1636 = vpop.f32.mrb[0].mxu0
      %1637 = vdwg.mxu0
      %v1639 = vsel %vm1424, %v1331, 0
      %v1642 = vsel %vm1473, %v1421, 0
      %1644 = vmatprep.subr.bf16.mxu0 0
      %1645 = vmatpush1.bf16.msra.mxu0 %v1642
      %1646 = vmatprep.subr.bf16.mxu0 0
      %1647 = vmatpush1.bf16.msra.mxu0 0
      %1648 = vmatprep.subr.bf16.mxu0 0
      %1649 = vmatpush1.bf16.msra.mxu0 0
      %1650 = vmatprep.subr.bf16.mxu0 0
      %1651 = vmatpush1.bf16.msra.mxu0 0
      %1652 = vmatprep.subr.bf16.mxu0 0
      %1653 = vmatpush1.bf16.msra.mxu0 0
      %1654 = vmatprep.subr.bf16.mxu0 0
      %1655 = vmatpush1.bf16.msra.mxu0 0
      %1656 = vmatprep.subr.bf16.mxu0 0
      %1657 = vmatpush1.bf16.msra.mxu0 0
      %1658 = vmatprep.subr.bf16.mxu0 0
      %1659 = vmatpush1.bf16.msra.mxu0 0
      %1660 = vmatprep.subr.bf16.mxu0 0
      %1661 = vmatpush1.bf16.msra.mxu0 0
      %1662 = vmatprep.subr.bf16.mxu0 0
      %1663 = vmatpush1.bf16.msra.mxu0 0
      %1664 = vmatprep.subr.bf16.mxu0 0
      %1665 = vmatpush1.bf16.msra.mxu0 0
      %1666 = vmatprep.subr.bf16.mxu0 0
      %1667 = vmatpush1.bf16.msra.mxu0 0
      %1668 = vmatprep.subr.bf16.mxu0 0
      %1669 = vmatpush1.bf16.msra.mxu0 0
      %1670 = vmatprep.subr.bf16.mxu0 0
      %1671 = vmatpush1.bf16.msra.mxu0 0
      %1672 = vmatprep.subr.bf16.mxu0 0
      %1673 = vmatpush1.bf16.msra.mxu0 0
      %1674 = vmatprep.subr.bf16.mxu0 0
      %1675 = vmatpush1.bf16.msra.mxu0 0
      %1676 = vmatprep.mubr.bf16.mxu0 0
      %1677 = vmatmul.mubr.bf16.gmra.mrb[0].mxu0 %v1639
      %v1678 = vpop.f32.mrb[0].mxu0
      %v1679 = vadd.f32 %v1512, %v1678
      %v1680 = vpop.f32.mrb[0].mxu0
      %v1681 = vpop.f32.mrb[0].mxu0
      %v1682 = vadd.f32 %v1515, %v1681
      %v1683 = vpop.f32.mrb[0].mxu0
      %1684 = vmatprep.mubr.bf16.mxu0 0
      %1685 = vmatmul.mubr.bf16.gmra.mrb[0].mxu0 %v1426
      %v1686 = vpop.f32.mrb[0].mxu0
      %v1687 = vadd.f32 %v1520, %v1686
      %v1688 = vpop.f32.mrb[0].mxu0
      %v1689 = vpop.f32.mrb[0].mxu0
      %v1690 = vadd.f32 %v1523, %v1689
      %v1691 = vpop.f32.mrb[0].mxu0
      %1692 = vmatprep.mubr.bf16.mxu0 0
      %1693 = vmatmul.mubr.bf16.gmra.mrb[0].mxu0 %v1429
      %v1694 = vpop.f32.mrb[0].mxu0
      %v1695 = vadd.f32 %v1528, %v1694
      %v1696 = vpop.f32.mrb[0].mxu0
      %v1697 = vpop.f32.mrb[0].mxu0
      %v1698 = vadd.f32 %v1531, %v1697
      %v1699 = vpop.f32.mrb[0].mxu0
      %1700 = vmatprep.mubr.bf16.mxu0 0
      %1701 = vmatmul.mubr.bf16.gmra.mrb[0].mxu0 %v1432
      %v1702 = vpop.f32.mrb[0].mxu0
      %v1703 = vadd.f32 %v1536, %v1702
      %v1704 = vpop.f32.mrb[0].mxu0
      %v1705 = vpop.f32.mrb[0].mxu0
      %v1706 = vadd.f32 %v1539, %v1705
      %v1707 = vpop.f32.mrb[0].mxu0
      %1708 = vmatprep.mubr.bf16.mxu0 0
      %1709 = vmatmul.mubr.bf16.gmra.mrb[0].mxu0 %v1435
      %v1710 = vpop.f32.mrb[0].mxu0
      %v1711 = vadd.f32 %v1544, %v1710
      %v1712 = vpop.f32.mrb[0].mxu0
      %v1713 = vpop.f32.mrb[0].mxu0
      %v1714 = vadd.f32 %v1547, %v1713
      %v1715 = vpop.f32.mrb[0].mxu0
      %1716 = vmatprep.mubr.bf16.mxu0 0
      %1717 = vmatmul.mubr.bf16.gmra.mrb[0].mxu0 %v1438
      %v1718 = vpop.f32.mrb[0].mxu0
      %v1719 = vadd.f32 %v1552, %v1718
      %v1720 = vpop.f32.mrb[0].mxu0
      %v1721 = vpop.f32.mrb[0].mxu0
      %v1722 = vadd.f32 %v1555, %v1721
      %v1723 = vpop.f32.mrb[0].mxu0
      %1724 = vmatprep.mubr.bf16.mxu0 0
      %1725 = vmatmul.mubr.bf16.gmra.mrb[0].mxu0 %v1441
      %v1726 = vpop.f32.mrb[0].mxu0
      %v1727 = vadd.f32 %v1560, %v1726
      %v1728 = vpop.f32.mrb[0].mxu0
      %v1729 = vpop.f32.mrb[0].mxu0
      %v1730 = vadd.f32 %v1563, %v1729
      %v1731 = vpop.f32.mrb[0].mxu0
      %1732 = vmatprep.mubr.bf16.mxu0 0
      %1733 = vmatmul.mubr.bf16.gmra.mrb[0].mxu0 %v1444
      %v1734 = vpop.f32.mrb[0].mxu0
      %v1735 = vadd.f32 %v1568, %v1734
      %v1736 = vpop.f32.mrb[0].mxu0
      %v1737 = vpop.f32.mrb[0].mxu0
      %v1738 = vadd.f32 %v1571, %v1737
      %v1739 = vpop.f32.mrb[0].mxu0
      %1740 = vmatprep.mubr.bf16.mxu0 0
      %1741 = vmatmul.mubr.bf16.gmra.mrb[0].mxu0 %v1447
      %v1742 = vpop.f32.mrb[0].mxu0
      %v1743 = vadd.f32 %v1576, %v1742
      %v1744 = vpop.f32.mrb[0].mxu0
      %v1745 = vpop.f32.mrb[0].mxu0
      %v1746 = vadd.f32 %v1579, %v1745
      %v1747 = vpop.f32.mrb[0].mxu0
      %1748 = vmatprep.mubr.bf16.mxu0 0
      %1749 = vmatmul.mubr.bf16.gmra.mrb[0].mxu0 %v1450
      %v1750 = vpop.f32.mrb[0].mxu0
      %v1751 = vadd.f32 %v1584, %v1750
      %v1752 = vpop.f32.mrb[0].mxu0
      %v1753 = vpop.f32.mrb[0].mxu0
      %v1754 = vadd.f32 %v1587, %v1753
      %v1755 = vpop.f32.mrb[0].mxu0
      %1756 = vmatprep.mubr.bf16.mxu0 0
      %1757 = vmatmul.mubr.bf16.gmra.mrb[0].mxu0 %v1453
      %v1758 = vpop.f32.mrb[0].mxu0
      %v1759 = vadd.f32 %v1592, %v1758
      %v1760 = vpop.f32.mrb[0].mxu0
      %v1761 = vpop.f32.mrb[0].mxu0
      %v1762 = vadd.f32 %v1595, %v1761
      %v1763 = vpop.f32.mrb[0].mxu0
      %1764 = vmatprep.mubr.bf16.mxu0 0
      %1765 = vmatmul.mubr.bf16.gmra.mrb[0].mxu0 %v1456
      %v1766 = vpop.f32.mrb[0].mxu0
      %v1767 = vadd.f32 %v1600, %v1766
      %v1768 = vpop.f32.mrb[0].mxu0
      %v1769 = vpop.f32.mrb[0].mxu0
      %v1770 = vadd.f32 %v1603, %v1769
      %v1771 = vpop.f32.mrb[0].mxu0
      %1772 = vmatprep.mubr.bf16.mxu0 0
      %1773 = vmatmul.mubr.bf16.gmra.mrb[0].mxu0 %v1459
      %v1774 = vpop.f32.mrb[0].mxu0
      %v1775 = vadd.f32 %v1608, %v1774
      %v1776 = vpop.f32.mrb[0].mxu0
      %v1777 = vpop.f32.mrb[0].mxu0
      %v1778 = vadd.f32 %v1611, %v1777
      %v1779 = vpop.f32.mrb[0].mxu0
      %1780 = vmatprep.mubr.bf16.mxu0 0
      %1781 = vmatmul.mubr.bf16.gmra.mrb[0].mxu0 %v1462
      %v1782 = vpop.f32.mrb[0].mxu0
      %v1783 = vadd.f32 %v1616, %v1782
      %v1784 = vpop.f32.mrb[0].mxu0
      %v1785 = vpop.f32.mrb[0].mxu0
      %v1786 = vadd.f32 %v1619, %v1785
      %v1787 = vpop.f32.mrb[0].mxu0
      %1788 = vmatprep.mubr.bf16.mxu0 0
      %1789 = vmatmul.mubr.bf16.gmra.mrb[0].mxu0 %v1465
      %v1790 = vpop.f32.mrb[0].mxu0
      %v1791 = vadd.f32 %v1624, %v1790
      %v1792 = vpop.f32.mrb[0].mxu0
      %v1793 = vpop.f32.mrb[0].mxu0
      %v1794 = vadd.f32 %v1627, %v1793
      %v1795 = vpop.f32.mrb[0].mxu0
      %1796 = vmatprep.mubr.bf16.mxu0 0
      %1797 = vmatmul.mubr.bf16.gmra.mrb[0].mxu0 %v1468
      %v1798 = vpop.f32.mrb[0].mxu0
      %v1799 = vadd.f32 %v1632, %v1798
      %v1800 = vpop.f32.mrb[0].mxu0
      %v1801 = vpop.f32.mrb[0].mxu0
      %v1802 = vadd.f32 %v1635, %v1801
      %v1803 = vpop.f32.mrb[0].mxu0
      %1804 = vdwg.mxu0
      %s1805 = scalar_lea.vmem %s1, 4
      %v1806 = vld [vmem:[%s1805] sm:$0x3]
      %v1808 = vsel %vm1424, %v1348, 0
      %v1811 = vsel %vm1473, %v1806, 0
      %1813 = vmatprep.subr.bf16.mxu0 0
      %1814 = vmatpush1.bf16.msra.mxu0 %v1811
      %1815 = vmatprep.subr.bf16.mxu0 0
      %1816 = vmatpush1.bf16.msra.mxu0 0
      %1817 = vmatprep.subr.bf16.mxu0 0
      %1818 = vmatpush1.bf16.msra.mxu0 0
      %1819 = vmatprep.subr.bf16.mxu0 0
      %1820 = vmatpush1.bf16.msra.mxu0 0
      %1821 = vmatprep.subr.bf16.mxu0 0
      %1822 = vmatpush1.bf16.msra.mxu0 0
      %1823 = vmatprep.subr.bf16.mxu0 0
      %1824 = vmatpush1.bf16.msra.mxu0 0
      %1825 = vmatprep.subr.bf16.mxu0 0
      %1826 = vmatpush1.bf16.msra.mxu0 0
      %1827 = vmatprep.subr.bf16.mxu0 0
      %1828 = vmatpush1.bf16.msra.mxu0 0
      %1829 = vmatprep.subr.bf16.mxu0 0
      %1830 = vmatpush1.bf16.msra.mxu0 0
      %1831 = vmatprep.subr.bf16.mxu0 0
      %1832 = vmatpush1.bf16.msra.mxu0 0
      %1833 = vmatprep.subr.bf16.mxu0 0
      %1834 = vmatpush1.bf16.msra.mxu0 0
      %1835 = vmatprep.subr.bf16.mxu0 0
      %1836 = vmatpush1.bf16.msra.mxu0 0
      %1837 = vmatprep.subr.bf16.mxu0 0
      %1838 = vmatpush1.bf16.msra.mxu0 0
      %1839 = vmatprep.subr.bf16.mxu0 0
      %1840 = vmatpush1.bf16.msra.mxu0 0
      %1841 = vmatprep.subr.bf16.mxu0 0
      %1842 = vmatpush1.bf16.msra.mxu0 0
      %1843 = vmatprep.subr.bf16.mxu0 0
      %1844 = vmatpush1.bf16.msra.mxu0 0
      %1845 = vmatprep.mubr.bf16.mxu0 0
      %1846 = vmatmul.mubr.bf16.gmra.mrb[0].mxu0 %v1429
      %v1847 = vpop.f32.mrb[0].mxu0
      %v1848 = vadd.f32 0.0, %v1847
      %v1849 = vpop.f32.mrb[0].mxu0
      %v1850 = vpop.f32.mrb[0].mxu0
      %v1851 = vadd.f32 0.0, %v1850
      %v1852 = vpop.f32.mrb[0].mxu0
      %1853 = vmatprep.mubr.bf16.mxu0 0
      %1854 = vmatmul.mubr.bf16.gmra.mrb[0].mxu0 %v1432
      %v1855 = vpop.f32.mrb[0].mxu0
      %v1856 = vadd.f32 0.0, %v1855
      %v1857 = vpop.f32.mrb[0].mxu0
      %v1858 = vpop.f32.mrb[0].mxu0
      %v1859 = vadd.f32 0.0, %v1858
      %v1860 = vpop.f32.mrb[0].mxu0
      %1861 = vmatprep.mubr.bf16.mxu0 0
      %1862 = vmatmul.mubr.bf16.gmra.mrb[0].mxu0 %v1435
      %v1863 = vpop.f32.mrb[0].mxu0
      %v1864 = vadd.f32 0.0, %v1863
      %v1865 = vpop.f32.mrb[0].mxu0
      %v1866 = vpop.f32.mrb[0].mxu0
      %v1867 = vadd.f32 0.0, %v1866
      %v1868 = vpop.f32.mrb[0].mxu0
      %1869 = vmatprep.mubr.bf16.mxu0 0
      %1870 = vmatmul.mubr.bf16.gmra.mrb[0].mxu0 %v1438
      %v1871 = vpop.f32.mrb[0].mxu0
      %v1872 = vadd.f32 0.0, %v1871
      %v1873 = vpop.f32.mrb[0].mxu0
      %v1874 = vpop.f32.mrb[0].mxu0
      %v1875 = vadd.f32 0.0, %v1874
      %v1876 = vpop.f32.mrb[0].mxu0
      %1877 = vmatprep.mubr.bf16.mxu0 0
      %1878 = vmatmul.mubr.bf16.gmra.mrb[0].mxu0 %v1441
      %v1879 = vpop.f32.mrb[0].mxu0
      %v1880 = vadd.f32 0.0, %v1879
      %v1881 = vpop.f32.mrb[0].mxu0
      %v1882 = vpop.f32.mrb[0].mxu0
      %v1883 = vadd.f32 0.0, %v1882
      %v1884 = vpop.f32.mrb[0].mxu0
      %1885 = vmatprep.mubr.bf16.mxu0 0
      %1886 = vmatmul.mubr.bf16.gmra.mrb[0].mxu0 %v1444
      %v1887 = vpop.f32.mrb[0].mxu0
      %v1888 = vadd.f32 0.0, %v1887
      %v1889 = vpop.f32.mrb[0].mxu0
      %v1890 = vpop.f32.mrb[0].mxu0
      %v1891 = vadd.f32 0.0, %v1890
      %v1892 = vpop.f32.mrb[0].mxu0
      %1893 = vmatprep.mubr.bf16.mxu0 0
      %1894 = vmatmul.mubr.bf16.gmra.mrb[0].mxu0 %v1447
      %v1895 = vpop.f32.mrb[0].mxu0
      %v1896 = vadd.f32 0.0, %v1895
      %v1897 = vpop.f32.mrb[0].mxu0
      %v1898 = vpop.f32.mrb[0].mxu0
      %v1899 = vadd.f32 0.0, %v1898
      %v1900 = vpop.f32.mrb[0].mxu0
      %1901 = vmatprep.mubr.bf16.mxu0 0
      %1902 = vmatmul.mubr.bf16.gmra.mrb[0].mxu0 %v1450
      %v1903 = vpop.f32.mrb[0].mxu0
      %v1904 = vadd.f32 0.0, %v1903
      %v1905 = vpop.f32.mrb[0].mxu0
      %v1906 = vpop.f32.mrb[0].mxu0
      %v1907 = vadd.f32 0.0, %v1906
      %v1908 = vpop.f32.mrb[0].mxu0
      %1909 = vmatprep.mubr.bf16.mxu0 0
      %1910 = vmatmul.mubr.bf16.gmra.mrb[0].mxu0 %v1453
      %v1911 = vpop.f32.mrb[0].mxu0
      %v1912 = vadd.f32 0.0, %v1911
      %v1913 = vpop.f32.mrb[0].mxu0
      %v1914 = vpop.f32.mrb[0].mxu0
      %v1915 = vadd.f32 0.0, %v1914
      %v1916 = vpop.f32.mrb[0].mxu0
      %1917 = vmatprep.mubr.bf16.mxu0 0
      %1918 = vmatmul.mubr.bf16.gmra.mrb[0].mxu0 %v1456
      %v1919 = vpop.f32.mrb[0].mxu0
      %v1920 = vadd.f32 0.0, %v1919
      %v1921 = vpop.f32.mrb[0].mxu0
      %v1922 = vpop.f32.mrb[0].mxu0
      %v1923 = vadd.f32 0.0, %v1922
      %v1924 = vpop.f32.mrb[0].mxu0
      %1925 = vmatprep.mubr.bf16.mxu0 0
      %1926 = vmatmul.mubr.bf16.gmra.mrb[0].mxu0 %v1459
      %v1927 = vpop.f32.mrb[0].mxu0
      %v1928 = vadd.f32 0.0, %v1927
      %v1929 = vpop.f32.mrb[0].mxu0
      %v1930 = vpop.f32.mrb[0].mxu0
      %v1931 = vadd.f32 0.0, %v1930
      %v1932 = vpop.f32.mrb[0].mxu0
      %1933 = vmatprep.mubr.bf16.mxu0 0
      %1934 = vmatmul.mubr.bf16.gmra.mrb[0].mxu0 %v1462
      %v1935 = vpop.f32.mrb[0].mxu0
      %v1936 = vadd.f32 0.0, %v1935
      %v1937 = vpop.f32.mrb[0].mxu0
      %v1938 = vpop.f32.mrb[0].mxu0
      %v1939 = vadd.f32 0.0, %v1938
      %v1940 = vpop.f32.mrb[0].mxu0
      %1941 = vmatprep.mubr.bf16.mxu0 0
      %1942 = vmatmul.mubr.bf16.gmra.mrb[0].mxu0 %v1465
      %v1943 = vpop.f32.mrb[0].mxu0
      %v1944 = vadd.f32 0.0, %v1943
      %v1945 = vpop.f32.mrb[0].mxu0
      %v1946 = vpop.f32.mrb[0].mxu0
      %v1947 = vadd.f32 0.0, %v1946
      %v1948 = vpop.f32.mrb[0].mxu0
      %1949 = vmatprep.mubr.bf16.mxu0 0
      %1950 = vmatmul.mubr.bf16.gmra.mrb[0].mxu0 %v1468
      %v1951 = vpop.f32.mrb[0].mxu0
      %v1952 = vadd.f32 0.0, %v1951
      %v1953 = vpop.f32.mrb[0].mxu0
      %v1954 = vpop.f32.mrb[0].mxu0
      %v1955 = vadd.f32 0.0, %v1954
      %v1956 = vpop.f32.mrb[0].mxu0
      %1957 = vmatprep.mubr.bf16.mxu0 0
      %1958 = vmatmul.mubr.bf16.gmra.mrb[0].mxu0 %v1471
      %v1959 = vpop.f32.mrb[0].mxu0
      %v1960 = vadd.f32 0.0, %v1959
      %v1961 = vpop.f32.mrb[0].mxu0
      %v1962 = vpop.f32.mrb[0].mxu0
      %v1963 = vadd.f32 0.0, %v1962
      %v1964 = vpop.f32.mrb[0].mxu0
      %1965 = vmatprep.mubr.bf16.mxu0 0
      %1966 = vmatmul.mubr.bf16.gmra.mrb[0].mxu0 %v1808
      %v1967 = vpop.f32.mrb[0].mxu0
      %v1968 = vadd.f32 0.0, %v1967
      %v1969 = vpop.f32.mrb[0].mxu0
      %v1970 = vpop.f32.mrb[0].mxu0
      %v1971 = vadd.f32 0.0, %v1970
      %v1972 = vpop.f32.mrb[0].mxu0
      %1973 = vdwg.mxu0
      %v1974 = vadd.f32 %v1679, %v1848
      %v1975 = vadd.f32 %v1682, %v1851
      %v1976 = vadd.f32 %v1687, %v1856
      %v1977 = vadd.f32 %v1690, %v1859
      %v1978 = vadd.f32 %v1695, %v1864
      %v1979 = vadd.f32 %v1698, %v1867
      %v1980 = vadd.f32 %v1703, %v1872
      %v1981 = vadd.f32 %v1706, %v1875
      %v1982 = vadd.f32 %v1711, %v1880
      %v1983 = vadd.f32 %v1714, %v1883
      %v1984 = vadd.f32 %v1719, %v1888
      %v1985 = vadd.f32 %v1722, %v1891
      %v1986 = vadd.f32 %v1727, %v1896
      %v1987 = vadd.f32 %v1730, %v1899
      %v1988 = vadd.f32 %v1735, %v1904
      %v1989 = vadd.f32 %v1738, %v1907
      %v1990 = vadd.f32 %v1743, %v1912
      %v1991 = vadd.f32 %v1746, %v1915
      %v1992 = vadd.f32 %v1751, %v1920
      %v1993 = vadd.f32 %v1754, %v1923
      %v1994 = vadd.f32 %v1759, %v1928
      %v1995 = vadd.f32 %v1762, %v1931
      %v1996 = vadd.f32 %v1767, %v1936
      %v1997 = vadd.f32 %v1770, %v1939
      %v1998 = vadd.f32 %v1775, %v1944
      %v1999 = vadd.f32 %v1778, %v1947
      %v2000 = vadd.f32 %v1783, %v1952
      %v2001 = vadd.f32 %v1786, %v1955
      %v2002 = vadd.f32 %v1791, %v1960
      %v2003 = vadd.f32 %v1794, %v1963
      %v2004 = vadd.f32 %v1799, %v1968
      %v2005 = vadd.f32 %v1802, %v1971
      %s2006 = scalar_lea.vmem %s1, 6
      %v2007 = vld [vmem:[%s2006] sm:$0x3]
      %v2009 = vsel %vm1424, %v1349, 0
      %v2012 = vsel %vm1424, %v1350, 0
      %v2015 = vsel %vm1424, %v1351, 0
      %v2018 = vsel %vm1424, %v1352, 0
      %v2021 = vsel %vm1424, %v1353, 0
      %v2024 = vsel %vm1424, %v1354, 0
      %v2027 = vsel %vm1424, %v1355, 0
      %v2030 = vsel %vm1424, %v1356, 0
      %v2033 = vsel %vm1424, %v1357, 0
      %v2036 = vsel %vm1424, %v1358, 0
      %v2039 = vsel %vm1424, %v1359, 0
      %v2042 = vsel %vm1424, %v1360, 0
      %v2045 = vsel %vm1424, %v1361, 0
      %v2048 = vsel %vm1424, %v1362, 0
      %v2051 = vsel %vm1424, %v1363, 0
      %v2054 = vsel %vm1424, %v1364, 0
      %v2057 = vsel %vm1473, %v2007, 0
      %2059 = vmatprep.subr.bf16.mxu0 0
      %2060 = vmatpush1.bf16.msra.mxu0 %v2057
      %2061 = vmatprep.subr.bf16.mxu0 0
      %2062 = vmatpush1.bf16.msra.mxu0 0
      %2063 = vmatprep.subr.bf16.mxu0 0
      %2064 = vmatpush1.bf16.msra.mxu0 0
      %2065 = vmatprep.subr.bf16.mxu0 0
      %2066 = vmatpush1.bf16.msra.mxu0 0
      %2067 = vmatprep.subr.bf16.mxu0 0
      %2068 = vmatpush1.bf16.msra.mxu0 0
      %2069 = vmatprep.subr.bf16.mxu0 0
      %2070 = vmatpush1.bf16.msra.mxu0 0
      %2071 = vmatprep.subr.bf16.mxu0 0
      %2072 = vmatpush1.bf16.msra.mxu0 0
      %2073 = vmatprep.subr.bf16.mxu0 0
      %2074 = vmatpush1.bf16.msra.mxu0 0
      %2075 = vmatprep.subr.bf16.mxu0 0
      %2076 = vmatpush1.bf16.msra.mxu0 0
      %2077 = vmatprep.subr.bf16.mxu0 0
      %2078 = vmatpush1.bf16.msra.mxu0 0
      %2079 = vmatprep.subr.bf16.mxu0 0
      %2080 = vmatpush1.bf16.msra.mxu0 0
      %2081 = vmatprep.subr.bf16.mxu0 0
      %2082 = vmatpush1.bf16.msra.mxu0 0
      %2083 = vmatprep.subr.bf16.mxu0 0
      %2084 = vmatpush1.bf16.msra.mxu0 0
      %2085 = vmatprep.subr.bf16.mxu0 0
      %2086 = vmatpush1.bf16.msra.mxu0 0
      %2087 = vmatprep.subr.bf16.mxu0 0
      %2088 = vmatpush1.bf16.msra.mxu0 0
      %2089 = vmatprep.subr.bf16.mxu0 0
      %2090 = vmatpush1.bf16.msra.mxu0 0
      %2091 = vmatprep.mubr.bf16.mxu0 0
      %2092 = vmatmul.mubr.bf16.gmra.mrb[0].mxu0 %v2009
      %v2093 = vpop.f32.mrb[0].mxu0
      %v2094 = vadd.f32 0.0, %v2093
      %v2095 = vpop.f32.mrb[0].mxu0
      %v2096 = vpop.f32.mrb[0].mxu0
      %v2097 = vadd.f32 0.0, %v2096
      %v2098 = vpop.f32.mrb[0].mxu0
      %2099 = vmatprep.mubr.bf16.mxu0 0
      %2100 = vmatmul.mubr.bf16.gmra.mrb[0].mxu0 %v2012
      %v2101 = vpop.f32.mrb[0].mxu0
      %v2102 = vadd.f32 0.0, %v2101
      %v2103 = vpop.f32.mrb[0].mxu0
      %v2104 = vpop.f32.mrb[0].mxu0
      %v2105 = vadd.f32 0.0, %v2104
      %v2106 = vpop.f32.mrb[0].mxu0
      %2107 = vmatprep.mubr.bf16.mxu0 0
      %2108 = vmatmul.mubr.bf16.gmra.mrb[0].mxu0 %v2015
      %v2109 = vpop.f32.mrb[0].mxu0
      %v2110 = vadd.f32 0.0, %v2109
      %v2111 = vpop.f32.mrb[0].mxu0
      %v2112 = vpop.f32.mrb[0].mxu0
      %v2113 = vadd.f32 0.0, %v2112
      %v2114 = vpop.f32.mrb[0].mxu0
      %2115 = vmatprep.mubr.bf16.mxu0 0
      %2116 = vmatmul.mubr.bf16.gmra.mrb[0].mxu0 %v2018
      %v2117 = vpop.f32.mrb[0].mxu0
      %v2118 = vadd.f32 0.0, %v2117
      %v2119 = vpop.f32.mrb[0].mxu0
      %v2120 = vpop.f32.mrb[0].mxu0
      %v2121 = vadd.f32 0.0, %v2120
      %v2122 = vpop.f32.mrb[0].mxu0
      %2123 = vmatprep.mubr.bf16.mxu0 0
      %2124 = vmatmul.mubr.bf16.gmra.mrb[0].mxu0 %v2021
      %v2125 = vpop.f32.mrb[0].mxu0
      %v2126 = vadd.f32 0.0, %v2125
      %v2127 = vpop.f32.mrb[0].mxu0
      %v2128 = vpop.f32.mrb[0].mxu0
      %v2129 = vadd.f32 0.0, %v2128
      %v2130 = vpop.f32.mrb[0].mxu0
      %2131 = vmatprep.mubr.bf16.mxu0 0
      %2132 = vmatmul.mubr.bf16.gmra.mrb[0].mxu0 %v2024
      %v2133 = vpop.f32.mrb[0].mxu0
      %v2134 = vadd.f32 0.0, %v2133
      %v2135 = vpop.f32.mrb[0].mxu0
      %v2136 = vpop.f32.mrb[0].mxu0
      %v2137 = vadd.f32 0.0, %v2136
      %v2138 = vpop.f32.mrb[0].mxu0
      %2139 = vmatprep.mubr.bf16.mxu0 0
      %2140 = vmatmul.mubr.bf16.gmra.mrb[0].mxu0 %v2027
      %v2141 = vpop.f32.mrb[0].mxu0
      %v2142 = vadd.f32 0.0, %v2141
      %v2143 = vpop.f32.mrb[0].mxu0
      %v2144 = vpop.f32.mrb[0].mxu0
      %v2145 = vadd.f32 0.0, %v2144
      %v2146 = vpop.f32.mrb[0].mxu0
      %2147 = vmatprep.mubr.bf16.mxu0 0
      %2148 = vmatmul.mubr.bf16.gmra.mrb[0].mxu0 %v2030
      %v2149 = vpop.f32.mrb[0].mxu0
      %v2150 = vadd.f32 0.0, %v2149
      %v2151 = vpop.f32.mrb[0].mxu0
      %v2152 = vpop.f32.mrb[0].mxu0
      %v2153 = vadd.f32 0.0, %v2152
      %v2154 = vpop.f32.mrb[0].mxu0
      %2155 = vmatprep.mubr.bf16.mxu0 0
      %2156 = vmatmul.mubr.bf16.gmra.mrb[0].mxu0 %v2033
      %v2157 = vpop.f32.mrb[0].mxu0
      %v2158 = vadd.f32 0.0, %v2157
      %v2159 = vpop.f32.mrb[0].mxu0
      %v2160 = vpop.f32.mrb[0].mxu0
      %v2161 = vadd.f32 0.0, %v2160
      %v2162 = vpop.f32.mrb[0].mxu0
      %2163 = vmatprep.mubr.bf16.mxu0 0
      %2164 = vmatmul.mubr.bf16.gmra.mrb[0].mxu0 %v2036
      %v2165 = vpop.f32.mrb[0].mxu0
      %v2166 = vadd.f32 0.0, %v2165
      %v2167 = vpop.f32.mrb[0].mxu0
      %v2168 = vpop.f32.mrb[0].mxu0
      %v2169 = vadd.f32 0.0, %v2168
      %v2170 = vpop.f32.mrb[0].mxu0
      %2171 = vmatprep.mubr.bf16.mxu0 0
      %2172 = vmatmul.mubr.bf16.gmra.mrb[0].mxu0 %v2039
      %v2173 = vpop.f32.mrb[0].mxu0
      %v2174 = vadd.f32 0.0, %v2173
      %v2175 = vpop.f32.mrb[0].mxu0
      %v2176 = vpop.f32.mrb[0].mxu0
      %v2177 = vadd.f32 0.0, %v2176
      %v2178 = vpop.f32.mrb[0].mxu0
      %2179 = vmatprep.mubr.bf16.mxu0 0
      %2180 = vmatmul.mubr.bf16.gmra.mrb[0].mxu0 %v2042
      %v2181 = vpop.f32.mrb[0].mxu0
      %v2182 = vadd.f32 0.0, %v2181
      %v2183 = vpop.f32.mrb[0].mxu0
      %v2184 = vpop.f32.mrb[0].mxu0
      %v2185 = vadd.f32 0.0, %v2184
      %v2186 = vpop.f32.mrb[0].mxu0
      %2187 = vmatprep.mubr.bf16.mxu0 0
      %2188 = vmatmul.mubr.bf16.gmra.mrb[0].mxu0 %v2045
      %v2189 = vpop.f32.mrb[0].mxu0
      %v2190 = vadd.f32 0.0, %v2189
      %v2191 = vpop.f32.mrb[0].mxu0
      %v2192 = vpop.f32.mrb[0].mxu0
      %v2193 = vadd.f32 0.0, %v2192
      %v2194 = vpop.f32.mrb[0].mxu0
      %2195 = vmatprep.mubr.bf16.mxu0 0
      %2196 = vmatmul.mubr.bf16.gmra.mrb[0].mxu0 %v2048
      %v2197 = vpop.f32.mrb[0].mxu0
      %v2198 = vadd.f32 0.0, %v2197
      %v2199 = vpop.f32.mrb[0].mxu0
      %v2200 = vpop.f32.mrb[0].mxu0
      %v2201 = vadd.f32 0.0, %v2200
      %v2202 = vpop.f32.mrb[0].mxu0
      %2203 = vmatprep.mubr.bf16.mxu0 0
      %2204 = vmatmul.mubr.bf16.gmra.mrb[0].mxu0 %v2051
      %v2205 = vpop.f32.mrb[0].mxu0
      %v2206 = vadd.f32 0.0, %v2205
      %v2207 = vpop.f32.mrb[0].mxu0
      %v2208 = vpop.f32.mrb[0].mxu0
      %v2209 = vadd.f32 0.0, %v2208
      %v2210 = vpop.f32.mrb[0].mxu0
      %2211 = vmatprep.mubr.bf16.mxu0 0
      %2212 = vmatmul.mubr.bf16.gmra.mrb[0].mxu0 %v2054
      %v2213 = vpop.f32.mrb[0].mxu0
      %v2214 = vadd.f32 0.0, %v2213
      %v2215 = vpop.f32.mrb[0].mxu0
      %v2216 = vpop.f32.mrb[0].mxu0
      %v2217 = vadd.f32 0.0, %v2216
      %v2218 = vpop.f32.mrb[0].mxu0
      %2219 = vdwg.mxu0
      %v2220 = vadd.f32 %v1974, %v2094
      %v2221 = vadd.f32 %v1975, %v2097
      %v2222 = vadd.f32 %v1976, %v2102
      %v2223 = vadd.f32 %v1977, %v2105
      %v2224 = vadd.f32 %v1978, %v2110
      %v2225 = vadd.f32 %v1979, %v2113
      %v2226 = vadd.f32 %v1980, %v2118
      %v2227 = vadd.f32 %v1981, %v2121
      %v2228 = vadd.f32 %v1982, %v2126
      %v2229 = vadd.f32 %v1983, %v2129
      %v2230 = vadd.f32 %v1984, %v2134
      %v2231 = vadd.f32 %v1985, %v2137
      %v2232 = vadd.f32 %v1986, %v2142
      %v2233 = vadd.f32 %v1987, %v2145
      %v2234 = vadd.f32 %v1988, %v2150
      %v2235 = vadd.f32 %v1989, %v2153
      %v2236 = vadd.f32 %v1990, %v2158
      %v2237 = vadd.f32 %v1991, %v2161
      %v2238 = vadd.f32 %v1992, %v2166
      %v2239 = vadd.f32 %v1993, %v2169
      %v2240 = vadd.f32 %v1994, %v2174
      %v2241 = vadd.f32 %v1995, %v2177
      %v2242 = vadd.f32 %v1996, %v2182
      %v2243 = vadd.f32 %v1997, %v2185
      %v2244 = vadd.f32 %v1998, %v2190
      %v2245 = vadd.f32 %v1999, %v2193
      %v2246 = vadd.f32 %v2000, %v2198
      %v2247 = vadd.f32 %v2001, %v2201
      %v2248 = vadd.f32 %v2002, %v2206
      %v2249 = vadd.f32 %v2003, %v2209
      %v2250 = vadd.f32 %v2004, %v2214
      %v2251 = vadd.f32 %v2005, %v2217
      %s2252 = scalar_lea.vmem %s1, 8
      %v2253 = vld [vmem:[%s2252] sm:$0x3]
      %v2255 = vsel %vm1424, %v1365, 0
      %v2258 = vsel %vm1473, %v2253, 0
      %2260 = vmatprep.subr.bf16.mxu0 0
      %2261 = vmatpush1.bf16.msra.mxu0 %v2258
      %2262 = vmatprep.subr.bf16.mxu0 0
      %2263 = vmatpush1.bf16.msra.mxu0 0
      %2264 = vmatprep.subr.bf16.mxu0 0
      %2265 = vmatpush1.bf16.msra.mxu0 0
      %2266 = vmatprep.subr.bf16.mxu0 0
      %2267 = vmatpush1.bf16.msra.mxu0 0
      %2268 = vmatprep.subr.bf16.mxu0 0
      %2269 = vmatpush1.bf16.msra.mxu0 0
      %2270 = vmatprep.subr.bf16.mxu0 0
      %2271 = vmatpush1.bf16.msra.mxu0 0
      %2272 = vmatprep.subr.bf16.mxu0 0
      %2273 = vmatpush1.bf16.msra.mxu0 0
      %2274 = vmatprep.subr.bf16.mxu0 0
      %2275 = vmatpush1.bf16.msra.mxu0 0
      %2276 = vmatprep.subr.bf16.mxu0 0
      %2277 = vmatpush1.bf16.msra.mxu0 0
      %2278 = vmatprep.subr.bf16.mxu0 0
      %2279 = vmatpush1.bf16.msra.mxu0 0
      %2280 = vmatprep.subr.bf16.mxu0 0
      %2281 = vmatpush1.bf16.msra.mxu0 0
      %2282 = vmatprep.subr.bf16.mxu0 0
      %2283 = vmatpush1.bf16.msra.mxu0 0
      %2284 = vmatprep.subr.bf16.mxu0 0
      %2285 = vmatpush1.bf16.msra.mxu0 0
      %2286 = vmatprep.subr.bf16.mxu0 0
      %2287 = vmatpush1.bf16.msra.mxu0 0
      %2288 = vmatprep.subr.bf16.mxu0 0
      %2289 = vmatpush1.bf16.msra.mxu0 0
      %2290 = vmatprep.subr.bf16.mxu0 0
      %2291 = vmatpush1.bf16.msra.mxu0 0
      %2292 = vmatprep.mubr.bf16.mxu0 0
      %2293 = vmatmul.mubr.bf16.gmra.mrb[0].mxu0 %v2012
      %v2294 = vpop.f32.mrb[0].mxu0
      %v2295 = vadd.f32 0.0, %v2294
      %v2296 = vpop.f32.mrb[0].mxu0
      %v2297 = vpop.f32.mrb[0].mxu0
      %v2298 = vadd.f32 0.0, %v2297
      %v2299 = vpop.f32.mrb[0].mxu0
      %2300 = vmatprep.mubr.bf16.mxu0 0
      %2301 = vmatmul.mubr.bf16.gmra.mrb[0].mxu0 %v2015
      %v2302 = vpop.f32.mrb[0].mxu0
      %v2303 = vadd.f32 0.0, %v2302
      %v2304 = vpop.f32.mrb[0].mxu0
      %v2305 = vpop.f32.mrb[0].mxu0
      %v2306 = vadd.f32 0.0, %v2305
      %v2307 = vpop.f32.mrb[0].mxu0
      %2308 = vmatprep.mubr.bf16.mxu0 0
      %2309 = vmatmul.mubr.bf16.gmra.mrb[0].mxu0 %v2018
      %v2310 = vpop.f32.mrb[0].mxu0
      %v2311 = vadd.f32 0.0, %v2310
      %v2312 = vpop.f32.mrb[0].mxu0
      %v2313 = vpop.f32.mrb[0].mxu0
      %v2314 = vadd.f32 0.0, %v2313
      %v2315 = vpop.f32.mrb[0].mxu0
      %2316 = vmatprep.mubr.bf16.mxu0 0
      %2317 = vmatmul.mubr.bf16.gmra.mrb[0].mxu0 %v2021
      %v2318 = vpop.f32.mrb[0].mxu0
      %v2319 = vadd.f32 0.0, %v2318
      %v2320 = vpop.f32.mrb[0].mxu0
      %v2321 = vpop.f32.mrb[0].mxu0
      %v2322 = vadd.f32 0.0, %v2321
      %v2323 = vpop.f32.mrb[0].mxu0
      %2324 = vmatprep.mubr.bf16.mxu0 0
      %2325 = vmatmul.mubr.bf16.gmra.mrb[0].mxu0 %v2024
      %v2326 = vpop.f32.mrb[0].mxu0
      %v2327 = vadd.f32 0.0, %v2326
      %v2328 = vpop.f32.mrb[0].mxu0
      %v2329 = vpop.f32.mrb[0].mxu0
      %v2330 = vadd.f32 0.0, %v2329
      %v2331 = vpop.f32.mrb[0].mxu0
      %2332 = vmatprep.mubr.bf16.mxu0 0
      %2333 = vmatmul.mubr.bf16.gmra.mrb[0].mxu0 %v2027
      %v2334 = vpop.f32.mrb[0].mxu0
      %v2335 = vadd.f32 0.0, %v2334
      %v2336 = vpop.f32.mrb[0].mxu0
      %v2337 = vpop.f32.mrb[0].mxu0
      %v2338 = vadd.f32 0.0, %v2337
      %v2339 = vpop.f32.mrb[0].mxu0
      %2340 = vmatprep.mubr.bf16.mxu0 0
      %2341 = vmatmul.mubr.bf16.gmra.mrb[0].mxu0 %v2030
      %v2342 = vpop.f32.mrb[0].mxu0
      %v2343 = vadd.f32 0.0, %v2342
      %v2344 = vpop.f32.mrb[0].mxu0
      %v2345 = vpop.f32.mrb[0].mxu0
      %v2346 = vadd.f32 0.0, %v2345
      %v2347 = vpop.f32.mrb[0].mxu0
      %2348 = vmatprep.mubr.bf16.mxu0 0
      %2349 = vmatmul.mubr.bf16.gmra.mrb[0].mxu0 %v2033
      %v2350 = vpop.f32.mrb[0].mxu0
      %v2351 = vadd.f32 0.0, %v2350
      %v2352 = vpop.f32.mrb[0].mxu0
      %v2353 = vpop.f32.mrb[0].mxu0
      %v2354 = vadd.f32 0.0, %v2353
      %v2355 = vpop.f32.mrb[0].mxu0
      %2356 = vmatprep.mubr.bf16.mxu0 0
      %2357 = vmatmul.mubr.bf16.gmra.mrb[0].mxu0 %v2036
      %v2358 = vpop.f32.mrb[0].mxu0
      %v2359 = vadd.f32 0.0, %v2358
      %v2360 = vpop.f32.mrb[0].mxu0
      %v2361 = vpop.f32.mrb[0].mxu0
      %v2362 = vadd.f32 0.0, %v2361
      %v2363 = vpop.f32.mrb[0].mxu0
      %2364 = vmatprep.mubr.bf16.mxu0 0
      %2365 = vmatmul.mubr.bf16.gmra.mrb[0].mxu0 %v2039
      %v2366 = vpop.f32.mrb[0].mxu0
      %v2367 = vadd.f32 0.0, %v2366
      %v2368 = vpop.f32.mrb[0].mxu0
      %v2369 = vpop.f32.mrb[0].mxu0
      %v2370 = vadd.f32 0.0, %v2369
      %v2371 = vpop.f32.mrb[0].mxu0
      %2372 = vmatprep.mubr.bf16.mxu0 0
      %2373 = vmatmul.mubr.bf16.gmra.mrb[0].mxu0 %v2042
      %v2374 = vpop.f32.mrb[0].mxu0
      %v2375 = vadd.f32 0.0, %v2374
      %v2376 = vpop.f32.mrb[0].mxu0
      %v2377 = vpop.f32.mrb[0].mxu0
      %v2378 = vadd.f32 0.0, %v2377
      %v2379 = vpop.f32.mrb[0].mxu0
      %2380 = vmatprep.mubr.bf16.mxu0 0
      %2381 = vmatmul.mubr.bf16.gmra.mrb[0].mxu0 %v2045
      %v2382 = vpop.f32.mrb[0].mxu0
      %v2383 = vadd.f32 0.0, %v2382
      %v2384 = vpop.f32.mrb[0].mxu0
      %v2385 = vpop.f32.mrb[0].mxu0
      %v2386 = vadd.f32 0.0, %v2385
      %v2387 = vpop.f32.mrb[0].mxu0
      %2388 = vmatprep.mubr.bf16.mxu0 0
      %2389 = vmatmul.mubr.bf16.gmra.mrb[0].mxu0 %v2048
      %v2390 = vpop.f32.mrb[0].mxu0
      %v2391 = vadd.f32 0.0, %v2390
      %v2392 = vpop.f32.mrb[0].mxu0
      %v2393 = vpop.f32.mrb[0].mxu0
      %v2394 = vadd.f32 0.0, %v2393
      %v2395 = vpop.f32.mrb[0].mxu0
      %2396 = vmatprep.mubr.bf16.mxu0 0
      %2397 = vmatmul.mubr.bf16.gmra.mrb[0].mxu0 %v2051
      %v2398 = vpop.f32.mrb[0].mxu0
      %v2399 = vadd.f32 0.0, %v2398
      %v2400 = vpop.f32.mrb[0].mxu0
      %v2401 = vpop.f32.mrb[0].mxu0
      %v2402 = vadd.f32 0.0, %v2401
      %v2403 = vpop.f32.mrb[0].mxu0
      %2404 = vmatprep.mubr.bf16.mxu0 0
      %2405 = vmatmul.mubr.bf16.gmra.mrb[0].mxu0 %v2054
      %v2406 = vpop.f32.mrb[0].mxu0
      %v2407 = vadd.f32 0.0, %v2406
      %v2408 = vpop.f32.mrb[0].mxu0
      %v2409 = vpop.f32.mrb[0].mxu0
      %v2410 = vadd.f32 0.0, %v2409
      %v2411 = vpop.f32.mrb[0].mxu0
      %2412 = vmatprep.mubr.bf16.mxu0 0
      %2413 = vmatmul.mubr.bf16.gmra.mrb[0].mxu0 %v2255
      %v2414 = vpop.f32.mrb[0].mxu0
      %v2415 = vadd.f32 0.0, %v2414
      %v2416 = vpop.f32.mrb[0].mxu0
      %v2417 = vpop.f32.mrb[0].mxu0
      %v2418 = vadd.f32 0.0, %v2417
      %v2419 = vpop.f32.mrb[0].mxu0
      %2420 = vdwg.mxu0
      %v2421 = vadd.f32 %v2220, %v2295
      %v2422 = vadd.f32 %v2221, %v2298
      %v2423 = vadd.f32 %v2222, %v2303
      %v2424 = vadd.f32 %v2223, %v2306
      %v2425 = vadd.f32 %v2224, %v2311
      %v2426 = vadd.f32 %v2225, %v2314
      %v2427 = vadd.f32 %v2226, %v2319
      %v2428 = vadd.f32 %v2227, %v2322
      %v2429 = vadd.f32 %v2228, %v2327
      %v2430 = vadd.f32 %v2229, %v2330
      %v2431 = vadd.f32 %v2230, %v2335
      %v2432 = vadd.f32 %v2231, %v2338
      %v2433 = vadd.f32 %v2232, %v2343
      %v2434 = vadd.f32 %v2233, %v2346
      %v2435 = vadd.f32 %v2234, %v2351
      %v2436 = vadd.f32 %v2235, %v2354
      %v2437 = vadd.f32 %v2236, %v2359
      %v2438 = vadd.f32 %v2237, %v2362
      %v2439 = vadd.f32 %v2238, %v2367
      %v2440 = vadd.f32 %v2239, %v2370
      %v2441 = vadd.f32 %v2240, %v2375
      %v2442 = vadd.f32 %v2241, %v2378
      %v2443 = vadd.f32 %v2242, %v2383
      %v2444 = vadd.f32 %v2243, %v2386
      %v2445 = vadd.f32 %v2244, %v2391
      %v2446 = vadd.f32 %v2245, %v2394
      %v2447 = vadd.f32 %v2246, %v2399
      %v2448 = vadd.f32 %v2247, %v2402
      %v2449 = vadd.f32 %v2248, %v2407
      %v2450 = vadd.f32 %v2249, %v2410
      %v2451 = vadd.f32 %v2250, %v2415
      %v2452 = vadd.f32 %v2251, %v2418
      %s2453 = scalar_lea.vmem %s1, 10
      %v2454 = vld [vmem:[%s2453] sm:$0x3]
      %v2456 = vsel %vm1424, %v1366, 0
      %v2459 = vsel %vm1473, %v2454, 0
      %2461 = vmatprep.subr.bf16.mxu0 0
      %2462 = vmatpush1.bf16.msra.mxu0 %v2459
      %2463 = vmatprep.subr.bf16.mxu0 0
      %2464 = vmatpush1.bf16.msra.mxu0 0
      %2465 = vmatprep.subr.bf16.mxu0 0
      %2466 = vmatpush1.bf16.msra.mxu0 0
      %2467 = vmatprep.subr.bf16.mxu0 0
      %2468 = vmatpush1.bf16.msra.mxu0 0
      %2469 = vmatprep.subr.bf16.mxu0 0
      %2470 = vmatpush1.bf16.msra.mxu0 0
      %2471 = vmatprep.subr.bf16.mxu0 0
      %2472 = vmatpush1.bf16.msra.mxu0 0
      %2473 = vmatprep.subr.bf16.mxu0 0
      %2474 = vmatpush1.bf16.msra.mxu0 0
      %2475 = vmatprep.subr.bf16.mxu0 0
      %2476 = vmatpush1.bf16.msra.mxu0 0
      %2477 = vmatprep.subr.bf16.mxu0 0
      %2478 = vmatpush1.bf16.msra.mxu0 0
      %2479 = vmatprep.subr.bf16.mxu0 0
      %2480 = vmatpush1.bf16.msra.mxu0 0
      %2481 = vmatprep.subr.bf16.mxu0 0
      %2482 = vmatpush1.bf16.msra.mxu0 0
      %2483 = vmatprep.subr.bf16.mxu0 0
      %2484 = vmatpush1.bf16.msra.mxu0 0
      %2485 = vmatprep.subr.bf16.mxu0 0
      %2486 = vmatpush1.bf16.msra.mxu0 0
      %2487 = vmatprep.subr.bf16.mxu0 0
      %2488 = vmatpush1.bf16.msra.mxu0 0
      %2489 = vmatprep.subr.bf16.mxu0 0
      %2490 = vmatpush1.bf16.msra.mxu0 0
      %2491 = vmatprep.subr.bf16.mxu0 0
      %2492 = vmatpush1.bf16.msra.mxu0 0
      %2493 = vmatprep.mubr.bf16.mxu0 0
      %2494 = vmatmul.mubr.bf16.gmra.mrb[0].mxu0 %v2015
      %v2495 = vpop.f32.mrb[0].mxu0
      %v2496 = vadd.f32 0.0, %v2495
      %v2497 = vpop.f32.mrb[0].mxu0
      %v2498 = vpop.f32.mrb[0].mxu0
      %v2499 = vadd.f32 0.0, %v2498
      %v2500 = vpop.f32.mrb[0].mxu0
      %2501 = vmatprep.mubr.bf16.mxu0 0
      %2502 = vmatmul.mubr.bf16.gmra.mrb[0].mxu0 %v2018
      %v2503 = vpop.f32.mrb[0].mxu0
      %v2504 = vadd.f32 0.0, %v2503
      %v2505 = vpop.f32.mrb[0].mxu0
      %v2506 = vpop.f32.mrb[0].mxu0
      %v2507 = vadd.f32 0.0, %v2506
      %v2508 = vpop.f32.mrb[0].mxu0
      %2509 = vmatprep.mubr.bf16.mxu0 0
      %2510 = vmatmul.mubr.bf16.gmra.mrb[0].mxu0 %v2021
      %v2511 = vpop.f32.mrb[0].mxu0
      %v2512 = vadd.f32 0.0, %v2511
      %v2513 = vpop.f32.mrb[0].mxu0
      %v2514 = vpop.f32.mrb[0].mxu0
      %v2515 = vadd.f32 0.0, %v2514
      %v2516 = vpop.f32.mrb[0].mxu0
      %2517 = vmatprep.mubr.bf16.mxu0 0
      %2518 = vmatmul.mubr.bf16.gmra.mrb[0].mxu0 %v2024
      %v2519 = vpop.f32.mrb[0].mxu0
      %v2520 = vadd.f32 0.0, %v2519
      %v2521 = vpop.f32.mrb[0].mxu0
      %v2522 = vpop.f32.mrb[0].mxu0
      %v2523 = vadd.f32 0.0, %v2522
      %v2524 = vpop.f32.mrb[0].mxu0
      %2525 = vmatprep.mubr.bf16.mxu0 0
      %2526 = vmatmul.mubr.bf16.gmra.mrb[0].mxu0 %v2027
      %v2527 = vpop.f32.mrb[0].mxu0
      %v2528 = vadd.f32 0.0, %v2527
      %v2529 = vpop.f32.mrb[0].mxu0
      %v2530 = vpop.f32.mrb[0].mxu0
      %v2531 = vadd.f32 0.0, %v2530
      %v2532 = vpop.f32.mrb[0].mxu0
      %2533 = vmatprep.mubr.bf16.mxu0 0
      %2534 = vmatmul.mubr.bf16.gmra.mrb[0].mxu0 %v2030
      %v2535 = vpop.f32.mrb[0].mxu0
      %v2536 = vadd.f32 0.0, %v2535
      %v2537 = vpop.f32.mrb[0].mxu0
      %v2538 = vpop.f32.mrb[0].mxu0
      %v2539 = vadd.f32 0.0, %v2538
      %v2540 = vpop.f32.mrb[0].mxu0
      %2541 = vmatprep.mubr.bf16.mxu0 0
      %2542 = vmatmul.mubr.bf16.gmra.mrb[0].mxu0 %v2033
      %v2543 = vpop.f32.mrb[0].mxu0
      %v2544 = vadd.f32 0.0, %v2543
      %v2545 = vpop.f32.mrb[0].mxu0
      %v2546 = vpop.f32.mrb[0].mxu0
      %v2547 = vadd.f32 0.0, %v2546
      %v2548 = vpop.f32.mrb[0].mxu0
      %2549 = vmatprep.mubr.bf16.mxu0 0
      %2550 = vmatmul.mubr.bf16.gmra.mrb[0].mxu0 %v2036
      %v2551 = vpop.f32.mrb[0].mxu0
      %v2552 = vadd.f32 0.0, %v2551
      %v2553 = vpop.f32.mrb[0].mxu0
      %v2554 = vpop.f32.mrb[0].mxu0
      %v2555 = vadd.f32 0.0, %v2554
      %v2556 = vpop.f32.mrb[0].mxu0
      %2557 = vmatprep.mubr.bf16.mxu0 0
      %2558 = vmatmul.mubr.bf16.gmra.mrb[0].mxu0 %v2039
      %v2559 = vpop.f32.mrb[0].mxu0
      %v2560 = vadd.f32 0.0, %v2559
      %v2561 = vpop.f32.mrb[0].mxu0
      %v2562 = vpop.f32.mrb[0].mxu0
      %v2563 = vadd.f32 0.0, %v2562
      %v2564 = vpop.f32.mrb[0].mxu0
      %2565 = vmatprep.mubr.bf16.mxu0 0
      %2566 = vmatmul.mubr.bf16.gmra.mrb[0].mxu0 %v2042
      %v2567 = vpop.f32.mrb[0].mxu0
      %v2568 = vadd.f32 0.0, %v2567
      %v2569 = vpop.f32.mrb[0].mxu0
      %v2570 = vpop.f32.mrb[0].mxu0
      %v2571 = vadd.f32 0.0, %v2570
      %v2572 = vpop.f32.mrb[0].mxu0
      %2573 = vmatprep.mubr.bf16.mxu0 0
      %2574 = vmatmul.mubr.bf16.gmra.mrb[0].mxu0 %v2045
      %v2575 = vpop.f32.mrb[0].mxu0
      %v2576 = vadd.f32 0.0, %v2575
      %v2577 = vpop.f32.mrb[0].mxu0
      %v2578 = vpop.f32.mrb[0].mxu0
      %v2579 = vadd.f32 0.0, %v2578
      %v2580 = vpop.f32.mrb[0].mxu0
      %2581 = vmatprep.mubr.bf16.mxu0 0
      %2582 = vmatmul.mubr.bf16.gmra.mrb[0].mxu0 %v2048
      %v2583 = vpop.f32.mrb[0].mxu0
      %v2584 = vadd.f32 0.0, %v2583
      %v2585 = vpop.f32.mrb[0].mxu0
      %v2586 = vpop.f32.mrb[0].mxu0
      %v2587 = vadd.f32 0.0, %v2586
      %v2588 = vpop.f32.mrb[0].mxu0
      %2589 = vmatprep.mubr.bf16.mxu0 0
      %2590 = vmatmul.mubr.bf16.gmra.mrb[0].mxu0 %v2051
      %v2591 = vpop.f32.mrb[0].mxu0
      %v2592 = vadd.f32 0.0, %v2591
      %v2593 = vpop.f32.mrb[0].mxu0
      %v2594 = vpop.f32.mrb[0].mxu0
      %v2595 = vadd.f32 0.0, %v2594
      %v2596 = vpop.f32.mrb[0].mxu0
      %2597 = vmatprep.mubr.bf16.mxu0 0
      %2598 = vmatmul.mubr.bf16.gmra.mrb[0].mxu0 %v2054
      %v2599 = vpop.f32.mrb[0].mxu0
      %v2600 = vadd.f32 0.0, %v2599
      %v2601 = vpop.f32.mrb[0].mxu0
      %v2602 = vpop.f32.mrb[0].mxu0
      %v2603 = vadd.f32 0.0, %v2602
      %v2604 = vpop.f32.mrb[0].mxu0
      %2605 = vmatprep.mubr.bf16.mxu0 0
      %2606 = vmatmul.mubr.bf16.gmra.mrb[0].mxu0 %v2255
      %v2607 = vpop.f32.mrb[0].mxu0
      %v2608 = vadd.f32 0.0, %v2607
      %v2609 = vpop.f32.mrb[0].mxu0
      %v2610 = vpop.f32.mrb[0].mxu0
      %v2611 = vadd.f32 0.0, %v2610
      %v2612 = vpop.f32.mrb[0].mxu0
      %2613 = vmatprep.mubr.bf16.mxu0 0
      %2614 = vmatmul.mubr.bf16.gmra.mrb[0].mxu0 %v2456
      %v2615 = vpop.f32.mrb[0].mxu0
      %v2616 = vadd.f32 0.0, %v2615
      %v2617 = vpop.f32.mrb[0].mxu0
      %v2618 = vpop.f32.mrb[0].mxu0
      %v2619 = vadd.f32 0.0, %v2618
      %v2620 = vpop.f32.mrb[0].mxu0
      %2621 = vdwg.mxu0
      %v2622 = vadd.f32 %v2421, %v2496
      %v2623 = vadd.f32 %v2422, %v2499
      %v2624 = vadd.f32 %v2423, %v2504
      %v2625 = vadd.f32 %v2424, %v2507
      %v2626 = vadd.f32 %v2425, %v2512
      %v2627 = vadd.f32 %v2426, %v2515
      %v2628 = vadd.f32 %v2427, %v2520
      %v2629 = vadd.f32 %v2428, %v2523
      %v2630 = vadd.f32 %v2429, %v2528
      %v2631 = vadd.f32 %v2430, %v2531
      %v2632 = vadd.f32 %v2431, %v2536
      %v2633 = vadd.f32 %v2432, %v2539
      %v2634 = vadd.f32 %v2433, %v2544
      %v2635 = vadd.f32 %v2434, %v2547
      %v2636 = vadd.f32 %v2435, %v2552
      %v2637 = vadd.f32 %v2436, %v2555
      %v2638 = vadd.f32 %v2437, %v2560
      %v2639 = vadd.f32 %v2438, %v2563
      %v2640 = vadd.f32 %v2439, %v2568
      %v2641 = vadd.f32 %v2440, %v2571
      %v2642 = vadd.f32 %v2441, %v2576
      %v2643 = vadd.f32 %v2442, %v2579
      %v2644 = vadd.f32 %v2443, %v2584
      %v2645 = vadd.f32 %v2444, %v2587
      %v2646 = vadd.f32 %v2445, %v2592
      %v2647 = vadd.f32 %v2446, %v2595
      %v2648 = vadd.f32 %v2447, %v2600
      %v2649 = vadd.f32 %v2448, %v2603
      %v2650 = vadd.f32 %v2449, %v2608
      %v2651 = vadd.f32 %v2450, %v2611
      %v2652 = vadd.f32 %v2451, %v2616
      %v2653 = vadd.f32 %v2452, %v2619
      %vm2654 = vsmask.f32 7424
      %v2656 = vshrl.u32 %v1367, 16
      %v2658 = vshll.u32 %v1367, 16
      %v2660 = vrot.slane %v2658, 1
      %v2661 = vor.u32 %v2656, %v2660
      %v2663 = vshll.u32 %v1368, 16
      %v2665 = vrot.slane %v2663, 1
      %v2666 = vsel %vm2654, %v2661, %v2665
      %v2668 = vshrl.u32 %v1369, 16
      %v2670 = vshll.u32 %v1369, 16
      %v2672 = vrot.slane %v2670, 1
      %v2673 = vor.u32 %v2668, %v2672
      %v2675 = vshll.u32 %v1370, 16
      %v2677 = vrot.slane %v2675, 1
      %v2678 = vsel %vm2654, %v2673, %v2677
      %v2680 = vshrl.u32 %v1371, 16
      %v2682 = vshll.u32 %v1371, 16
      %v2684 = vrot.slane %v2682, 1
      %v2685 = vor.u32 %v2680, %v2684
      %v2687 = vshll.u32 %v1372, 16
      %v2689 = vrot.slane %v2687, 1
      %v2690 = vsel %vm2654, %v2685, %v2689
      %v2692 = vshrl.u32 %v1373, 16
      %v2694 = vshll.u32 %v1373, 16
      %v2696 = vrot.slane %v2694, 1
      %v2697 = vor.u32 %v2692, %v2696
      %v2699 = vshll.u32 %v1374, 16
      %v2701 = vrot.slane %v2699, 1
      %v2702 = vsel %vm2654, %v2697, %v2701
      %v2704 = vshrl.u32 %v1375, 16
      %v2706 = vshll.u32 %v1375, 16
      %v2708 = vrot.slane %v2706, 1
      %v2709 = vor.u32 %v2704, %v2708
      %v2711 = vshll.u32 %v1376, 16
      %v2713 = vrot.slane %v2711, 1
      %v2714 = vsel %vm2654, %v2709, %v2713
      %v2716 = vshrl.u32 %v1377, 16
      %v2718 = vshll.u32 %v1377, 16
      %v2720 = vrot.slane %v2718, 1
      %v2721 = vor.u32 %v2716, %v2720
      %v2723 = vshll.u32 %v1378, 16
      %v2725 = vrot.slane %v2723, 1
      %v2726 = vsel %vm2654, %v2721, %v2725
      %v2728 = vshrl.u32 %v1379, 16
      %v2730 = vshll.u32 %v1379, 16
      %v2732 = vrot.slane %v2730, 1
      %v2733 = vor.u32 %v2728, %v2732
      %v2735 = vshll.u32 %v1380, 16
      %v2737 = vrot.slane %v2735, 1
      %v2738 = vsel %vm2654, %v2733, %v2737
      %v2740 = vshrl.u32 %v1381, 16
      %v2742 = vshll.u32 %v1381, 16
      %v2744 = vrot.slane %v2742, 1
      %v2745 = vor.u32 %v2740, %v2744
      %v2747 = vshll.u32 %v1382, 16
      %v2749 = vrot.slane %v2747, 1
      %v2750 = vsel %vm2654, %v2745, %v2749
      %v2752 = vshrl.u32 %v1383, 16
      %v2754 = vshll.u32 %v1383, 16
      %v2756 = vrot.slane %v2754, 1
      %v2757 = vor.u32 %v2752, %v2756
      %v2759 = vshll.u32 %v1384, 16
      %v2761 = vrot.slane %v2759, 1
      %v2762 = vsel %vm2654, %v2757, %v2761
      %v2764 = vshrl.u32 %v1385, 16
      %v2766 = vshll.u32 %v1385, 16
      %v2768 = vrot.slane %v2766, 1
      %v2769 = vor.u32 %v2764, %v2768
      %v2771 = vshll.u32 %v1386, 16
      %v2773 = vrot.slane %v2771, 1
      %v2774 = vsel %vm2654, %v2769, %v2773
      %v2776 = vshrl.u32 %v1387, 16
      %v2778 = vshll.u32 %v1387, 16
      %v2780 = vrot.slane %v2778, 1
      %v2781 = vor.u32 %v2776, %v2780
      %v2783 = vshll.u32 %v1388, 16
      %v2785 = vrot.slane %v2783, 1
      %v2786 = vsel %vm2654, %v2781, %v2785
      %v2788 = vshrl.u32 %v1389, 16
      %v2790 = vshll.u32 %v1389, 16
      %v2792 = vrot.slane %v2790, 1
      %v2793 = vor.u32 %v2788, %v2792
      %v2795 = vshll.u32 %v1390, 16
      %v2797 = vrot.slane %v2795, 1
      %v2798 = vsel %vm2654, %v2793, %v2797
      %v2800 = vshrl.u32 %v1391, 16
      %v2802 = vshll.u32 %v1391, 16
      %v2804 = vrot.slane %v2802, 1
      %v2805 = vor.u32 %v2800, %v2804
      %v2807 = vshll.u32 %v1392, 16
      %v2809 = vrot.slane %v2807, 1
      %v2810 = vsel %vm2654, %v2805, %v2809
      %v2812 = vshrl.u32 %v1393, 16
      %v2814 = vshll.u32 %v1393, 16
      %v2816 = vrot.slane %v2814, 1
      %v2817 = vor.u32 %v2812, %v2816
      %v2819 = vshll.u32 %v1394, 16
      %v2821 = vrot.slane %v2819, 1
      %v2822 = vsel %vm2654, %v2817, %v2821
      %v2824 = vshrl.u32 %v1395, 16
      %v2826 = vshll.u32 %v1395, 16
      %v2828 = vrot.slane %v2826, 1
      %v2829 = vor.u32 %v2824, %v2828
      %v2831 = vshll.u32 %v1396, 16
      %v2833 = vrot.slane %v2831, 1
      %v2834 = vsel %vm2654, %v2829, %v2833
      %v2836 = vshrl.u32 %v1397, 16
      %v2838 = vshll.u32 %v1397, 16
      %v2840 = vrot.slane %v2838, 1
      %v2841 = vor.u32 %v2836, %v2840
      %v2843 = vshll.u32 %v1398, 16
      %v2845 = vrot.slane %v2843, 1
      %v2846 = vsel %vm2654, %v2841, %v2845
      %s2847 = scalar_lea.vmem %s1, 12
      %v2848 = vld [vmem:[%s2847] sm:$0x3]
      %v2850 = vsel %vm1424, %v2666, 0
      %v2853 = vsel %vm1424, %v2678, 0
      %v2856 = vsel %vm1424, %v2690, 0
      %v2859 = vsel %vm1424, %v2702, 0
      %v2862 = vsel %vm1424, %v2714, 0
      %v2865 = vsel %vm1424, %v2726, 0
      %v2868 = vsel %vm1424, %v2738, 0
      %v2871 = vsel %vm1424, %v2750, 0
      %v2874 = vsel %vm1424, %v2762, 0
      %v2877 = vsel %vm1424, %v2774, 0
      %v2880 = vsel %vm1424, %v2786, 0
      %v2883 = vsel %vm1424, %v2798, 0
      %v2886 = vsel %vm1424, %v2810, 0
      %v2889 = vsel %vm1424, %v2822, 0
      %v2892 = vsel %vm1424, %v2834, 0
      %v2895 = vsel %vm1424, %v2846, 0
      %v2898 = vsel %vm1473, %v2848, 0
      %2900 = vmatprep.subr.bf16.mxu0 0
      %2901 = vmatpush1.bf16.msra.mxu0 %v2898
      %2902 = vmatprep.subr.bf16.mxu0 0
      %2903 = vmatpush1.bf16.msra.mxu0 0
      %2904 = vmatprep.subr.bf16.mxu0 0
      %2905 = vmatpush1.bf16.msra.mxu0 0
      %2906 = vmatprep.subr.bf16.mxu0 0
      %2907 = vmatpush1.bf16.msra.mxu0 0
      %2908 = vmatprep.subr.bf16.mxu0 0
      %2909 = vmatpush1.bf16.msra.mxu0 0
      %2910 = vmatprep.subr.bf16.mxu0 0
      %2911 = vmatpush1.bf16.msra.mxu0 0
      %2912 = vmatprep.subr.bf16.mxu0 0
      %2913 = vmatpush1.bf16.msra.mxu0 0
      %2914 = vmatprep.subr.bf16.mxu0 0
      %2915 = vmatpush1.bf16.msra.mxu0 0
      %2916 = vmatprep.subr.bf16.mxu0 0
      %2917 = vmatpush1.bf16.msra.mxu0 0
      %2918 = vmatprep.subr.bf16.mxu0 0
      %2919 = vmatpush1.bf16.msra.mxu0 0
      %2920 = vmatprep.subr.bf16.mxu0 0
      %2921 = vmatpush1.bf16.msra.mxu0 0
      %2922 = vmatprep.subr.bf16.mxu0 0
      %2923 = vmatpush1.bf16.msra.mxu0 0
      %2924 = vmatprep.subr.bf16.mxu0 0
      %2925 = vmatpush1.bf16.msra.mxu0 0
      %2926 = vmatprep.subr.bf16.mxu0 0
      %2927 = vmatpush1.bf16.msra.mxu0 0
      %2928 = vmatprep.subr.bf16.mxu0 0
      %2929 = vmatpush1.bf16.msra.mxu0 0
      %2930 = vmatprep.subr.bf16.mxu0 0
      %2931 = vmatpush1.bf16.msra.mxu0 0
      %2932 = vmatprep.mubr.bf16.mxu0 0
      %2933 = vmatmul.mubr.bf16.gmra.mrb[0].mxu0 %v2850
      %v2934 = vpop.f32.mrb[0].mxu0
      %v2935 = vadd.f32 0.0, %v2934
      %v2936 = vpop.f32.mrb[0].mxu0
      %v2937 = vpop.f32.mrb[0].mxu0
      %v2938 = vadd.f32 0.0, %v2937
      %v2939 = vpop.f32.mrb[0].mxu0
      %2940 = vmatprep.mubr.bf16.mxu0 0
      %2941 = vmatmul.mubr.bf16.gmra.mrb[0].mxu0 %v2853
      %v2942 = vpop.f32.mrb[0].mxu0
      %v2943 = vadd.f32 0.0, %v2942
      %v2944 = vpop.f32.mrb[0].mxu0
      %v2945 = vpop.f32.mrb[0].mxu0
      %v2946 = vadd.f32 0.0, %v2945
      %v2947 = vpop.f32.mrb[0].mxu0
      %2948 = vmatprep.mubr.bf16.mxu0 0
      %2949 = vmatmul.mubr.bf16.gmra.mrb[0].mxu0 %v2856
      %v2950 = vpop.f32.mrb[0].mxu0
      %v2951 = vadd.f32 0.0, %v2950
      %v2952 = vpop.f32.mrb[0].mxu0
      %v2953 = vpop.f32.mrb[0].mxu0
      %v2954 = vadd.f32 0.0, %v2953
      %v2955 = vpop.f32.mrb[0].mxu0
      %2956 = vmatprep.mubr.bf16.mxu0 0
      %2957 = vmatmul.mubr.bf16.gmra.mrb[0].mxu0 %v2859
      %v2958 = vpop.f32.mrb[0].mxu0
      %v2959 = vadd.f32 0.0, %v2958
      %v2960 = vpop.f32.mrb[0].mxu0
      %v2961 = vpop.f32.mrb[0].mxu0
      %v2962 = vadd.f32 0.0, %v2961
      %v2963 = vpop.f32.mrb[0].mxu0
      %2964 = vmatprep.mubr.bf16.mxu0 0
      %2965 = vmatmul.mubr.bf16.gmra.mrb[0].mxu0 %v2862
      %v2966 = vpop.f32.mrb[0].mxu0
      %v2967 = vadd.f32 0.0, %v2966
      %v2968 = vpop.f32.mrb[0].mxu0
      %v2969 = vpop.f32.mrb[0].mxu0
      %v2970 = vadd.f32 0.0, %v2969
      %v2971 = vpop.f32.mrb[0].mxu0
      %2972 = vmatprep.mubr.bf16.mxu0 0
      %2973 = vmatmul.mubr.bf16.gmra.mrb[0].mxu0 %v2865
      %v2974 = vpop.f32.mrb[0].mxu0
      %v2975 = vadd.f32 0.0, %v2974
      %v2976 = vpop.f32.mrb[0].mxu0
      %v2977 = vpop.f32.mrb[0].mxu0
      %v2978 = vadd.f32 0.0, %v2977
      %v2979 = vpop.f32.mrb[0].mxu0
      %2980 = vmatprep.mubr.bf16.mxu0 0
      %2981 = vmatmul.mubr.bf16.gmra.mrb[0].mxu0 %v2868
      %v2982 = vpop.f32.mrb[0].mxu0
      %v2983 = vadd.f32 0.0, %v2982
      %v2984 = vpop.f32.mrb[0].mxu0
      %v2985 = vpop.f32.mrb[0].mxu0
      %v2986 = vadd.f32 0.0, %v2985
      %v2987 = vpop.f32.mrb[0].mxu0
      %2988 = vmatprep.mubr.bf16.mxu0 0
      %2989 = vmatmul.mubr.bf16.gmra.mrb[0].mxu0 %v2871
      %v2990 = vpop.f32.mrb[0].mxu0
      %v2991 = vadd.f32 0.0, %v2990
      %v2992 = vpop.f32.mrb[0].mxu0
      %v2993 = vpop.f32.mrb[0].mxu0
      %v2994 = vadd.f32 0.0, %v2993
      %v2995 = vpop.f32.mrb[0].mxu0
      %2996 = vmatprep.mubr.bf16.mxu0 0
      %2997 = vmatmul.mubr.bf16.gmra.mrb[0].mxu0 %v2874
      %v2998 = vpop.f32.mrb[0].mxu0
      %v2999 = vadd.f32 0.0, %v2998
      %v3000 = vpop.f32.mrb[0].mxu0
      %v3001 = vpop.f32.mrb[0].mxu0
      %v3002 = vadd.f32 0.0, %v3001
      %v3003 = vpop.f32.mrb[0].mxu0
      %3004 = vmatprep.mubr.bf16.mxu0 0
      %3005 = vmatmul.mubr.bf16.gmra.mrb[0].mxu0 %v2877
      %v3006 = vpop.f32.mrb[0].mxu0
      %v3007 = vadd.f32 0.0, %v3006
      %v3008 = vpop.f32.mrb[0].mxu0
      %v3009 = vpop.f32.mrb[0].mxu0
      %v3010 = vadd.f32 0.0, %v3009
      %v3011 = vpop.f32.mrb[0].mxu0
      %3012 = vmatprep.mubr.bf16.mxu0 0
      %3013 = vmatmul.mubr.bf16.gmra.mrb[0].mxu0 %v2880
      %v3014 = vpop.f32.mrb[0].mxu0
      %v3015 = vadd.f32 0.0, %v3014
      %v3016 = vpop.f32.mrb[0].mxu0
      %v3017 = vpop.f32.mrb[0].mxu0
      %v3018 = vadd.f32 0.0, %v3017
      %v3019 = vpop.f32.mrb[0].mxu0
      %3020 = vmatprep.mubr.bf16.mxu0 0
      %3021 = vmatmul.mubr.bf16.gmra.mrb[0].mxu0 %v2883
      %v3022 = vpop.f32.mrb[0].mxu0
      %v3023 = vadd.f32 0.0, %v3022
      %v3024 = vpop.f32.mrb[0].mxu0
      %v3025 = vpop.f32.mrb[0].mxu0
      %v3026 = vadd.f32 0.0, %v3025
      %v3027 = vpop.f32.mrb[0].mxu0
      %3028 = vmatprep.mubr.bf16.mxu0 0
      %3029 = vmatmul.mubr.bf16.gmra.mrb[0].mxu0 %v2886
      %v3030 = vpop.f32.mrb[0].mxu0
      %v3031 = vadd.f32 0.0, %v3030
      %v3032 = vpop.f32.mrb[0].mxu0
      %v3033 = vpop.f32.mrb[0].mxu0
      %v3034 = vadd.f32 0.0, %v3033
      %v3035 = vpop.f32.mrb[0].mxu0
      %3036 = vmatprep.mubr.bf16.mxu0 0
      %3037 = vmatmul.mubr.bf16.gmra.mrb[0].mxu0 %v2889
      %v3038 = vpop.f32.mrb[0].mxu0
      %v3039 = vadd.f32 0.0, %v3038
      %v3040 = vpop.f32.mrb[0].mxu0
      %v3041 = vpop.f32.mrb[0].mxu0
      %v3042 = vadd.f32 0.0, %v3041
      %v3043 = vpop.f32.mrb[0].mxu0
      %3044 = vmatprep.mubr.bf16.mxu0 0
      %3045 = vmatmul.mubr.bf16.gmra.mrb[0].mxu0 %v2892
      %v3046 = vpop.f32.mrb[0].mxu0
      %v3047 = vadd.f32 0.0, %v3046
      %v3048 = vpop.f32.mrb[0].mxu0
      %v3049 = vpop.f32.mrb[0].mxu0
      %v3050 = vadd.f32 0.0, %v3049
      %v3051 = vpop.f32.mrb[0].mxu0
      %3052 = vmatprep.mubr.bf16.mxu0 0
      %3053 = vmatmul.mubr.bf16.gmra.mrb[0].mxu0 %v2895
      %v3054 = vpop.f32.mrb[0].mxu0
      %v3055 = vadd.f32 0.0, %v3054
      %v3056 = vpop.f32.mrb[0].mxu0
      %v3057 = vpop.f32.mrb[0].mxu0
      %v3058 = vadd.f32 0.0, %v3057
      %v3059 = vpop.f32.mrb[0].mxu0
      %3060 = vdwg.mxu0
      %v3061 = vadd.f32 %v2622, %v2935
      %v3062 = vadd.f32 %v2623, %v2938
      %v3063 = vadd.f32 %v2624, %v2943
      %v3064 = vadd.f32 %v2625, %v2946
      %v3065 = vadd.f32 %v2626, %v2951
      %v3066 = vadd.f32 %v2627, %v2954
      %v3067 = vadd.f32 %v2628, %v2959
      %v3068 = vadd.f32 %v2629, %v2962
      %v3069 = vadd.f32 %v2630, %v2967
      %v3070 = vadd.f32 %v2631, %v2970
      %v3071 = vadd.f32 %v2632, %v2975
      %v3072 = vadd.f32 %v2633, %v2978
      %v3073 = vadd.f32 %v2634, %v2983
      %v3074 = vadd.f32 %v2635, %v2986
      %v3075 = vadd.f32 %v2636, %v2991
      %v3076 = vadd.f32 %v2637, %v2994
      %v3077 = vadd.f32 %v2638, %v2999
      %v3078 = vadd.f32 %v2639, %v3002
      %v3079 = vadd.f32 %v2640, %v3007
      %v3080 = vadd.f32 %v2641, %v3010
      %v3081 = vadd.f32 %v2642, %v3015
      %v3082 = vadd.f32 %v2643, %v3018
      %v3083 = vadd.f32 %v2644, %v3023
      %v3084 = vadd.f32 %v2645, %v3026
      %v3085 = vadd.f32 %v2646, %v3031
      %v3086 = vadd.f32 %v2647, %v3034
      %v3087 = vadd.f32 %v2648, %v3039
      %v3088 = vadd.f32 %v2649, %v3042
      %v3089 = vadd.f32 %v2650, %v3047
      %v3090 = vadd.f32 %v2651, %v3050
      %v3091 = vadd.f32 %v2652, %v3055
      %v3092 = vadd.f32 %v2653, %v3058
      %v3094 = vshrl.u32 %v1399, 16
      %v3096 = vshll.u32 %v1399, 16
      %v3098 = vrot.slane %v3096, 1
      %v3099 = vor.u32 %v3094, %v3098
      %v3101 = vshll.u32 %v1400, 16
      %v3103 = vrot.slane %v3101, 1
      %v3104 = vsel %vm2654, %v3099, %v3103
      %s3105 = scalar_lea.vmem %s1, 14
      %v3106 = vld [vmem:[%s3105] sm:$0x3]
      %v3108 = vsel %vm1424, %v3104, 0
      %v3111 = vsel %vm1473, %v3106, 0
      %3113 = vmatprep.subr.bf16.mxu0 0
      %3114 = vmatpush1.bf16.msra.mxu0 %v3111
      %3115 = vmatprep.subr.bf16.mxu0 0
      %3116 = vmatpush1.bf16.msra.mxu0 0
      %3117 = vmatprep.subr.bf16.mxu0 0
      %3118 = vmatpush1.bf16.msra.mxu0 0
      %3119 = vmatprep.subr.bf16.mxu0 0
      %3120 = vmatpush1.bf16.msra.mxu0 0
      %3121 = vmatprep.subr.bf16.mxu0 0
      %3122 = vmatpush1.bf16.msra.mxu0 0
      %3123 = vmatprep.subr.bf16.mxu0 0
      %3124 = vmatpush1.bf16.msra.mxu0 0
      %3125 = vmatprep.subr.bf16.mxu0 0
      %3126 = vmatpush1.bf16.msra.mxu0 0
      %3127 = vmatprep.subr.bf16.mxu0 0
      %3128 = vmatpush1.bf16.msra.mxu0 0
      %3129 = vmatprep.subr.bf16.mxu0 0
      %3130 = vmatpush1.bf16.msra.mxu0 0
      %3131 = vmatprep.subr.bf16.mxu0 0
      %3132 = vmatpush1.bf16.msra.mxu0 0
      %3133 = vmatprep.subr.bf16.mxu0 0
      %3134 = vmatpush1.bf16.msra.mxu0 0
      %3135 = vmatprep.subr.bf16.mxu0 0
      %3136 = vmatpush1.bf16.msra.mxu0 0
      %3137 = vmatprep.subr.bf16.mxu0 0
      %3138 = vmatpush1.bf16.msra.mxu0 0
      %3139 = vmatprep.subr.bf16.mxu0 0
      %3140 = vmatpush1.bf16.msra.mxu0 0
      %3141 = vmatprep.subr.bf16.mxu0 0
      %3142 = vmatpush1.bf16.msra.mxu0 0
      %3143 = vmatprep.subr.bf16.mxu0 0
      %3144 = vmatpush1.bf16.msra.mxu0 0
      %3145 = vmatprep.mubr.bf16.mxu0 0
      %3146 = vmatmul.mubr.bf16.gmra.mrb[0].mxu0 %v2853
      %v3147 = vpop.f32.mrb[0].mxu0
      %v3148 = vadd.f32 0.0, %v3147
      %v3149 = vpop.f32.mrb[0].mxu0
      %v3150 = vpop.f32.mrb[0].mxu0
      %v3151 = vadd.f32 0.0, %v3150
      %v3152 = vpop.f32.mrb[0].mxu0
      %3153 = vmatprep.mubr.bf16.mxu0 0
      %3154 = vmatmul.mubr.bf16.gmra.mrb[0].mxu0 %v2856
      %v3155 = vpop.f32.mrb[0].mxu0
      %v3156 = vadd.f32 0.0, %v3155
      %v3157 = vpop.f32.mrb[0].mxu0
      %v3158 = vpop.f32.mrb[0].mxu0
      %v3159 = vadd.f32 0.0, %v3158
      %v3160 = vpop.f32.mrb[0].mxu0
      %3161 = vmatprep.mubr.bf16.mxu0 0
      %3162 = vmatmul.mubr.bf16.gmra.mrb[0].mxu0 %v2859
      %v3163 = vpop.f32.mrb[0].mxu0
      %v3164 = vadd.f32 0.0, %v3163
      %v3165 = vpop.f32.mrb[0].mxu0
      %v3166 = vpop.f32.mrb[0].mxu0
      %v3167 = vadd.f32 0.0, %v3166
      %v3168 = vpop.f32.mrb[0].mxu0
      %3169 = vmatprep.mubr.bf16.mxu0 0
      %3170 = vmatmul.mubr.bf16.gmra.mrb[0].mxu0 %v2862
      %v3171 = vpop.f32.mrb[0].mxu0
      %v3172 = vadd.f32 0.0, %v3171
      %v3173 = vpop.f32.mrb[0].mxu0
      %v3174 = vpop.f32.mrb[0].mxu0
      %v3175 = vadd.f32 0.0, %v3174
      %v3176 = vpop.f32.mrb[0].mxu0
      %3177 = vmatprep.mubr.bf16.mxu0 0
      %3178 = vmatmul.mubr.bf16.gmra.mrb[0].mxu0 %v2865
      %v3179 = vpop.f32.mrb[0].mxu0
      %v3180 = vadd.f32 0.0, %v3179
      %v3181 = vpop.f32.mrb[0].mxu0
      %v3182 = vpop.f32.mrb[0].mxu0
      %v3183 = vadd.f32 0.0, %v3182
      %v3184 = vpop.f32.mrb[0].mxu0
      %3185 = vmatprep.mubr.bf16.mxu0 0
      %3186 = vmatmul.mubr.bf16.gmra.mrb[0].mxu0 %v2868
      %v3187 = vpop.f32.mrb[0].mxu0
      %v3188 = vadd.f32 0.0, %v3187
      %v3189 = vpop.f32.mrb[0].mxu0
      %v3190 = vpop.f32.mrb[0].mxu0
      %v3191 = vadd.f32 0.0, %v3190
      %v3192 = vpop.f32.mrb[0].mxu0
      %3193 = vmatprep.mubr.bf16.mxu0 0
      %3194 = vmatmul.mubr.bf16.gmra.mrb[0].mxu0 %v2871
      %v3195 = vpop.f32.mrb[0].mxu0
      %v3196 = vadd.f32 0.0, %v3195
      %v3197 = vpop.f32.mrb[0].mxu0
      %v3198 = vpop.f32.mrb[0].mxu0
      %v3199 = vadd.f32 0.0, %v3198
      %v3200 = vpop.f32.mrb[0].mxu0
      %3201 = vmatprep.mubr.bf16.mxu0 0
      %3202 = vmatmul.mubr.bf16.gmra.mrb[0].mxu0 %v2874
      %v3203 = vpop.f32.mrb[0].mxu0
      %v3204 = vadd.f32 0.0, %v3203
      %v3205 = vpop.f32.mrb[0].mxu0
      %v3206 = vpop.f32.mrb[0].mxu0
      %v3207 = vadd.f32 0.0, %v3206
      %v3208 = vpop.f32.mrb[0].mxu0
      %3209 = vmatprep.mubr.bf16.mxu0 0
      %3210 = vmatmul.mubr.bf16.gmra.mrb[0].mxu0 %v2877
      %v3211 = vpop.f32.mrb[0].mxu0
      %v3212 = vadd.f32 0.0, %v3211
      %v3213 = vpop.f32.mrb[0].mxu0
      %v3214 = vpop.f32.mrb[0].mxu0
      %v3215 = vadd.f32 0.0, %v3214
      %v3216 = vpop.f32.mrb[0].mxu0
      %3217 = vmatprep.mubr.bf16.mxu0 0
      %3218 = vmatmul.mubr.bf16.gmra.mrb[0].mxu0 %v2880
      %v3219 = vpop.f32.mrb[0].mxu0
      %v3220 = vadd.f32 0.0, %v3219
      %v3221 = vpop.f32.mrb[0].mxu0
      %v3222 = vpop.f32.mrb[0].mxu0
      %v3223 = vadd.f32 0.0, %v3222
      %v3224 = vpop.f32.mrb[0].mxu0
      %3225 = vmatprep.mubr.bf16.mxu0 0
      %3226 = vmatmul.mubr.bf16.gmra.mrb[0].mxu0 %v2883
      %v3227 = vpop.f32.mrb[0].mxu0
      %v3228 = vadd.f32 0.0, %v3227
      %v3229 = vpop.f32.mrb[0].mxu0
      %v3230 = vpop.f32.mrb[0].mxu0
      %v3231 = vadd.f32 0.0, %v3230
      %v3232 = vpop.f32.mrb[0].mxu0
      %3233 = vmatprep.mubr.bf16.mxu0 0
      %3234 = vmatmul.mubr.bf16.gmra.mrb[0].mxu0 %v2886
      %v3235 = vpop.f32.mrb[0].mxu0
      %v3236 = vadd.f32 0.0, %v3235
      %v3237 = vpop.f32.mrb[0].mxu0
      %v3238 = vpop.f32.mrb[0].mxu0
      %v3239 = vadd.f32 0.0, %v3238
      %v3240 = vpop.f32.mrb[0].mxu0
      %3241 = vmatprep.mubr.bf16.mxu0 0
      %3242 = vmatmul.mubr.bf16.gmra.mrb[0].mxu0 %v2889
      %v3243 = vpop.f32.mrb[0].mxu0
      %v3244 = vadd.f32 0.0, %v3243
      %v3245 = vpop.f32.mrb[0].mxu0
      %v3246 = vpop.f32.mrb[0].mxu0
      %v3247 = vadd.f32 0.0, %v3246
      %v3248 = vpop.f32.mrb[0].mxu0
      %3249 = vmatprep.mubr.bf16.mxu0 0
      %3250 = vmatmul.mubr.bf16.gmra.mrb[0].mxu0 %v2892
      %v3251 = vpop.f32.mrb[0].mxu0
      %v3252 = vadd.f32 0.0, %v3251
      %v3253 = vpop.f32.mrb[0].mxu0
      %v3254 = vpop.f32.mrb[0].mxu0
      %v3255 = vadd.f32 0.0, %v3254
      %v3256 = vpop.f32.mrb[0].mxu0
      %3257 = vmatprep.mubr.bf16.mxu0 0
      %3258 = vmatmul.mubr.bf16.gmra.mrb[0].mxu0 %v2895
      %v3259 = vpop.f32.mrb[0].mxu0
      %v3260 = vadd.f32 0.0, %v3259
      %v3261 = vpop.f32.mrb[0].mxu0
      %v3262 = vpop.f32.mrb[0].mxu0
      %v3263 = vadd.f32 0.0, %v3262
      %v3264 = vpop.f32.mrb[0].mxu0
      %3265 = vmatprep.mubr.bf16.mxu0 0
      %3266 = vmatmul.mubr.bf16.gmra.mrb[0].mxu0 %v3108
      %v3267 = vpop.f32.mrb[0].mxu0
      %v3268 = vadd.f32 0.0, %v3267
      %v3269 = vpop.f32.mrb[0].mxu0
      %v3270 = vpop.f32.mrb[0].mxu0
      %v3271 = vadd.f32 0.0, %v3270
      %v3272 = vpop.f32.mrb[0].mxu0
      %3273 = vdwg.mxu0
      %v3274 = vadd.f32 %v3061, %v3148
      %v3275 = vadd.f32 %v3062, %v3151
      %v3276 = vadd.f32 %v3063, %v3156
      %v3277 = vadd.f32 %v3064, %v3159
      %v3278 = vadd.f32 %v3065, %v3164
      %v3279 = vadd.f32 %v3066, %v3167
      %v3280 = vadd.f32 %v3067, %v3172
      %v3281 = vadd.f32 %v3068, %v3175
      %v3282 = vadd.f32 %v3069, %v3180
      %v3283 = vadd.f32 %v3070, %v3183
      %v3284 = vadd.f32 %v3071, %v3188
      %v3285 = vadd.f32 %v3072, %v3191
      %v3286 = vadd.f32 %v3073, %v3196
      %v3287 = vadd.f32 %v3074, %v3199
      %v3288 = vadd.f32 %v3075, %v3204
      %v3289 = vadd.f32 %v3076, %v3207
      %v3290 = vadd.f32 %v3077, %v3212
      %v3291 = vadd.f32 %v3078, %v3215
      %v3292 = vadd.f32 %v3079, %v3220
      %v3293 = vadd.f32 %v3080, %v3223
      %v3294 = vadd.f32 %v3081, %v3228
      %v3295 = vadd.f32 %v3082, %v3231
      %v3296 = vadd.f32 %v3083, %v3236
      %v3297 = vadd.f32 %v3084, %v3239
      %v3298 = vadd.f32 %v3085, %v3244
      %v3299 = vadd.f32 %v3086, %v3247
      %v3300 = vadd.f32 %v3087, %v3252
      %v3301 = vadd.f32 %v3088, %v3255
      %v3302 = vadd.f32 %v3089, %v3260
      %v3303 = vadd.f32 %v3090, %v3263
      %v3304 = vadd.f32 %v3091, %v3268
      %v3305 = vadd.f32 %v3092, %v3271
      %v3307 = vshrl.u32 %v1401, 16
      %v3309 = vshll.u32 %v1401, 16
      %v3311 = vrot.slane %v3309, 1
      %v3312 = vor.u32 %v3307, %v3311
      %v3314 = vshll.u32 %v1402, 16
      %v3316 = vrot.slane %v3314, 1
      %v3317 = vsel %vm2654, %v3312, %v3316
      %s3318 = scalar_lea.vmem %s1, 16
      %v3319 = vld [vmem:[%s3318] sm:$0x3]
      %v3321 = vsel %vm1424, %v3317, 0
      %v3324 = vsel %vm1473, %v3319, 0
      %3326 = vmatprep.subr.bf16.mxu0 0
      %3327 = vmatpush1.bf16.msra.mxu0 %v3324
      %3328 = vmatprep.subr.bf16.mxu0 0
      %3329 = vmatpush1.bf16.msra.mxu0 0
      %3330 = vmatprep.subr.bf16.mxu0 0
      %3331 = vmatpush1.bf16.msra.mxu0 0
      %3332 = vmatprep.subr.bf16.mxu0 0
      %3333 = vmatpush1.bf16.msra.mxu0 0
      %3334 = vmatprep.subr.bf16.mxu0 0
      %3335 = vmatpush1.bf16.msra.mxu0 0
      %3336 = vmatprep.subr.bf16.mxu0 0
      %3337 = vmatpush1.bf16.msra.mxu0 0
      %3338 = vmatprep.subr.bf16.mxu0 0
      %3339 = vmatpush1.bf16.msra.mxu0 0
      %3340 = vmatprep.subr.bf16.mxu0 0
      %3341 = vmatpush1.bf16.msra.mxu0 0
      %3342 = vmatprep.subr.bf16.mxu0 0
      %3343 = vmatpush1.bf16.msra.mxu0 0
      %3344 = vmatprep.subr.bf16.mxu0 0
      %3345 = vmatpush1.bf16.msra.mxu0 0
      %3346 = vmatprep.subr.bf16.mxu0 0
      %3347 = vmatpush1.bf16.msra.mxu0 0
      %3348 = vmatprep.subr.bf16.mxu0 0
      %3349 = vmatpush1.bf16.msra.mxu0 0
      %3350 = vmatprep.subr.bf16.mxu0 0
      %3351 = vmatpush1.bf16.msra.mxu0 0
      %3352 = vmatprep.subr.bf16.mxu0 0
      %3353 = vmatpush1.bf16.msra.mxu0 0
      %3354 = vmatprep.subr.bf16.mxu0 0
      %3355 = vmatpush1.bf16.msra.mxu0 0
      %3356 = vmatprep.subr.bf16.mxu0 0
      %3357 = vmatpush1.bf16.msra.mxu0 0
      %3358 = vmatprep.mubr.bf16.mxu0 0
      %3359 = vmatmul.mubr.bf16.gmra.mrb[0].mxu0 %v2856
      %v3360 = vpop.f32.mrb[0].mxu0
      %v3361 = vadd.f32 0.0, %v3360
      %v3362 = vpop.f32.mrb[0].mxu0
      %v3363 = vpop.f32.mrb[0].mxu0
      %v3364 = vadd.f32 0.0, %v3363
      %v3365 = vpop.f32.mrb[0].mxu0
      %3366 = vmatprep.mubr.bf16.mxu0 0
      %3367 = vmatmul.mubr.bf16.gmra.mrb[0].mxu0 %v2859
      %v3368 = vpop.f32.mrb[0].mxu0
      %v3369 = vadd.f32 0.0, %v3368
      %v3370 = vpop.f32.mrb[0].mxu0
      %v3371 = vpop.f32.mrb[0].mxu0
      %v3372 = vadd.f32 0.0, %v3371
      %v3373 = vpop.f32.mrb[0].mxu0
      %3374 = vmatprep.mubr.bf16.mxu0 0
      %3375 = vmatmul.mubr.bf16.gmra.mrb[0].mxu0 %v2862
      %v3376 = vpop.f32.mrb[0].mxu0
      %v3377 = vadd.f32 0.0, %v3376
      %v3378 = vpop.f32.mrb[0].mxu0
      %v3379 = vpop.f32.mrb[0].mxu0
      %v3380 = vadd.f32 0.0, %v3379
      %v3381 = vpop.f32.mrb[0].mxu0
      %3382 = vmatprep.mubr.bf16.mxu0 0
      %3383 = vmatmul.mubr.bf16.gmra.mrb[0].mxu0 %v2865
      %v3384 = vpop.f32.mrb[0].mxu0
      %v3385 = vadd.f32 0.0, %v3384
      %v3386 = vpop.f32.mrb[0].mxu0
      %v3387 = vpop.f32.mrb[0].mxu0
      %v3388 = vadd.f32 0.0, %v3387
      %v3389 = vpop.f32.mrb[0].mxu0
      %3390 = vmatprep.mubr.bf16.mxu0 0
      %3391 = vmatmul.mubr.bf16.gmra.mrb[0].mxu0 %v2868
      %v3392 = vpop.f32.mrb[0].mxu0
      %v3393 = vadd.f32 0.0, %v3392
      %v3394 = vpop.f32.mrb[0].mxu0
      %v3395 = vpop.f32.mrb[0].mxu0
      %v3396 = vadd.f32 0.0, %v3395
      %v3397 = vpop.f32.mrb[0].mxu0
      %3398 = vmatprep.mubr.bf16.mxu0 0
      %3399 = vmatmul.mubr.bf16.gmra.mrb[0].mxu0 %v2871
      %v3400 = vpop.f32.mrb[0].mxu0
      %v3401 = vadd.f32 0.0, %v3400
      %v3402 = vpop.f32.mrb[0].mxu0
      %v3403 = vpop.f32.mrb[0].mxu0
      %v3404 = vadd.f32 0.0, %v3403
      %v3405 = vpop.f32.mrb[0].mxu0
      %3406 = vmatprep.mubr.bf16.mxu0 0
      %3407 = vmatmul.mubr.bf16.gmra.mrb[0].mxu0 %v2874
      %v3408 = vpop.f32.mrb[0].mxu0
      %v3409 = vadd.f32 0.0, %v3408
      %v3410 = vpop.f32.mrb[0].mxu0
      %v3411 = vpop.f32.mrb[0].mxu0
      %v3412 = vadd.f32 0.0, %v3411
      %v3413 = vpop.f32.mrb[0].mxu0
      %3414 = vmatprep.mubr.bf16.mxu0 0
      %3415 = vmatmul.mubr.bf16.gmra.mrb[0].mxu0 %v2877
      %v3416 = vpop.f32.mrb[0].mxu0
      %v3417 = vadd.f32 0.0, %v3416
      %v3418 = vpop.f32.mrb[0].mxu0
      %v3419 = vpop.f32.mrb[0].mxu0
      %v3420 = vadd.f32 0.0, %v3419
      %v3421 = vpop.f32.mrb[0].mxu0
      %3422 = vmatprep.mubr.bf16.mxu0 0
      %3423 = vmatmul.mubr.bf16.gmra.mrb[0].mxu0 %v2880
      %v3424 = vpop.f32.mrb[0].mxu0
      %v3425 = vadd.f32 0.0, %v3424
      %v3426 = vpop.f32.mrb[0].mxu0
      %v3427 = vpop.f32.mrb[0].mxu0
      %v3428 = vadd.f32 0.0, %v3427
      %v3429 = vpop.f32.mrb[0].mxu0
      %3430 = vmatprep.mubr.bf16.mxu0 0
      %3431 = vmatmul.mubr.bf16.gmra.mrb[0].mxu0 %v2883
      %v3432 = vpop.f32.mrb[0].mxu0
      %v3433 = vadd.f32 0.0, %v3432
      %v3434 = vpop.f32.mrb[0].mxu0
      %v3435 = vpop.f32.mrb[0].mxu0
      %v3436 = vadd.f32 0.0, %v3435
      %v3437 = vpop.f32.mrb[0].mxu0
      %3438 = vmatprep.mubr.bf16.mxu0 0
      %3439 = vmatmul.mubr.bf16.gmra.mrb[0].mxu0 %v2886
      %v3440 = vpop.f32.mrb[0].mxu0
      %v3441 = vadd.f32 0.0, %v3440
      %v3442 = vpop.f32.mrb[0].mxu0
      %v3443 = vpop.f32.mrb[0].mxu0
      %v3444 = vadd.f32 0.0, %v3443
      %v3445 = vpop.f32.mrb[0].mxu0
      %3446 = vmatprep.mubr.bf16.mxu0 0
      %3447 = vmatmul.mubr.bf16.gmra.mrb[0].mxu0 %v2889
      %v3448 = vpop.f32.mrb[0].mxu0
      %v3449 = vadd.f32 0.0, %v3448
      %v3450 = vpop.f32.mrb[0].mxu0
      %v3451 = vpop.f32.mrb[0].mxu0
      %v3452 = vadd.f32 0.0, %v3451
      %v3453 = vpop.f32.mrb[0].mxu0
      %3454 = vmatprep.mubr.bf16.mxu0 0
      %3455 = vmatmul.mubr.bf16.gmra.mrb[0].mxu0 %v2892
      %v3456 = vpop.f32.mrb[0].mxu0
      %v3457 = vadd.f32 0.0, %v3456
      %v3458 = vpop.f32.mrb[0].mxu0
      %v3459 = vpop.f32.mrb[0].mxu0
      %v3460 = vadd.f32 0.0, %v3459
      %v3461 = vpop.f32.mrb[0].mxu0
      %3462 = vmatprep.mubr.bf16.mxu0 0
      %3463 = vmatmul.mubr.bf16.gmra.mrb[0].mxu0 %v2895
      %v3464 = vpop.f32.mrb[0].mxu0
      %v3465 = vadd.f32 0.0, %v3464
      %v3466 = vpop.f32.mrb[0].mxu0
      %v3467 = vpop.f32.mrb[0].mxu0
      %v3468 = vadd.f32 0.0, %v3467
      %v3469 = vpop.f32.mrb[0].mxu0
      %3470 = vmatprep.mubr.bf16.mxu0 0
      %3471 = vmatmul.mubr.bf16.gmra.mrb[0].mxu0 %v3108
      %v3472 = vpop.f32.mrb[0].mxu0
      %v3473 = vadd.f32 0.0, %v3472
      %v3474 = vpop.f32.mrb[0].mxu0
      %v3475 = vpop.f32.mrb[0].mxu0
      %v3476 = vadd.f32 0.0, %v3475
      %v3477 = vpop.f32.mrb[0].mxu0
      %3478 = vmatprep.mubr.bf16.mxu0 0
      %3479 = vmatmul.mubr.bf16.gmra.mrb[0].mxu0 %v3321
      %v3480 = vpop.f32.mrb[0].mxu0
      %v3481 = vadd.f32 0.0, %v3480
      %v3482 = vpop.f32.mrb[0].mxu0
      %v3483 = vpop.f32.mrb[0].mxu0
      %v3484 = vadd.f32 0.0, %v3483
      %v3485 = vpop.f32.mrb[0].mxu0
      %3486 = vdwg.mxu0
      %v3487 = vadd.f32 %v3274, %v3361
      %v3488 = vadd.f32 %v3275, %v3364
      %v3489 = vadd.f32 %v3276, %v3369
      %v3490 = vadd.f32 %v3277, %v3372
      %v3491 = vadd.f32 %v3278, %v3377
      %v3492 = vadd.f32 %v3279, %v3380
      %v3493 = vadd.f32 %v3280, %v3385
      %v3494 = vadd.f32 %v3281, %v3388
      %v3495 = vadd.f32 %v3282, %v3393
      %v3496 = vadd.f32 %v3283, %v3396
      %v3497 = vadd.f32 %v3284, %v3401
      %v3498 = vadd.f32 %v3285, %v3404
      %v3499 = vadd.f32 %v3286, %v3409
      %v3500 = vadd.f32 %v3287, %v3412
      %v3501 = vadd.f32 %v3288, %v3417
      %v3502 = vadd.f32 %v3289, %v3420
      %v3503 = vadd.f32 %v3290, %v3425
      %v3504 = vadd.f32 %v3291, %v3428
      %v3505 = vadd.f32 %v3292, %v3433
      %v3506 = vadd.f32 %v3293, %v3436
      %v3507 = vadd.f32 %v3294, %v3441
      %v3508 = vadd.f32 %v3295, %v3444
      %v3509 = vadd.f32 %v3296, %v3449
      %v3510 = vadd.f32 %v3297, %v3452
      %v3511 = vadd.f32 %v3298, %v3457
      %v3512 = vadd.f32 %v3299, %v3460
      %v3513 = vadd.f32 %v3300, %v3465
      %v3514 = vadd.f32 %v3301, %v3468
      %v3515 = vadd.f32 %v3302, %v3473
      %v3516 = vadd.f32 %v3303, %v3476
      %v3517 = vadd.f32 %v3304, %v3481
      %v3518 = vadd.f32 %v3305, %v3484
      %s3519 = scalar_lea.vmem %s1, 18
      %v3520 = vld [vmem:[%s3519] sm:$0x3]
      %v3522 = vsel %vm1424, %v1403, 0
      %v3525 = vsel %vm1424, %v1404, 0
      %v3528 = vsel %vm1424, %v1405, 0
      %v3531 = vsel %vm1424, %v1406, 0
      %v3534 = vsel %vm1424, %v1407, 0
      %v3537 = vsel %vm1424, %v1408, 0
      %v3540 = vsel %vm1424, %v1409, 0
      %v3543 = vsel %vm1424, %v1410, 0
      %v3546 = vsel %vm1424, %v1411, 0
      %v3549 = vsel %vm1424, %v1412, 0
      %v3552 = vsel %vm1424, %v1413, 0
      %v3555 = vsel %vm1424, %v1414, 0
      %v3558 = vsel %vm1424, %v1415, 0
      %v3561 = vsel %vm1424, %v1416, 0
      %v3564 = vsel %vm1424, %v1417, 0
      %v3567 = vsel %vm1424, %v1418, 0
      %v3570 = vsel %vm1473, %v3520, 0
      %3572 = vmatprep.subr.bf16.mxu0 0
      %3573 = vmatpush1.bf16.msra.mxu0 %v3570
      %3574 = vmatprep.subr.bf16.mxu0 0
      %3575 = vmatpush1.bf16.msra.mxu0 0
      %3576 = vmatprep.subr.bf16.mxu0 0
      %3577 = vmatpush1.bf16.msra.mxu0 0
      %3578 = vmatprep.subr.bf16.mxu0 0
      %3579 = vmatpush1.bf16.msra.mxu0 0
      %3580 = vmatprep.subr.bf16.mxu0 0
      %3581 = vmatpush1.bf16.msra.mxu0 0
      %3582 = vmatprep.subr.bf16.mxu0 0
      %3583 = vmatpush1.bf16.msra.mxu0 0
      %3584 = vmatprep.subr.bf16.mxu0 0
      %3585 = vmatpush1.bf16.msra.mxu0 0
      %3586 = vmatprep.subr.bf16.mxu0 0
      %3587 = vmatpush1.bf16.msra.mxu0 0
      %3588 = vmatprep.subr.bf16.mxu0 0
      %3589 = vmatpush1.bf16.msra.mxu0 0
      %3590 = vmatprep.subr.bf16.mxu0 0
      %3591 = vmatpush1.bf16.msra.mxu0 0
      %3592 = vmatprep.subr.bf16.mxu0 0
      %3593 = vmatpush1.bf16.msra.mxu0 0
      %3594 = vmatprep.subr.bf16.mxu0 0
      %3595 = vmatpush1.bf16.msra.mxu0 0
      %3596 = vmatprep.subr.bf16.mxu0 0
      %3597 = vmatpush1.bf16.msra.mxu0 0
      %3598 = vmatprep.subr.bf16.mxu0 0
      %3599 = vmatpush1.bf16.msra.mxu0 0
      %3600 = vmatprep.subr.bf16.mxu0 0
      %3601 = vmatpush1.bf16.msra.mxu0 0
      %3602 = vmatprep.subr.bf16.mxu0 0
      %3603 = vmatpush1.bf16.msra.mxu0 0
      %3604 = vmatprep.mubr.bf16.mxu0 0
      %3605 = vmatmul.mubr.bf16.gmra.mrb[0].mxu0 %v3522
      %v3606 = vpop.f32.mrb[0].mxu0
      %v3607 = vadd.f32 0.0, %v3606
      %v3608 = vpop.f32.mrb[0].mxu0
      %v3609 = vpop.f32.mrb[0].mxu0
      %v3610 = vadd.f32 0.0, %v3609
      %v3611 = vpop.f32.mrb[0].mxu0
      %3612 = vmatprep.mubr.bf16.mxu0 0
      %3613 = vmatmul.mubr.bf16.gmra.mrb[0].mxu0 %v3525
      %v3614 = vpop.f32.mrb[0].mxu0
      %v3615 = vadd.f32 0.0, %v3614
      %v3616 = vpop.f32.mrb[0].mxu0
      %v3617 = vpop.f32.mrb[0].mxu0
      %v3618 = vadd.f32 0.0, %v3617
      %v3619 = vpop.f32.mrb[0].mxu0
      %3620 = vmatprep.mubr.bf16.mxu0 0
      %3621 = vmatmul.mubr.bf16.gmra.mrb[0].mxu0 %v3528
      %v3622 = vpop.f32.mrb[0].mxu0
      %v3623 = vadd.f32 0.0, %v3622
      %v3624 = vpop.f32.mrb[0].mxu0
      %v3625 = vpop.f32.mrb[0].mxu0
      %v3626 = vadd.f32 0.0, %v3625
      %v3627 = vpop.f32.mrb[0].mxu0
      %3628 = vmatprep.mubr.bf16.mxu0 0
      %3629 = vmatmul.mubr.bf16.gmra.mrb[0].mxu0 %v3531
      %v3630 = vpop.f32.mrb[0].mxu0
      %v3631 = vadd.f32 0.0, %v3630
      %v3632 = vpop.f32.mrb[0].mxu0
      %v3633 = vpop.f32.mrb[0].mxu0
      %v3634 = vadd.f32 0.0, %v3633
      %v3635 = vpop.f32.mrb[0].mxu0
      %3636 = vmatprep.mubr.bf16.mxu0 0
      %3637 = vmatmul.mubr.bf16.gmra.mrb[0].mxu0 %v3534
      %v3638 = vpop.f32.mrb[0].mxu0
      %v3639 = vadd.f32 0.0, %v3638
      %v3640 = vpop.f32.mrb[0].mxu0
      %v3641 = vpop.f32.mrb[0].mxu0
      %v3642 = vadd.f32 0.0, %v3641
      %v3643 = vpop.f32.mrb[0].mxu0
      %3644 = vmatprep.mubr.bf16.mxu0 0
      %3645 = vmatmul.mubr.bf16.gmra.mrb[0].mxu0 %v3537
      %v3646 = vpop.f32.mrb[0].mxu0
      %v3647 = vadd.f32 0.0, %v3646
      %v3648 = vpop.f32.mrb[0].mxu0
      %v3649 = vpop.f32.mrb[0].mxu0
      %v3650 = vadd.f32 0.0, %v3649
      %v3651 = vpop.f32.mrb[0].mxu0
      %3652 = vmatprep.mubr.bf16.mxu0 0
      %3653 = vmatmul.mubr.bf16.gmra.mrb[0].mxu0 %v3540
      %v3654 = vpop.f32.mrb[0].mxu0
      %v3655 = vadd.f32 0.0, %v3654
      %v3656 = vpop.f32.mrb[0].mxu0
      %v3657 = vpop.f32.mrb[0].mxu0
      %v3658 = vadd.f32 0.0, %v3657
      %v3659 = vpop.f32.mrb[0].mxu0
      %3660 = vmatprep.mubr.bf16.mxu0 0
      %3661 = vmatmul.mubr.bf16.gmra.mrb[0].mxu0 %v3543
      %v3662 = vpop.f32.mrb[0].mxu0
      %v3663 = vadd.f32 0.0, %v3662
      %v3664 = vpop.f32.mrb[0].mxu0
      %v3665 = vpop.f32.mrb[0].mxu0
      %v3666 = vadd.f32 0.0, %v3665
      %v3667 = vpop.f32.mrb[0].mxu0
      %3668 = vmatprep.mubr.bf16.mxu0 0
      %3669 = vmatmul.mubr.bf16.gmra.mrb[0].mxu0 %v3546
      %v3670 = vpop.f32.mrb[0].mxu0
      %v3671 = vadd.f32 0.0, %v3670
      %v3672 = vpop.f32.mrb[0].mxu0
      %v3673 = vpop.f32.mrb[0].mxu0
      %v3674 = vadd.f32 0.0, %v3673
      %v3675 = vpop.f32.mrb[0].mxu0
      %3676 = vmatprep.mubr.bf16.mxu0 0
      %3677 = vmatmul.mubr.bf16.gmra.mrb[0].mxu0 %v3549
      %v3678 = vpop.f32.mrb[0].mxu0
      %v3679 = vadd.f32 0.0, %v3678
      %v3680 = vpop.f32.mrb[0].mxu0
      %v3681 = vpop.f32.mrb[0].mxu0
      %v3682 = vadd.f32 0.0, %v3681
      %v3683 = vpop.f32.mrb[0].mxu0
      %3684 = vmatprep.mubr.bf16.mxu0 0
      %3685 = vmatmul.mubr.bf16.gmra.mrb[0].mxu0 %v3552
      %v3686 = vpop.f32.mrb[0].mxu0
      %v3687 = vadd.f32 0.0, %v3686
      %v3688 = vpop.f32.mrb[0].mxu0
      %v3689 = vpop.f32.mrb[0].mxu0
      %v3690 = vadd.f32 0.0, %v3689
      %v3691 = vpop.f32.mrb[0].mxu0
      %3692 = vmatprep.mubr.bf16.mxu0 0
      %3693 = vmatmul.mubr.bf16.gmra.mrb[0].mxu0 %v3555
      %v3694 = vpop.f32.mrb[0].mxu0
      %v3695 = vadd.f32 0.0, %v3694
      %v3696 = vpop.f32.mrb[0].mxu0
      %v3697 = vpop.f32.mrb[0].mxu0
      %v3698 = vadd.f32 0.0, %v3697
      %v3699 = vpop.f32.mrb[0].mxu0
      %3700 = vmatprep.mubr.bf16.mxu0 0
      %3701 = vmatmul.mubr.bf16.gmra.mrb[0].mxu0 %v3558
      %v3702 = vpop.f32.mrb[0].mxu0
      %v3703 = vadd.f32 0.0, %v3702
      %v3704 = vpop.f32.mrb[0].mxu0
      %v3705 = vpop.f32.mrb[0].mxu0
      %v3706 = vadd.f32 0.0, %v3705
      %v3707 = vpop.f32.mrb[0].mxu0
      %3708 = vmatprep.mubr.bf16.mxu0 0
      %3709 = vmatmul.mubr.bf16.gmra.mrb[0].mxu0 %v3561
      %v3710 = vpop.f32.mrb[0].mxu0
      %v3711 = vadd.f32 0.0, %v3710
      %v3712 = vpop.f32.mrb[0].mxu0
      %v3713 = vpop.f32.mrb[0].mxu0
      %v3714 = vadd.f32 0.0, %v3713
      %v3715 = vpop.f32.mrb[0].mxu0
      %3716 = vmatprep.mubr.bf16.mxu0 0
      %3717 = vmatmul.mubr.bf16.gmra.mrb[0].mxu0 %v3564
      %v3718 = vpop.f32.mrb[0].mxu0
      %v3719 = vadd.f32 0.0, %v3718
      %v3720 = vpop.f32.mrb[0].mxu0
      %v3721 = vpop.f32.mrb[0].mxu0
      %v3722 = vadd.f32 0.0, %v3721
      %v3723 = vpop.f32.mrb[0].mxu0
      %3724 = vmatprep.mubr.bf16.mxu0 0
      %3725 = vmatmul.mubr.bf16.gmra.mrb[0].mxu0 %v3567
      %v3726 = vpop.f32.mrb[0].mxu0
      %v3727 = vadd.f32 0.0, %v3726
      %v3728 = vpop.f32.mrb[0].mxu0
      %v3729 = vpop.f32.mrb[0].mxu0
      %v3730 = vadd.f32 0.0, %v3729
      %v3731 = vpop.f32.mrb[0].mxu0
      %3732 = vdwg.mxu0
      %v3733 = vadd.f32 %v3487, %v3607
      %v3734 = vadd.f32 %v3488, %v3610
      %v3735 = vadd.f32 %v3489, %v3615
      %v3736 = vadd.f32 %v3490, %v3618
      %v3737 = vadd.f32 %v3491, %v3623
      %v3738 = vadd.f32 %v3492, %v3626
      %v3739 = vadd.f32 %v3493, %v3631
      %v3740 = vadd.f32 %v3494, %v3634
      %v3741 = vadd.f32 %v3495, %v3639
      %v3742 = vadd.f32 %v3496, %v3642
      %v3743 = vadd.f32 %v3497, %v3647
      %v3744 = vadd.f32 %v3498, %v3650
      %v3745 = vadd.f32 %v3499, %v3655
      %v3746 = vadd.f32 %v3500, %v3658
      %v3747 = vadd.f32 %v3501, %v3663
      %v3748 = vadd.f32 %v3502, %v3666
      %v3749 = vadd.f32 %v3503, %v3671
      %v3750 = vadd.f32 %v3504, %v3674
      %v3751 = vadd.f32 %v3505, %v3679
      %v3752 = vadd.f32 %v3506, %v3682
      %v3753 = vadd.f32 %v3507, %v3687
      %v3754 = vadd.f32 %v3508, %v3690
      %v3755 = vadd.f32 %v3509, %v3695
      %v3756 = vadd.f32 %v3510, %v3698
      %v3757 = vadd.f32 %v3511, %v3703
      %v3758 = vadd.f32 %v3512, %v3706
      %v3759 = vadd.f32 %v3513, %v3711
      %v3760 = vadd.f32 %v3514, %v3714
      %v3761 = vadd.f32 %v3515, %v3719
      %v3762 = vadd.f32 %v3516, %v3722
      %v3763 = vadd.f32 %v3517, %v3727
      %v3764 = vadd.f32 %v3518, %v3730
      %s3765 = scalar_lea.vmem %s1, 20
      %v3766 = vld [vmem:[%s3765] sm:$0x3]
      %v3768 = vsel %vm1424, %v1419, 0
      %v3771 = vsel %vm1473, %v3766, 0
      %3773 = vmatprep.subr.bf16.mxu0 0
      %3774 = vmatpush1.bf16.msra.mxu0 %v3771
      %3775 = vmatprep.subr.bf16.mxu0 0
      %3776 = vmatpush1.bf16.msra.mxu0 0
      %3777 = vmatprep.subr.bf16.mxu0 0
      %3778 = vmatpush1.bf16.msra.mxu0 0
      %3779 = vmatprep.subr.bf16.mxu0 0
      %3780 = vmatpush1.bf16.msra.mxu0 0
      %3781 = vmatprep.subr.bf16.mxu0 0
      %3782 = vmatpush1.bf16.msra.mxu0 0
      %3783 = vmatprep.subr.bf16.mxu0 0
      %3784 = vmatpush1.bf16.msra.mxu0 0
      %3785 = vmatprep.subr.bf16.mxu0 0
      %3786 = vmatpush1.bf16.msra.mxu0 0
      %3787 = vmatprep.subr.bf16.mxu0 0
      %3788 = vmatpush1.bf16.msra.mxu0 0
      %3789 = vmatprep.subr.bf16.mxu0 0
      %3790 = vmatpush1.bf16.msra.mxu0 0
      %3791 = vmatprep.subr.bf16.mxu0 0
      %3792 = vmatpush1.bf16.msra.mxu0 0
      %3793 = vmatprep.subr.bf16.mxu0 0
      %3794 = vmatpush1.bf16.msra.mxu0 0
      %3795 = vmatprep.subr.bf16.mxu0 0
      %3796 = vmatpush1.bf16.msra.mxu0 0
      %3797 = vmatprep.subr.bf16.mxu0 0
      %3798 = vmatpush1.bf16.msra.mxu0 0
      %3799 = vmatprep.subr.bf16.mxu0 0
      %3800 = vmatpush1.bf16.msra.mxu0 0
      %3801 = vmatprep.subr.bf16.mxu0 0
      %3802 = vmatpush1.bf16.msra.mxu0 0
      %3803 = vmatprep.subr.bf16.mxu0 0
      %3804 = vmatpush1.bf16.msra.mxu0 0
      %3805 = vmatprep.mubr.bf16.mxu0 0
      %3806 = vmatmul.mubr.bf16.gmra.mrb[0].mxu0 %v3525
      %v3807 = vpop.f32.mrb[0].mxu0
      %v3808 = vadd.f32 0.0, %v3807
      %v3809 = vpop.f32.mrb[0].mxu0
      %v3810 = vpop.f32.mrb[0].mxu0
      %v3811 = vadd.f32 0.0, %v3810
      %v3812 = vpop.f32.mrb[0].mxu0
      %3813 = vmatprep.mubr.bf16.mxu0 0
      %3814 = vmatmul.mubr.bf16.gmra.mrb[0].mxu0 %v3528
      %v3815 = vpop.f32.mrb[0].mxu0
      %v3816 = vadd.f32 0.0, %v3815
      %v3817 = vpop.f32.mrb[0].mxu0
      %v3818 = vpop.f32.mrb[0].mxu0
      %v3819 = vadd.f32 0.0, %v3818
      %v3820 = vpop.f32.mrb[0].mxu0
      %3821 = vmatprep.mubr.bf16.mxu0 0
      %3822 = vmatmul.mubr.bf16.gmra.mrb[0].mxu0 %v3531
      %v3823 = vpop.f32.mrb[0].mxu0
      %v3824 = vadd.f32 0.0, %v3823
      %v3825 = vpop.f32.mrb[0].mxu0
      %v3826 = vpop.f32.mrb[0].mxu0
      %v3827 = vadd.f32 0.0, %v3826
      %v3828 = vpop.f32.mrb[0].mxu0
      %3829 = vmatprep.mubr.bf16.mxu0 0
      %3830 = vmatmul.mubr.bf16.gmra.mrb[0].mxu0 %v3534
      %v3831 = vpop.f32.mrb[0].mxu0
      %v3832 = vadd.f32 0.0, %v3831
      %v3833 = vpop.f32.mrb[0].mxu0
      %v3834 = vpop.f32.mrb[0].mxu0
      %v3835 = vadd.f32 0.0, %v3834
      %v3836 = vpop.f32.mrb[0].mxu0
      %3837 = vmatprep.mubr.bf16.mxu0 0
      %3838 = vmatmul.mubr.bf16.gmra.mrb[0].mxu0 %v3537
      %v3839 = vpop.f32.mrb[0].mxu0
      %v3840 = vadd.f32 0.0, %v3839
      %v3841 = vpop.f32.mrb[0].mxu0
      %v3842 = vpop.f32.mrb[0].mxu0
      %v3843 = vadd.f32 0.0, %v3842
      %v3844 = vpop.f32.mrb[0].mxu0
      %3845 = vmatprep.mubr.bf16.mxu0 0
      %3846 = vmatmul.mubr.bf16.gmra.mrb[0].mxu0 %v3540
      %v3847 = vpop.f32.mrb[0].mxu0
      %v3848 = vadd.f32 0.0, %v3847
      %v3849 = vpop.f32.mrb[0].mxu0
      %v3850 = vpop.f32.mrb[0].mxu0
      %v3851 = vadd.f32 0.0, %v3850
      %v3852 = vpop.f32.mrb[0].mxu0
      %3853 = vmatprep.mubr.bf16.mxu0 0
      %3854 = vmatmul.mubr.bf16.gmra.mrb[0].mxu0 %v3543
      %v3855 = vpop.f32.mrb[0].mxu0
      %v3856 = vadd.f32 0.0, %v3855
      %v3857 = vpop.f32.mrb[0].mxu0
      %v3858 = vpop.f32.mrb[0].mxu0
      %v3859 = vadd.f32 0.0, %v3858
      %v3860 = vpop.f32.mrb[0].mxu0
      %3861 = vmatprep.mubr.bf16.mxu0 0
      %3862 = vmatmul.mubr.bf16.gmra.mrb[0].mxu0 %v3546
      %v3863 = vpop.f32.mrb[0].mxu0
      %v3864 = vadd.f32 0.0, %v3863
      %v3865 = vpop.f32.mrb[0].mxu0
      %v3866 = vpop.f32.mrb[0].mxu0
      %v3867 = vadd.f32 0.0, %v3866
      %v3868 = vpop.f32.mrb[0].mxu0
      %3869 = vmatprep.mubr.bf16.mxu0 0
      %3870 = vmatmul.mubr.bf16.gmra.mrb[0].mxu0 %v3549
      %v3871 = vpop.f32.mrb[0].mxu0
      %v3872 = vadd.f32 0.0, %v3871
      %v3873 = vpop.f32.mrb[0].mxu0
      %v3874 = vpop.f32.mrb[0].mxu0
      %v3875 = vadd.f32 0.0, %v3874
      %v3876 = vpop.f32.mrb[0].mxu0
      %3877 = vmatprep.mubr.bf16.mxu0 0
      %3878 = vmatmul.mubr.bf16.gmra.mrb[0].mxu0 %v3552
      %v3879 = vpop.f32.mrb[0].mxu0
      %v3880 = vadd.f32 0.0, %v3879
      %v3881 = vpop.f32.mrb[0].mxu0
      %v3882 = vpop.f32.mrb[0].mxu0
      %v3883 = vadd.f32 0.0, %v3882
      %v3884 = vpop.f32.mrb[0].mxu0
      %3885 = vmatprep.mubr.bf16.mxu0 0
      %3886 = vmatmul.mubr.bf16.gmra.mrb[0].mxu0 %v3555
      %v3887 = vpop.f32.mrb[0].mxu0
      %v3888 = vadd.f32 0.0, %v3887
      %v3889 = vpop.f32.mrb[0].mxu0
      %v3890 = vpop.f32.mrb[0].mxu0
      %v3891 = vadd.f32 0.0, %v3890
      %v3892 = vpop.f32.mrb[0].mxu0
      %3893 = vmatprep.mubr.bf16.mxu0 0
      %3894 = vmatmul.mubr.bf16.gmra.mrb[0].mxu0 %v3558
      %v3895 = vpop.f32.mrb[0].mxu0
      %v3896 = vadd.f32 0.0, %v3895
      %v3897 = vpop.f32.mrb[0].mxu0
      %v3898 = vpop.f32.mrb[0].mxu0
      %v3899 = vadd.f32 0.0, %v3898
      %v3900 = vpop.f32.mrb[0].mxu0
      %3901 = vmatprep.mubr.bf16.mxu0 0
      %3902 = vmatmul.mubr.bf16.gmra.mrb[0].mxu0 %v3561
      %v3903 = vpop.f32.mrb[0].mxu0
      %v3904 = vadd.f32 0.0, %v3903
      %v3905 = vpop.f32.mrb[0].mxu0
      %v3906 = vpop.f32.mrb[0].mxu0
      %v3907 = vadd.f32 0.0, %v3906
      %v3908 = vpop.f32.mrb[0].mxu0
      %3909 = vmatprep.mubr.bf16.mxu0 0
      %3910 = vmatmul.mubr.bf16.gmra.mrb[0].mxu0 %v3564
      %v3911 = vpop.f32.mrb[0].mxu0
      %v3912 = vadd.f32 0.0, %v3911
      %v3913 = vpop.f32.mrb[0].mxu0
      %v3914 = vpop.f32.mrb[0].mxu0
      %v3915 = vadd.f32 0.0, %v3914
      %v3916 = vpop.f32.mrb[0].mxu0
      %3917 = vmatprep.mubr.bf16.mxu0 0
      %3918 = vmatmul.mubr.bf16.gmra.mrb[0].mxu0 %v3567
      %v3919 = vpop.f32.mrb[0].mxu0
      %v3920 = vadd.f32 0.0, %v3919
      %v3921 = vpop.f32.mrb[0].mxu0
      %v3922 = vpop.f32.mrb[0].mxu0
      %v3923 = vadd.f32 0.0, %v3922
      %v3924 = vpop.f32.mrb[0].mxu0
      %3925 = vmatprep.mubr.bf16.mxu0 0
      %3926 = vmatmul.mubr.bf16.gmra.mrb[0].mxu0 %v3768
      %v3927 = vpop.f32.mrb[0].mxu0
      %v3928 = vadd.f32 0.0, %v3927
      %v3929 = vpop.f32.mrb[0].mxu0
      %v3930 = vpop.f32.mrb[0].mxu0
      %v3931 = vadd.f32 0.0, %v3930
      %v3932 = vpop.f32.mrb[0].mxu0
      %3933 = vdwg.mxu0
      %v3934 = vadd.f32 %v3733, %v3808
      %v3935 = vadd.f32 %v3734, %v3811
      %v3936 = vadd.f32 %v3735, %v3816
      %v3937 = vadd.f32 %v3736, %v3819
      %v3938 = vadd.f32 %v3737, %v3824
      %v3939 = vadd.f32 %v3738, %v3827
      %v3940 = vadd.f32 %v3739, %v3832
      %v3941 = vadd.f32 %v3740, %v3835
      %v3942 = vadd.f32 %v3741, %v3840
      %v3943 = vadd.f32 %v3742, %v3843
      %v3944 = vadd.f32 %v3743, %v3848
      %v3945 = vadd.f32 %v3744, %v3851
      %v3946 = vadd.f32 %v3745, %v3856
      %v3947 = vadd.f32 %v3746, %v3859
      %v3948 = vadd.f32 %v3747, %v3864
      %v3949 = vadd.f32 %v3748, %v3867
      %v3950 = vadd.f32 %v3749, %v3872
      %v3951 = vadd.f32 %v3750, %v3875
      %v3952 = vadd.f32 %v3751, %v3880
      %v3953 = vadd.f32 %v3752, %v3883
      %v3954 = vadd.f32 %v3753, %v3888
      %v3955 = vadd.f32 %v3754, %v3891
      %v3956 = vadd.f32 %v3755, %v3896
      %v3957 = vadd.f32 %v3756, %v3899
      %v3958 = vadd.f32 %v3757, %v3904
      %v3959 = vadd.f32 %v3758, %v3907
      %v3960 = vadd.f32 %v3759, %v3912
      %v3961 = vadd.f32 %v3760, %v3915
      %v3962 = vadd.f32 %v3761, %v3920
      %v3963 = vadd.f32 %v3762, %v3923
      %v3964 = vadd.f32 %v3763, %v3928
      %v3965 = vadd.f32 %v3764, %v3931
      %s3966 = scalar_lea.vmem %s1, 22
      %v3967 = vld [vmem:[%s3966] sm:$0x3]
      %v3969 = vsel %vm1424, %v1420, 0
      %v3972 = vsel %vm1473, %v3967, 0
      %3974 = vmatprep.subr.bf16.mxu0 0
      %3975 = vmatpush1.bf16.msra.mxu0 %v3972
      %3976 = vmatprep.subr.bf16.mxu0 0
      %3977 = vmatpush1.bf16.msra.mxu0 0
      %3978 = vmatprep.subr.bf16.mxu0 0
      %3979 = vmatpush1.bf16.msra.mxu0 0
      %3980 = vmatprep.subr.bf16.mxu0 0
      %3981 = vmatpush1.bf16.msra.mxu0 0
      %3982 = vmatprep.subr.bf16.mxu0 0
      %3983 = vmatpush1.bf16.msra.mxu0 0
      %3984 = vmatprep.subr.bf16.mxu0 0
      %3985 = vmatpush1.bf16.msra.mxu0 0
      %3986 = vmatprep.subr.bf16.mxu0 0
      %3987 = vmatpush1.bf16.msra.mxu0 0
      %3988 = vmatprep.subr.bf16.mxu0 0
      %3989 = vmatpush1.bf16.msra.mxu0 0
      %3990 = vmatprep.subr.bf16.mxu0 0
      %3991 = vmatpush1.bf16.msra.mxu0 0
      %3992 = vmatprep.subr.bf16.mxu0 0
      %3993 = vmatpush1.bf16.msra.mxu0 0
      %3994 = vmatprep.subr.bf16.mxu0 0
      %3995 = vmatpush1.bf16.msra.mxu0 0
      %3996 = vmatprep.subr.bf16.mxu0 0
      %3997 = vmatpush1.bf16.msra.mxu0 0
      %3998 = vmatprep.subr.bf16.mxu0 0
      %3999 = vmatpush1.bf16.msra.mxu0 0
      %4000 = vmatprep.subr.bf16.mxu0 0
      %4001 = vmatpush1.bf16.msra.mxu0 0
      %4002 = vmatprep.subr.bf16.mxu0 0
      %4003 = vmatpush1.bf16.msra.mxu0 0
      %4004 = vmatprep.subr.bf16.mxu0 0
      %4005 = vmatpush1.bf16.msra.mxu0 0
      %4006 = vmatprep.mubr.bf16.mxu0 0
      %4007 = vmatmul.mubr.bf16.gmra.mrb[0].mxu0 %v3528
      %v4008 = vpop.f32.mrb[0].mxu0
      %v4009 = vadd.f32 0.0, %v4008
      %v4010 = vpop.f32.mrb[0].mxu0
      %v4011 = vpop.f32.mrb[0].mxu0
      %v4012 = vadd.f32 0.0, %v4011
      %v4013 = vpop.f32.mrb[0].mxu0
      %4014 = vmatprep.mubr.bf16.mxu0 0
      %4015 = vmatmul.mubr.bf16.gmra.mrb[0].mxu0 %v3531
      %v4016 = vpop.f32.mrb[0].mxu0
      %v4017 = vadd.f32 0.0, %v4016
      %v4018 = vpop.f32.mrb[0].mxu0
      %v4019 = vpop.f32.mrb[0].mxu0
      %v4020 = vadd.f32 0.0, %v4019
      %v4021 = vpop.f32.mrb[0].mxu0
      %4022 = vmatprep.mubr.bf16.mxu0 0
      %4023 = vmatmul.mubr.bf16.gmra.mrb[0].mxu0 %v3534
      %v4024 = vpop.f32.mrb[0].mxu0
      %v4025 = vadd.f32 0.0, %v4024
      %v4026 = vpop.f32.mrb[0].mxu0
      %v4027 = vpop.f32.mrb[0].mxu0
      %v4028 = vadd.f32 0.0, %v4027
      %v4029 = vpop.f32.mrb[0].mxu0
      %4030 = vmatprep.mubr.bf16.mxu0 0
      %4031 = vmatmul.mubr.bf16.gmra.mrb[0].mxu0 %v3537
      %v4032 = vpop.f32.mrb[0].mxu0
      %v4033 = vadd.f32 0.0, %v4032
      %v4034 = vpop.f32.mrb[0].mxu0
      %v4035 = vpop.f32.mrb[0].mxu0
      %v4036 = vadd.f32 0.0, %v4035
      %v4037 = vpop.f32.mrb[0].mxu0
      %4038 = vmatprep.mubr.bf16.mxu0 0
      %4039 = vmatmul.mubr.bf16.gmra.mrb[0].mxu0 %v3540
      %v4040 = vpop.f32.mrb[0].mxu0
      %v4041 = vadd.f32 0.0, %v4040
      %v4042 = vpop.f32.mrb[0].mxu0
      %v4043 = vpop.f32.mrb[0].mxu0
      %v4044 = vadd.f32 0.0, %v4043
      %v4045 = vpop.f32.mrb[0].mxu0
      %4046 = vmatprep.mubr.bf16.mxu0 0
      %4047 = vmatmul.mubr.bf16.gmra.mrb[0].mxu0 %v3543
      %v4048 = vpop.f32.mrb[0].mxu0
      %v4049 = vadd.f32 0.0, %v4048
      %v4050 = vpop.f32.mrb[0].mxu0
      %v4051 = vpop.f32.mrb[0].mxu0
      %v4052 = vadd.f32 0.0, %v4051
      %v4053 = vpop.f32.mrb[0].mxu0
      %4054 = vmatprep.mubr.bf16.mxu0 0
      %4055 = vmatmul.mubr.bf16.gmra.mrb[0].mxu0 %v3546
      %v4056 = vpop.f32.mrb[0].mxu0
      %v4057 = vadd.f32 0.0, %v4056
      %v4058 = vpop.f32.mrb[0].mxu0
      %v4059 = vpop.f32.mrb[0].mxu0
      %v4060 = vadd.f32 0.0, %v4059
      %v4061 = vpop.f32.mrb[0].mxu0
      %4062 = vmatprep.mubr.bf16.mxu0 0
      %4063 = vmatmul.mubr.bf16.gmra.mrb[0].mxu0 %v3549
      %v4064 = vpop.f32.mrb[0].mxu0
      %v4065 = vadd.f32 0.0, %v4064
      %v4066 = vpop.f32.mrb[0].mxu0
      %v4067 = vpop.f32.mrb[0].mxu0
      %v4068 = vadd.f32 0.0, %v4067
      %v4069 = vpop.f32.mrb[0].mxu0
      %4070 = vmatprep.mubr.bf16.mxu0 0
      %4071 = vmatmul.mubr.bf16.gmra.mrb[0].mxu0 %v3552
      %v4072 = vpop.f32.mrb[0].mxu0
      %v4073 = vadd.f32 0.0, %v4072
      %v4074 = vpop.f32.mrb[0].mxu0
      %v4075 = vpop.f32.mrb[0].mxu0
      %v4076 = vadd.f32 0.0, %v4075
      %v4077 = vpop.f32.mrb[0].mxu0
      %4078 = vmatprep.mubr.bf16.mxu0 0
      %4079 = vmatmul.mubr.bf16.gmra.mrb[0].mxu0 %v3555
      %v4080 = vpop.f32.mrb[0].mxu0
      %v4081 = vadd.f32 0.0, %v4080
      %v4082 = vpop.f32.mrb[0].mxu0
      %v4083 = vpop.f32.mrb[0].mxu0
      %v4084 = vadd.f32 0.0, %v4083
      %v4085 = vpop.f32.mrb[0].mxu0
      %4086 = vmatprep.mubr.bf16.mxu0 0
      %4087 = vmatmul.mubr.bf16.gmra.mrb[0].mxu0 %v3558
      %v4088 = vpop.f32.mrb[0].mxu0
      %v4089 = vadd.f32 0.0, %v4088
      %v4090 = vpop.f32.mrb[0].mxu0
      %v4091 = vpop.f32.mrb[0].mxu0
      %v4092 = vadd.f32 0.0, %v4091
      %v4093 = vpop.f32.mrb[0].mxu0
      %4094 = vmatprep.mubr.bf16.mxu0 0
      %4095 = vmatmul.mubr.bf16.gmra.mrb[0].mxu0 %v3561
      %v4096 = vpop.f32.mrb[0].mxu0
      %v4097 = vadd.f32 0.0, %v4096
      %v4098 = vpop.f32.mrb[0].mxu0
      %v4099 = vpop.f32.mrb[0].mxu0
      %v4100 = vadd.f32 0.0, %v4099
      %v4101 = vpop.f32.mrb[0].mxu0
      %4102 = vmatprep.mubr.bf16.mxu0 0
      %4103 = vmatmul.mubr.bf16.gmra.mrb[0].mxu0 %v3564
      %v4104 = vpop.f32.mrb[0].mxu0
      %v4105 = vadd.f32 0.0, %v4104
      %v4106 = vpop.f32.mrb[0].mxu0
      %v4107 = vpop.f32.mrb[0].mxu0
      %v4108 = vadd.f32 0.0, %v4107
      %v4109 = vpop.f32.mrb[0].mxu0
      %4110 = vmatprep.mubr.bf16.mxu0 0
      %4111 = vmatmul.mubr.bf16.gmra.mrb[0].mxu0 %v3567
      %v4112 = vpop.f32.mrb[0].mxu0
      %v4113 = vadd.f32 0.0, %v4112
      %v4114 = vpop.f32.mrb[0].mxu0
      %v4115 = vpop.f32.mrb[0].mxu0
      %v4116 = vadd.f32 0.0, %v4115
      %v4117 = vpop.f32.mrb[0].mxu0
      %4118 = vmatprep.mubr.bf16.mxu0 0
      %4119 = vmatmul.mubr.bf16.gmra.mrb[0].mxu0 %v3768
      %v4120 = vpop.f32.mrb[0].mxu0
      %v4121 = vadd.f32 0.0, %v4120
      %v4122 = vpop.f32.mrb[0].mxu0
      %v4123 = vpop.f32.mrb[0].mxu0
      %v4124 = vadd.f32 0.0, %v4123
      %v4125 = vpop.f32.mrb[0].mxu0
      %4126 = vmatprep.mubr.bf16.mxu0 0
      %4127 = vmatmul.mubr.bf16.gmra.mrb[0].mxu0 %v3969
      %v4128 = vpop.f32.mrb[0].mxu0
      %v4129 = vadd.f32 0.0, %v4128
      %v4130 = vpop.f32.mrb[0].mxu0
      %v4131 = vpop.f32.mrb[0].mxu0
      %v4132 = vadd.f32 0.0, %v4131
      %v4133 = vpop.f32.mrb[0].mxu0
      %4134 = vdwg.mxu0
      %v4135 = vadd.f32 %v3934, %v4009
      %v4136 = vadd.f32 %v3935, %v4012
      %v4137 = vadd.f32 %v3936, %v4017
      %v4138 = vadd.f32 %v3937, %v4020
      %v4139 = vadd.f32 %v3938, %v4025
      %v4140 = vadd.f32 %v3939, %v4028
      %v4141 = vadd.f32 %v3940, %v4033
      %v4142 = vadd.f32 %v3941, %v4036
      %v4143 = vadd.f32 %v3942, %v4041
      %v4144 = vadd.f32 %v3943, %v4044
      %v4145 = vadd.f32 %v3944, %v4049
      %v4146 = vadd.f32 %v3945, %v4052
      %v4147 = vadd.f32 %v3946, %v4057
      %v4148 = vadd.f32 %v3947, %v4060
      %v4149 = vadd.f32 %v3948, %v4065
      %v4150 = vadd.f32 %v3949, %v4068
      %v4151 = vadd.f32 %v3950, %v4073
      %v4152 = vadd.f32 %v3951, %v4076
      %v4153 = vadd.f32 %v3952, %v4081
      %v4154 = vadd.f32 %v3953, %v4084
      %v4155 = vadd.f32 %v3954, %v4089
      %v4156 = vadd.f32 %v3955, %v4092
      %v4157 = vadd.f32 %v3956, %v4097
      %v4158 = vadd.f32 %v3957, %v4100
      %v4159 = vadd.f32 %v3958, %v4105
      %v4160 = vadd.f32 %v3959, %v4108
      %v4161 = vadd.f32 %v3960, %v4113
      %v4162 = vadd.f32 %v3961, %v4116
      %v4163 = vadd.f32 %v3962, %v4121
      %v4164 = vadd.f32 %v3963, %v4124
      %v4165 = vadd.f32 %v3964, %v4129
      %v4166 = vadd.f32 %v3965, %v4132
      %v4167 = vld [vmem:[%s2] sm:$0x7]
      %v4168 = vlaneseq
      %v4169 = vshrl.u32 %v4168, 7
      %v4170 = vsub.s32 0, %v4169
      %v4171 = vrot.slane %v4167, %v4170
      %v4172 = vmul.f32 %v4135, %v4171
      %v4173 = vmul.f32 %v4136, %v4171
      %v4174 = vmul.f32 %v4137, %v4171
      %v4175 = vmul.f32 %v4138, %v4171
      %v4176 = vmul.f32 %v4139, %v4171
      %v4177 = vmul.f32 %v4140, %v4171
      %v4178 = vmul.f32 %v4141, %v4171
      %v4179 = vmul.f32 %v4142, %v4171
      %v4180 = vmul.f32 %v4143, %v4171
      %v4181 = vmul.f32 %v4144, %v4171
      %v4182 = vmul.f32 %v4145, %v4171
      %v4183 = vmul.f32 %v4146, %v4171
      %v4184 = vmul.f32 %v4147, %v4171
      %v4185 = vmul.f32 %v4148, %v4171
      %v4186 = vmul.f32 %v4149, %v4171
      %v4187 = vmul.f32 %v4150, %v4171
      %v4188 = vmul.f32 %v4151, %v4171
      %v4189 = vmul.f32 %v4152, %v4171
      %v4190 = vmul.f32 %v4153, %v4171
      %v4191 = vmul.f32 %v4154, %v4171
      %v4192 = vmul.f32 %v4155, %v4171
      %v4193 = vmul.f32 %v4156, %v4171
      %v4194 = vmul.f32 %v4157, %v4171
      %v4195 = vmul.f32 %v4158, %v4171
      %v4196 = vmul.f32 %v4159, %v4171
      %v4197 = vmul.f32 %v4160, %v4171
      %v4198 = vmul.f32 %v4161, %v4171
      %v4199 = vmul.f32 %v4162, %v4171
      %v4200 = vmul.f32 %v4163, %v4171
      %v4201 = vmul.f32 %v4164, %v4171
      %v4202 = vmul.f32 %v4165, %v4171
      %v4203 = vmul.f32 %v4166, %v4171
      %v4204 = vlaneseq
      %v4205 = vshrl.u32 %v4204, 7
      %v4206 = vsub.s32 1, %v4205
      %v4207 = vrot.slane %v4167, %v4206
      %v4208 = vadd.f32 %v4172, %v4207
      %v4209 = vadd.f32 %v4173, %v4207
      %v4210 = vadd.f32 %v4174, %v4207
      %v4211 = vadd.f32 %v4175, %v4207
      %v4212 = vadd.f32 %v4176, %v4207
      %v4213 = vadd.f32 %v4177, %v4207
      %v4214 = vadd.f32 %v4178, %v4207
      %v4215 = vadd.f32 %v4179, %v4207
      %v4216 = vadd.f32 %v4180, %v4207
      %v4217 = vadd.f32 %v4181, %v4207
      %v4218 = vadd.f32 %v4182, %v4207
      %v4219 = vadd.f32 %v4183, %v4207
      %v4220 = vadd.f32 %v4184, %v4207
      %v4221 = vadd.f32 %v4185, %v4207
      %v4222 = vadd.f32 %v4186, %v4207
      %v4223 = vadd.f32 %v4187, %v4207
      %v4224 = vadd.f32 %v4188, %v4207
      %v4225 = vadd.f32 %v4189, %v4207
      %v4226 = vadd.f32 %v4190, %v4207
      %v4227 = vadd.f32 %v4191, %v4207
      %v4228 = vadd.f32 %v4192, %v4207
      %v4229 = vadd.f32 %v4193, %v4207
      %v4230 = vadd.f32 %v4194, %v4207
      %v4231 = vadd.f32 %v4195, %v4207
      %v4232 = vadd.f32 %v4196, %v4207
      %v4233 = vadd.f32 %v4197, %v4207
      %v4234 = vadd.f32 %v4198, %v4207
      %v4235 = vadd.f32 %v4199, %v4207
      %v4236 = vadd.f32 %v4200, %v4207
      %v4237 = vadd.f32 %v4201, %v4207
      %v4238 = vadd.f32 %v4202, %v4207
      %v4239 = vadd.f32 %v4203, %v4207
      %vm4240 = vcmp.gt.f32.partialorder %v4208, 0.0
      %vm4241 = vcmp.gt.f32.partialorder %v4209, 0.0
      %vm4242 = vcmp.gt.f32.partialorder %v4210, 0.0
      %vm4243 = vcmp.gt.f32.partialorder %v4211, 0.0
      %vm4244 = vcmp.gt.f32.partialorder %v4212, 0.0
      %vm4245 = vcmp.gt.f32.partialorder %v4213, 0.0
      %vm4246 = vcmp.gt.f32.partialorder %v4214, 0.0
      %vm4247 = vcmp.gt.f32.partialorder %v4215, 0.0
      %vm4248 = vcmp.gt.f32.partialorder %v4216, 0.0
      %vm4249 = vcmp.gt.f32.partialorder %v4217, 0.0
      %vm4250 = vcmp.gt.f32.partialorder %v4218, 0.0
      %vm4251 = vcmp.gt.f32.partialorder %v4219, 0.0
      %vm4252 = vcmp.gt.f32.partialorder %v4220, 0.0
      %vm4253 = vcmp.gt.f32.partialorder %v4221, 0.0
      %vm4254 = vcmp.gt.f32.partialorder %v4222, 0.0
      %vm4255 = vcmp.gt.f32.partialorder %v4223, 0.0
      %vm4256 = vcmp.gt.f32.partialorder %v4224, 0.0
      %vm4257 = vcmp.gt.f32.partialorder %v4225, 0.0
      %vm4258 = vcmp.gt.f32.partialorder %v4226, 0.0
      %vm4259 = vcmp.gt.f32.partialorder %v4227, 0.0
      %vm4260 = vcmp.gt.f32.partialorder %v4228, 0.0
      %vm4261 = vcmp.gt.f32.partialorder %v4229, 0.0
      %vm4262 = vcmp.gt.f32.partialorder %v4230, 0.0
      %vm4263 = vcmp.gt.f32.partialorder %v4231, 0.0
      %vm4264 = vcmp.gt.f32.partialorder %v4232, 0.0
      %vm4265 = vcmp.gt.f32.partialorder %v4233, 0.0
      %vm4266 = vcmp.gt.f32.partialorder %v4234, 0.0
      %vm4267 = vcmp.gt.f32.partialorder %v4235, 0.0
      %vm4268 = vcmp.gt.f32.partialorder %v4236, 0.0
      %vm4269 = vcmp.gt.f32.partialorder %v4237, 0.0
      %vm4270 = vcmp.gt.f32.partialorder %v4238, 0.0
      %vm4271 = vcmp.gt.f32.partialorder %v4239, 0.0
      %v4272 = vlaneseq
      %v4273 = vshrl.u32 %v4272, 7
      %v4274 = vsub.s32 2, %v4273
      %v4275 = vrot.slane %v4167, %v4274
      %v4276 = vmul.f32 %v4275, %v4208
      %v4277 = vmul.f32 %v4275, %v4209
      %v4278 = vmul.f32 %v4275, %v4210
      %v4279 = vmul.f32 %v4275, %v4211
      %v4280 = vmul.f32 %v4275, %v4212
      %v4281 = vmul.f32 %v4275, %v4213
      %v4282 = vmul.f32 %v4275, %v4214
      %v4283 = vmul.f32 %v4275, %v4215
      %v4284 = vmul.f32 %v4275, %v4216
      %v4285 = vmul.f32 %v4275, %v4217
      %v4286 = vmul.f32 %v4275, %v4218
      %v4287 = vmul.f32 %v4275, %v4219
      %v4288 = vmul.f32 %v4275, %v4220
      %v4289 = vmul.f32 %v4275, %v4221
      %v4290 = vmul.f32 %v4275, %v4222
      %v4291 = vmul.f32 %v4275, %v4223
      %v4292 = vmul.f32 %v4275, %v4224
      %v4293 = vmul.f32 %v4275, %v4225
      %v4294 = vmul.f32 %v4275, %v4226
      %v4295 = vmul.f32 %v4275, %v4227
      %v4296 = vmul.f32 %v4275, %v4228
      %v4297 = vmul.f32 %v4275, %v4229
      %v4298 = vmul.f32 %v4275, %v4230
      %v4299 = vmul.f32 %v4275, %v4231
      %v4300 = vmul.f32 %v4275, %v4232
      %v4301 = vmul.f32 %v4275, %v4233
      %v4302 = vmul.f32 %v4275, %v4234
      %v4303 = vmul.f32 %v4275, %v4235
      %v4304 = vmul.f32 %v4275, %v4236
      %v4305 = vmul.f32 %v4275, %v4237
      %v4306 = vmul.f32 %v4275, %v4238
      %v4307 = vmul.f32 %v4275, %v4239
      %v4308 = vsel %vm4240, %v4208, %v4276
      %v4309 = vsel %vm4241, %v4209, %v4277
      %v4310 = vsel %vm4242, %v4210, %v4278
      %v4311 = vsel %vm4243, %v4211, %v4279
      %v4312 = vsel %vm4244, %v4212, %v4280
      %v4313 = vsel %vm4245, %v4213, %v4281
      %v4314 = vsel %vm4246, %v4214, %v4282
      %v4315 = vsel %vm4247, %v4215, %v4283
      %v4316 = vsel %vm4248, %v4216, %v4284
      %v4317 = vsel %vm4249, %v4217, %v4285
      %v4318 = vsel %vm4250, %v4218, %v4286
      %v4319 = vsel %vm4251, %v4219, %v4287
      %v4320 = vsel %vm4252, %v4220, %v4288
      %v4321 = vsel %vm4253, %v4221, %v4289
      %v4322 = vsel %vm4254, %v4222, %v4290
      %v4323 = vsel %vm4255, %v4223, %v4291
      %v4324 = vsel %vm4256, %v4224, %v4292
      %v4325 = vsel %vm4257, %v4225, %v4293
      %v4326 = vsel %vm4258, %v4226, %v4294
      %v4327 = vsel %vm4259, %v4227, %v4295
      %v4328 = vsel %vm4260, %v4228, %v4296
      %v4329 = vsel %vm4261, %v4229, %v4297
      %v4330 = vsel %vm4262, %v4230, %v4298
      %v4331 = vsel %vm4263, %v4231, %v4299
      %v4332 = vsel %vm4264, %v4232, %v4300
      %v4333 = vsel %vm4265, %v4233, %v4301
      %v4334 = vsel %vm4266, %v4234, %v4302
      %v4335 = vsel %vm4267, %v4235, %v4303
      %v4336 = vsel %vm4268, %v4236, %v4304
      %v4337 = vsel %vm4269, %v4237, %v4305
      %v4338 = vsel %vm4270, %v4238, %v4306
      %v4339 = vsel %vm4271, %v4239, %v4307
      %vm4340 = vcmask 130048
      %4341 = vst.msk [vmem:[%s208] sm:$0xff] %vm4340, %v4308
      %4342 = vst.msk [vmem:[%s208 + $0x8] sm:$0xff] %vm4340, %v4309
      %4343 = vst.msk [vmem:[%s208 + $0x10] sm:$0xff] %vm4340, %v4310
      %4344 = vst.msk [vmem:[%s208 + $0x18] sm:$0xff] %vm4340, %v4311
      %4345 = vst.msk [vmem:[%s208 + $0x20] sm:$0xff] %vm4340, %v4312
      %4346 = vst.msk [vmem:[%s208 + $0x28] sm:$0xff] %vm4340, %v4313
      %4347 = vst.msk [vmem:[%s208 + $0x30] sm:$0xff] %vm4340, %v4314
      %4348 = vst.msk [vmem:[%s208 + $0x38] sm:$0xff] %vm4340, %v4315
      %4349 = vst.msk [vmem:[%s208 + $0x40] sm:$0xff] %vm4340, %v4316
      %4350 = vst.msk [vmem:[%s208 + $0x48] sm:$0xff] %vm4340, %v4317
      %4351 = vst.msk [vmem:[%s208 + $0x50] sm:$0xff] %vm4340, %v4318
      %4352 = vst.msk [vmem:[%s208 + $0x58] sm:$0xff] %vm4340, %v4319
      %4353 = vst.msk [vmem:[%s208 + $0x60] sm:$0xff] %vm4340, %v4320
      %4354 = vst.msk [vmem:[%s208 + $0x68] sm:$0xff] %vm4340, %v4321
      %4355 = vst.msk [vmem:[%s208 + $0x70] sm:$0xff] %vm4340, %v4322
      %4356 = vst.msk [vmem:[%s208 + $0x78] sm:$0xff] %vm4340, %v4323
      %4357 = vst.msk [vmem:[%s208 + $0x80] sm:$0xff] %vm4340, %v4324
      %4358 = vst.msk [vmem:[%s208 + $0x88] sm:$0xff] %vm4340, %v4325
      %4359 = vst.msk [vmem:[%s208 + $0x90] sm:$0xff] %vm4340, %v4326
      %4360 = vst.msk [vmem:[%s208 + $0x98] sm:$0xff] %vm4340, %v4327
      %4361 = vst.msk [vmem:[%s208 + $0xa0] sm:$0xff] %vm4340, %v4328
      %4362 = vst.msk [vmem:[%s208 + $0xa8] sm:$0xff] %vm4340, %v4329
      %4363 = vst.msk [vmem:[%s208 + $0xb0] sm:$0xff] %vm4340, %v4330
      %4364 = vst.msk [vmem:[%s208 + $0xb8] sm:$0xff] %vm4340, %v4331
      %4365 = vst.msk [vmem:[%s208 + $0xc0] sm:$0xff] %vm4340, %v4332
      %4366 = vst.msk [vmem:[%s208 + $0xc8] sm:$0xff] %vm4340, %v4333
      %4367 = vst.msk [vmem:[%s208 + $0xd0] sm:$0xff] %vm4340, %v4334
      %4368 = vst.msk [vmem:[%s208 + $0xd8] sm:$0xff] %vm4340, %v4335
      %4369 = vst.msk [vmem:[%s208 + $0xe0] sm:$0xff] %vm4340, %v4336
      %4370 = vst.msk [vmem:[%s208 + $0xe8] sm:$0xff] %vm4340, %v4337
      %4371 = vst.msk [vmem:[%s208 + $0xf0] sm:$0xff] %vm4340, %v4338
      %4372 = vst.msk [vmem:[%s208 + $0xf8] sm:$0xff] %vm4340, %v4339
      %s4373 = smul.u32 16, %s19
      %p4374 = scmp.lt.s32.totalorder %s18, 1
      %s4375 = scalar_select %p4374, %s18, 1
      %p4376 = scmp.lt.s32.totalorder %s4373, 31
      %s4377 = scalar_select %p4376, %s4373, 31
      %s4378 = smul.addr %s4377, 2
      %s4379 = smul.addr %s4375, 64
      %s4380 = sadd.s32 %s4378, %s4379
      %s4381 = smul.addr %s4380, 8
      %s4382 = scalar_lea.vmem %s3, %s4381
      // Predicated region
      $region33: #{tpu_custom_call.1} parent=31 // pred_check
        %p4383 = pneg %p116
      $region34: #{tpu_custom_call.1} parent=31 // pred_check_branch
        %4385 = sbr.rel (%p4383) target = $region36
      $region35: #{tpu_custom_call.1} parent=31 // pred_region
        %s4386 = smul.u32 16, %s19
      $region36: #{tpu_custom_call.1} parent=31 // pred_fallthru
        _
    $region32: #{tpu_custom_call.1} parent=5 // pred_fallthru
      _
    %p4387 = scmp.le.s32.totalorder 2, %s9
    // Predicated region
    $region37: #{tpu_custom_call.1} parent=5 // pred_check
      %p4388 = pneg %p4387
    $region38: #{tpu_custom_call.1} parent=5 // pred_check_branch
      %4390 = sbr.rel (%p4388) target = $region40
    $region39: #{tpu_custom_call.1} parent=5 // pred_region
      %s4391 = ssub.s32 %s9, 2
      // Predicated region
      $region41: #{tpu_custom_call.1} parent=39 // pred_check
        %p4392 = pneg %p122
      $region42: #{tpu_custom_call.1} parent=39 // pred_check_branch
        %4394 = sbr.rel (%p4392) target = $region44
      $region43: #{tpu_custom_call.1} parent=39 // pred_region
        %s4395 = smul.u32 16, %s21
        %p4396 = scmp.lt.s32.totalorder %s20, 1
        %s4397 = scalar_select %p4396, %s20, 1
        %p4398 = scmp.lt.s32.totalorder %s4395, 31
        %s4399 = scalar_select %p4398, %s4395, 31
        %s4400 = smul.addr %s4399, 2
        %s4401 = smul.addr %s4397, 64
        %s4402 = sadd.s32 %s4400, %s4401
        %s4403 = smul.addr %s4402, 8
        %s4404 = scalar_lea.vmem %s3, %s4403
      $region44: #{tpu_custom_call.1} parent=39 // pred_fallthru
        _
    $region40: #{tpu_custom_call.1} parent=5 // pred_fallthru
      _
  $region6: #{tpu_custom_call.1} parent=0 // loop_footer
    %s13 = sadd.s32 1, %s9
  $region7: #{tpu_custom_call.1} parent=0 // loop_footer_branch
    %8 = sbr.rel target = $region3
  $region8: #{tpu_custom_call.1} parent=0 // loop_exit
    _

</llo_original>
